<compile_context>
chip_gen: v5e
topology: v5e:2x2
jax: 0.10.0
libtpu: 0.0.40
codegen_flags: <defaults>
</compile_context>

<pallas_src>
import numpy as np
import jax
import jax.numpy as jnp
from jax.experimental import pallas as pl
from jax.experimental.pallas import tpu as pltpu

PARAMS = dict(hidden_dim=4, num_l2=1, num_l3=2, image_size=16,
              channel_mode="rgb", classifier="binary")


# --------------------------- raw parameter building --------------------------

def build_srnet_params(key):
    h = PARAMS["hidden_dim"]
    num_l2 = PARAMS["num_l2"]
    num_l3 = PARAMS["num_l3"]
    imsize = PARAMS["image_size"]                  # channel_mode == 'rgb'
    num_classes = 4 if PARAMS["classifier"] == "multi" else 2

    state = {"key": key}

    def nk():
        state["key"], sub = jax.random.split(state["key"])
        return sub

    def conv_bn_params(cin, cout, k):
        w = jax.random.normal(nk(), (k, k, cin, cout), jnp.float32) \
            * (1.0 / (k * k * cin) ** 0.5)
        gamma = 1.0 + 0.1 * jax.random.normal(nk(), (cout,), jnp.float32)
        beta = 0.1 * jax.random.normal(nk(), (cout,), jnp.float32)
        mean = 0.1 * jax.random.normal(nk(), (cout,), jnp.float32)
        var = 1.0 + jnp.abs(jax.random.normal(nk(), (cout,), jnp.float32))
        eps = 1e-5
        scale = gamma / jnp.sqrt(var + eps)
        bias = beta - mean * scale
        return dict(w=w, scale=scale, bias=bias)

    layers = []
    # Layer1(3, 4h), Layer1(4h, h)
    layers.append(("l1", conv_bn_params(3, 4 * h, 3)))
    layers.append(("l1", conv_bn_params(4 * h, h, 3)))
    # num_l2 x Layer2(h, h)
    for _ in range(num_l2):
        layers.append(("l2", dict(a=conv_bn_params(h, h, 3),
                                  b=conv_bn_params(h, h, 3))))
    # Layer3 chain
    l3_specs = [(h, h)]
    size, psize = 4, 1
    for _ in range(num_l3 - 1):
        l3_specs.append((h * psize, h * size))
        psize = size
        size *= 2
    for cin, cout in l3_specs:
        layers.append(("l3", dict(skip=conv_bn_params(cin, cout, 1),
                                  a=conv_bn_params(cin, cout, 3),
                                  b=conv_bn_params(cout, cout, 3))))
    # Layer4(h*size/2, imsize) + global pool
    cin4 = int(h * size / 2)
    layers.append(("l4", dict(a=conv_bn_params(cin4, imsize, 3))))
    # Linear(imsize, num_classes)
    wl = jax.random.normal(nk(), (imsize, num_classes), jnp.float32) \
        * (1.0 / imsize ** 0.5)
    bl = 0.1 * jax.random.normal(nk(), (num_classes,), jnp.float32)
    layers.append(("fc", dict(w=wl, b=bl)))
    return layers


# ----------------------------- constant slab packing -------------------------

class _Slab:
    """Packs many 2-D constants into one (rows, cols) array.  Each constant
    occupies [off:off+r, 0:c]; offsets are aligned so in-kernel loads stay on
    native (sublane, lane) tile boundaries."""

    def __init__(self, row_align):
        self.row_align = row_align
        self.items = []
        self.rows = 0
        self.cols = 0

    def add(self, arr):
        arr = np.asarray(arr, np.float32)
        assert arr.ndim == 2
        off = self.rows
        self.items.append((off, arr))
        self.rows += -(-arr.shape[0] // self.row_align) * self.row_align
        self.cols = max(self.cols, arr.shape[1])
        return (off, arr.shape[0], arr.shape[1])

    def finalize(self, dtype):
        rows = max(self.row_align, self.rows)
        cols = -(-max(self.cols, 128) // 128) * 128
        slab = np.zeros((rows, cols), np.float32)
        for off, arr in self.items:
            slab[off:off + arr.shape[0], :arr.shape[1]] = arr
        return jnp.asarray(slab).astype(dtype)


# ----------------- lowering the layers to fused-kernel matrices --------------

def _fold_bn(p):
    """Fold eval-mode BatchNorm into the conv weight; return (w, bias) numpy."""
    w = np.asarray(p["w"], np.float32) * np.asarray(p["scale"], np.float32)
    b = np.asarray(p["bias"], np.float32)
    return w, b


def build_plan(layers, BB):
    """Lower conv / pool / fc layers into two packed constant slabs plus an op
    list; activations use a lane-dense (BB*H, W*C) layout with BB images
    stacked along the row (matmul M) axis."""
    wbuild = _Slab(row_align=16)   # bf16 matmul weights (conv taps, 1x1 skip)
    cbuild = _Slab(row_align=8)    # f32: biases, selection/pool matrices, fc

    def addw(a):
        return ("w",) + wbuild.add(a)

    def addc(a):
        return ("c",) + cbuild.add(a)

    def conv3_op(p, H, relu, fp32):
        # 3x3 conv, stride 1, pad 1, BN folded, optional ReLU.
        W = H
        rows = BB * H
        w, bias = _fold_bn(p)
        _, _, cin, cout = w.shape
        # B[dy][(wp+dx-1)*cin + ci, wp*cout + co] = w[dy, dx, ci, co]
        # (out-of-range horizontal taps dropped == zero padding columns)
        B = np.zeros((3, W * cin, W * cout), np.float32)
        for dy in range(3):
            for dx in range(3):
                for wp in range(W):
                    src = wp + dx - 1
                    if 0 <= src < W:
                        B[dy, src * cin:(src + 1) * cin,
                          wp * cout:(wp + 1) * cout] = w[dy, dx]
        add = addc if fp32 else addw
        d = dict(op="conv3", B=[add(B[dy]) for dy in range(3)],
                 b=addc(np.tile(bias, W)[None, :]), relu=relu, fp32=fp32, H=H)
        if rows % 8 != 0:
            # Tiny-shape fallback (row count not a sublane multiple): explicit
            # block-diagonal shift matrices instead of pltpu.roll.
            Ru = np.zeros((rows, rows), np.float32)
            Rd = np.zeros((rows, rows), np.float32)
            for b in range(BB):
                for hh in range(H):
                    if hh >= 1:
                        Ru[b * H + hh, b * H + hh - 1] = 1.0
                    if hh + 1 < H:
                        Rd[b * H + hh, b * H + hh + 1] = 1.0
            d["Ru"] = addc(Ru)
            d["Rd"] = addc(Rd)
        return d

    def skip_op(p, H):
        # 1x1 conv, stride 2, pad 0, BN folded.
        W = H
        w, bias = _fold_bn(p)
        _, _, cin, cout = w.shape
        Ho, Wo = H // 2, W // 2
        R = np.zeros((BB * Ho, BB * H), np.float32)       # even-row selector
        for b in range(BB):
            for h2 in range(Ho):
                R[b * Ho + h2, b * H + 2 * h2] = 1.0
        S = np.zeros((W * cin, Wo * cout), np.float32)
        for w2 in range(Wo):
            S[2 * w2 * cin:2 * w2 * cin + cin,
              w2 * cout:(w2 + 1) * cout] = w[0, 0]
        return dict(op="skip", R=addc(R), S=addw(S),
                    b=addc(np.tile(bias, Wo)[None, :]))

    def pool_op(H, C):
        # 3x3 avg pool, stride 2, pad 1, count_include_pad=True.
        W = H
        Ho, Wo = H // 2, W // 2
        R = np.zeros((BB * Ho, BB * H), np.float32)
        for b in range(BB):
            for h2 in range(Ho):
                for dy in range(3):
                    r = 2 * h2 + dy - 1
                    if 0 <= r < H:
                        R[b * Ho + h2, b * H + r] = 1.0
        P = np.zeros((W * C, Wo * C), np.float32)
        eye = np.eye(C, dtype=np.float32) / 9.0
        for w2 in range(Wo):
            for dx in range(3):
                src = 2 * w2 + dx - 1
                if 0 <= src < W:
                    P[src * C:(src + 1) * C, w2 * C:(w2 + 1) * C] += eye
        return dict(op="pool", R=addc(R), P=addc(P))

    def gpool_op(H, C):
        # Global average pool over the remaining HxW extent, per image.
        W = H
        Rg = np.zeros((BB, BB * H), np.float32)
        for b in range(BB):
            Rg[b, b * H:(b + 1) * H] = 1.0
        G = np.zeros((W * C, C), np.float32)
        eye = np.eye(C, dtype=np.float32) / float(H * W)
        for wp in range(W):
            G[wp * C:(wp + 1) * C, :] = eye
        return dict(op="gpool", Rg=addc(Rg), G=addc(G))

    ops = []
    H = PARAMS["image_size"]
    num_classes = 2
    first_conv = True
    for kind, p in layers:
        if kind == "l1":
            # Keep the input-adjacent first conv in f32 (low-magnitude residual
            # signals); later convs use bf16 MXU operands.
            ops.append(("l1", [conv3_op(p, H, True, fp32=first_conv)]))
            first_conv = False
        elif kind == "l2":
            ops.append(("l2", [conv3_op(p["a"], H, True, False),
                               conv3_op(p["b"], H, False, False)]))
        elif kind == "l3":
            cout_b = int(p["b"]["w"].shape[-1])
            ops.append(("l3", [skip_op(p["skip"], H),
                               conv3_op(p["a"], H, True, False),
                               conv3_op(p["b"], H, False, False),
                               pool_op(H, cout_b)]))
            H //= 2
        elif kind == "l4":
            c4 = int(p["a"]["w"].shape[-1])
            ops.append(("l4", [conv3_op(p["a"], H, True, False),
                               gpool_op(H, c4)]))
        elif kind == "fc":
            num_classes = int(p["w"].shape[-1])
            ops.append(("fc", [dict(op="fc",
                                    W=addc(np.asarray(p["w"], np.float32)),
                                    b=addc(np.asarray(p["b"],
                                                      np.float32)[None, :]))]))
    meta = dict(num_classes=num_classes)
    return ops, wbuild.finalize(jnp.bfloat16), cbuild.finalize(jnp.float32), meta


# ------------------------------ fused Pallas kernel --------------------------

def make_srnet_kernel(ops):
    def kernel(x_ref, w_ref, c_ref, o_ref):
        def ld(e):                               # static slice into a packed slab
            slab, off, r, c = e
            ref = w_ref if slab == "w" else c_ref
            return ref[off:off + r, 0:c]

        def mm(a, b):
            return jnp.dot(a, b, preferred_element_type=jnp.float32)

        def conv3(x, d):
            # 3x3 conv = 3 INDEPENDENT matmuls (up/center/down vertical taps);
            # vertical shifts via XLU roll + VPU boundary mask (no shift matmuls).
            H = d["H"]
            if "Ru" in d:                        # tiny-shape fallback path
                x_up = mm(ld(d["Ru"]), x)
                x_dn = mm(ld(d["Rd"]), x)
            else:
                row = jax.lax.broadcasted_iota(jnp.int32, x.shape, 0)
                x_up = jnp.where(row % H == 0, 0.0,
                                 pltpu.roll(x, 1, axis=0))
                x_dn = jnp.where(row % H == H - 1, 0.0,
                                 pltpu.roll(x, x.shape[0] - 1, axis=0))
            if not d["fp32"]:                    # bf16 only at the dot boundary
                x, x_up, x_dn = (t.astype(jnp.bfloat16)
                                 for t in (x, x_up, x_dn))
            B0, B1, B2 = (ld(e) for e in d["B"])
            y = mm(x, B1) + mm(x_up, B0) + mm(x_dn, B2)
            y = y + ld(d["b"])                   # folded-BN bias (f32)
            if d["relu"]:
                y = jnp.maximum(y, 0.0)
            return y

        def skip(x, d):                          # 1x1 conv, stride 2
            t = mm(ld(d["R"]), x)                # exact even-row select (f32)
            t = mm(t.astype(jnp.bfloat16), ld(d["S"]))
            return t + ld(d["b"])

        def pool(x, d):                          # 3x3 avg pool, stride 2, pad 1
            return mm(mm(ld(d["R"]), x), ld(d["P"]))

        x = x_ref[...]                           # (BB*H, W*C) lane-dense rows
        for kind, items in ops:
            if kind == "l1":
                x = conv3(x, items[0])
            elif kind == "l2":
                y = conv3(x, items[0])
                y = conv3(y, items[1])
                x = x + y                        # residual add, f32
            elif kind == "l3":
                sk = skip(x, items[0])
                y = conv3(x, items[1])
                y = conv3(y, items[2])
                y = pool(y, items[3])
                x = sk + y                       # residual add, f32
            elif kind == "l4":
                y = conv3(x, items[0])
                g = mm(ld(items[1]["Rg"]), y)    # per-image row sums
                x = mm(g, ld(items[1]["G"]))     # global average pool
            elif kind == "fc":
                x = mm(x, ld(items[0]["W"])) + ld(items[0]["b"])
        o_ref[0] = x                             # (BB, num_classes) logits
    return kernel


# ------------------------------ forward wrapper ------------------------------

def pick_batch_block(N, H):
    """Images stacked per grid step.  v5e/v6e (1 TensorCore): collapse the
    batch into one step (bigger MXU M fill).  v7x (2 TensorCores): keep >= 2
    'parallel' grid steps when the batch allows.  M = BB*H is capped at 256."""
    try:
        kind = jax.devices()[0].device_kind.lower()
    except Exception:
        kind = ""
    two_core = ("v7" in kind) or ("7x" in kind)
    min_steps = 2 if (two_core and N >= 2) else 1
    bb = max(1, min(256 // H, N // min_steps))
    while N % bb:                                # BB must divide the batch
        bb -= 1
    return bb


def srnet_forward(x_nchw, ops, wslab, cslab, meta, BB):
    N, C, H, W = x_nchw.shape
    x = jnp.transpose(x_nchw, (0, 2, 3, 1)).astype(jnp.float32)  # NCHW -> NHWC
    x2d = x.reshape(N * H, W * C)               # lane-dense (N*H, W*C) rows
    steps = N // BB
    ncls = meta["num_classes"]

    out = pl.pallas_call(
        make_srnet_kernel(ops),
        out_shape=jax.ShapeDtypeStruct((steps, BB, ncls), jnp.float32),
        grid=(steps,),
        in_specs=[
            pl.BlockSpec((BB * H, W * C), lambda n: (n, 0)),   # BB stacked images
            pl.BlockSpec(wslab.shape, lambda n: (0, 0)),       # bf16 weight slab
            pl.BlockSpec(cslab.shape, lambda n: (0, 0)),       # f32 constant slab
        ],
        out_specs=pl.BlockSpec((1, BB, ncls), lambda n: (n, 0, 0)),
        compiler_params=pltpu.CompilerParams(
            dimension_semantics=("parallel",)),
    )(x2d, wslab, cslab)
    return out.reshape(N, ncls)


if __name__ == "__main__":
    key = jax.random.PRNGKey(0)
    pkey, xkey = jax.random.split(key)
    layers = build_srnet_params(pkey)

    N, H0 = 2, PARAMS["image_size"]
    BB = pick_batch_block(N, H0)
    ops, wslab, cslab, meta = build_plan(layers, BB)

    # PyTorch-style NCHW input: batch=2, 3 channels, 16x16 image.
    x = jax.random.normal(xkey, (N, 3, H0, H0), jnp.float32)
    out = srnet_forward(x, ops, wslab, cslab, meta, BB)
    out = jax.block_until_ready(out)
    assert out.shape == (N, meta["num_classes"]), out.shape
    assert bool(jnp.all(jnp.isfinite(out)))
    print("KERNEL_OK")
</pallas_src>

<mosaic_0001>
module attributes {stable_mosaic.version = 11 : i64} {
  func.func @kernel(%arg0: i32, %arg1: memref<32x48xf32, #tpu.memory_space<vmem>>, %arg2: memref<2304x128xbf16, #tpu.memory_space<vmem>>, %arg3: memref<568x256xf32, #tpu.memory_space<vmem>>, %arg4: memref<1x2x2xf32, #tpu.memory_space<vmem>>) attributes {dimension_semantics = [#tpu.dimension_semantics<parallel>], iteration_bounds = array<i64: 1>, scalar_prefetch = 0 : i64, scratch_operands = 0 : i64, tpu.core_type = #tpu.core_type<tc>, window_params = [{transform_indices = @transform_0, window_bounds = array<i64: 32, 48>}, {pipeline_mode = #tpu.pipeline_mode<synchronous>, transform_indices = @transform_1, window_bounds = array<i64: 2304, 128>}, {pipeline_mode = #tpu.pipeline_mode<synchronous>, transform_indices = @transform_2, window_bounds = array<i64: 568, 256>}, {transform_indices = @transform_3, window_bounds = array<i64: 1, 2, 2>}]} {
    %c0 = arith.constant 0 : index
    %c0_0 = arith.constant 0 : index
    %0 = vector.load %arg1[%c0, %c0_0] : memref<32x48xf32, #tpu.memory_space<vmem>>, vector<32x48xf32>
    %1 = tpu.iota {dimensions = array<i32: 0>} : vector<32x48xi32>
    %c16_i32 = arith.constant 16 : i32
    %c0_i32 = arith.constant 0 : i32
    %2 = arith.cmpi eq, %c16_i32, %c0_i32 : i32
    %c1_i32 = arith.constant 1 : i32
    %3 = arith.select %2, %c1_i32, %c16_i32 : i32
    %4 = vector.broadcast %3 : i32 to vector<32x48xi32>
    %5 = arith.remsi %1, %4 : vector<32x48xi32>
    %c0_i32_1 = arith.constant 0 : i32
    %6 = vector.broadcast %c0_i32_1 : i32 to vector<32x48xi32>
    %7 = arith.cmpi ne, %5, %6 : vector<32x48xi32>
    %c0_i32_2 = arith.constant 0 : i32
    %8 = vector.broadcast %c0_i32_2 : i32 to vector<32x48xi32>
    %9 = arith.cmpi slt, %5, %8 : vector<32x48xi32>
    %c0_i32_3 = arith.constant 0 : i32
    %10 = arith.cmpi slt, %3, %c0_i32_3 : i32
    %11 = vector.broadcast %10 : i1 to vector<32x48xi1>
    %12 = vector.broadcast %11 : vector<32x48xi1> to vector<32x48xi1>
    %13 = arith.xori %9, %12 : vector<32x48xi1>
    %14 = arith.andi %13, %7 : vector<32x48xi1>
    %15 = vector.broadcast %3 : i32 to vector<32x48xi32>
    %16 = arith.addi %5, %15 : vector<32x48xi32>
    %17 = arith.select %14, %16, %5 : vector<32x48xi1>, vector<32x48xi32>
    %c0_i32_4 = arith.constant 0 : i32
    %18 = vector.broadcast %c0_i32_4 : i32 to vector<32x48xi32>
    %19 = arith.cmpi eq, %17, %18 : vector<32x48xi32>
    %c1_i32_5 = arith.constant 1 : i32
    %20 = tpu.dynamic_rotate %0 by %c1_i32_5 dim 0 : vector<32x48xf32>, i32 -> vector<32x48xf32>
    %cst = arith.constant 0.000000e+00 : f32
    %21 = vector.broadcast %cst : f32 to vector<32x48xf32>
    %22 = arith.select %19, %21, %20 : vector<32x48xi1>, vector<32x48xf32>
    %c16_i32_6 = arith.constant 16 : i32
    %c0_i32_7 = arith.constant 0 : i32
    %23 = arith.cmpi eq, %c16_i32_6, %c0_i32_7 : i32
    %c1_i32_8 = arith.constant 1 : i32
    %24 = arith.select %23, %c1_i32_8, %c16_i32_6 : i32
    %25 = vector.broadcast %24 : i32 to vector<32x48xi32>
    %26 = arith.remsi %1, %25 : vector<32x48xi32>
    %c0_i32_9 = arith.constant 0 : i32
    %27 = vector.broadcast %c0_i32_9 : i32 to vector<32x48xi32>
    %28 = arith.cmpi ne, %26, %27 : vector<32x48xi32>
    %c0_i32_10 = arith.constant 0 : i32
    %29 = vector.broadcast %c0_i32_10 : i32 to vector<32x48xi32>
    %30 = arith.cmpi slt, %26, %29 : vector<32x48xi32>
    %c0_i32_11 = arith.constant 0 : i32
    %31 = arith.cmpi slt, %24, %c0_i32_11 : i32
    %32 = vector.broadcast %31 : i1 to vector<32x48xi1>
    %33 = vector.broadcast %32 : vector<32x48xi1> to vector<32x48xi1>
    %34 = arith.xori %30, %33 : vector<32x48xi1>
    %35 = arith.andi %34, %28 : vector<32x48xi1>
    %36 = vector.broadcast %24 : i32 to vector<32x48xi32>
    %37 = arith.addi %26, %36 : vector<32x48xi32>
    %38 = arith.select %35, %37, %26 : vector<32x48xi1>, vector<32x48xi32>
    %c15_i32 = arith.constant 15 : i32
    %39 = vector.broadcast %c15_i32 : i32 to vector<32x48xi32>
    %40 = arith.cmpi eq, %38, %39 : vector<32x48xi32>
    %c31_i32 = arith.constant 31 : i32
    %41 = tpu.dynamic_rotate %0 by %c31_i32 dim 0 : vector<32x48xf32>, i32 -> vector<32x48xf32>
    %cst_12 = arith.constant 0.000000e+00 : f32
    %42 = vector.broadcast %cst_12 : f32 to vector<32x48xf32>
    %43 = arith.select %40, %42, %41 : vector<32x48xi1>, vector<32x48xf32>
    %c0_13 = arith.constant 0 : index
    %c0_14 = arith.constant 0 : index
    %44 = vector.load %arg3[%c0_13, %c0_14] : memref<568x256xf32, #tpu.memory_space<vmem>>, vector<48x256xf32>
    %c48 = arith.constant 48 : index
    %c0_15 = arith.constant 0 : index
    %45 = vector.load %arg3[%c48, %c0_15] : memref<568x256xf32, #tpu.memory_space<vmem>>, vector<48x256xf32>
    %c96 = arith.constant 96 : index
    %c0_16 = arith.constant 0 : index
    %46 = vector.load %arg3[%c96, %c0_16] : memref<568x256xf32, #tpu.memory_space<vmem>>, vector<48x256xf32>
    %cst_17 = arith.constant dense<0.000000e+00> : vector<32x256xf32>
    %47 = tpu.matmul %0, %45, %cst_17 {dimension_numbers = #tpu.dot_dimension_numbers<[1], [0], [0], [1], [0, 0, 1, 1], [], []>} : vector<32x48xf32>, vector<48x256xf32>, vector<32x256xf32> -> vector<32x256xf32>
    %cst_18 = arith.constant dense<0.000000e+00> : vector<32x256xf32>
    %48 = tpu.matmul %22, %44, %cst_18 {dimension_numbers = #tpu.dot_dimension_numbers<[1], [0], [0], [1], [0, 0, 1, 1], [], []>} : vector<32x48xf32>, vector<48x256xf32>, vector<32x256xf32> -> vector<32x256xf32>
    %49 = arith.addf %47, %48 : vector<32x256xf32>
    %cst_19 = arith.constant dense<0.000000e+00> : vector<32x256xf32>
    %50 = tpu.matmul %43, %46, %cst_19 {dimension_numbers = #tpu.dot_dimension_numbers<[1], [0], [0], [1], [0, 0, 1, 1], [], []>} : vector<32x48xf32>, vector<48x256xf32>, vector<32x256xf32> -> vector<32x256xf32>
    %51 = arith.addf %49, %50 : vector<32x256xf32>
    %c144 = arith.constant 144 : index
    %c0_20 = arith.constant 0 : index
    %52 = vector.load %arg3[%c144, %c0_20] : memref<568x256xf32, #tpu.memory_space<vmem>>, vector<1x256xf32>
    %53 = vector.broadcast %52 : vector<1x256xf32> to vector<32x256xf32>
    %54 = arith.addf %51, %53 : vector<32x256xf32>
    %cst_21 = arith.constant 0.000000e+00 : f32
    %55 = vector.broadcast %cst_21 : f32 to vector<32x256xf32>
    %56 = arith.maximumf %54, %55 : vector<32x256xf32>
    %57 = tpu.iota {dimensions = array<i32: 0>} : vector<32x256xi32>
    %c16_i32_22 = arith.constant 16 : i32
    %c0_i32_23 = arith.constant 0 : i32
    %58 = arith.cmpi eq, %c16_i32_22, %c0_i32_23 : i32
    %c1_i32_24 = arith.constant 1 : i32
    %59 = arith.select %58, %c1_i32_24, %c16_i32_22 : i32
    %60 = vector.broadcast %59 : i32 to vector<32x256xi32>
    %61 = arith.remsi %57, %60 : vector<32x256xi32>
    %c0_i32_25 = arith.constant 0 : i32
    %62 = vector.broadcast %c0_i32_25 : i32 to vector<32x256xi32>
    %63 = arith.cmpi ne, %61, %62 : vector<32x256xi32>
    %c0_i32_26 = arith.constant 0 : i32
    %64 = vector.broadcast %c0_i32_26 : i32 to vector<32x256xi32>
    %65 = arith.cmpi slt, %61, %64 : vector<32x256xi32>
    %c0_i32_27 = arith.constant 0 : i32
    %66 = arith.cmpi slt, %59, %c0_i32_27 : i32
    %67 = vector.broadcast %66 : i1 to vector<32x256xi1>
    %68 = vector.broadcast %67 : vector<32x256xi1> to vector<32x256xi1>
    %69 = arith.xori %65, %68 : vector<32x256xi1>
    %70 = arith.andi %69, %63 : vector<32x256xi1>
    %71 = vector.broadcast %59 : i32 to vector<32x256xi32>
    %72 = arith.addi %61, %71 : vector<32x256xi32>
    %73 = arith.select %70, %72, %61 : vector<32x256xi1>, vector<32x256xi32>
    %c0_i32_28 = arith.constant 0 : i32
    %74 = vector.broadcast %c0_i32_28 : i32 to vector<32x256xi32>
    %75 = arith.cmpi eq, %73, %74 : vector<32x256xi32>
    %c1_i32_29 = arith.constant 1 : i32
    %76 = tpu.dynamic_rotate %56 by %c1_i32_29 dim 0 : vector<32x256xf32>, i32 -> vector<32x256xf32>
    %cst_30 = arith.constant 0.000000e+00 : f32
    %77 = vector.broadcast %cst_30 : f32 to vector<32x256xf32>
    %78 = arith.select %75, %77, %76 : vector<32x256xi1>, vector<32x256xf32>
    %c16_i32_31 = arith.constant 16 : i32
    %c0_i32_32 = arith.constant 0 : i32
    %79 = arith.cmpi eq, %c16_i32_31, %c0_i32_32 : i32
    %c1_i32_33 = arith.constant 1 : i32
    %80 = arith.select %79, %c1_i32_33, %c16_i32_31 : i32
    %81 = vector.broadcast %80 : i32 to vector<32x256xi32>
    %82 = arith.remsi %57, %81 : vector<32x256xi32>
    %c0_i32_34 = arith.constant 0 : i32
    %83 = vector.broadcast %c0_i32_34 : i32 to vector<32x256xi32>
    %84 = arith.cmpi ne, %82, %83 : vector<32x256xi32>
    %c0_i32_35 = arith.constant 0 : i32
    %85 = vector.broadcast %c0_i32_35 : i32 to vector<32x256xi32>
    %86 = arith.cmpi slt, %82, %85 : vector<32x256xi32>
    %c0_i32_36 = arith.constant 0 : i32
    %87 = arith.cmpi slt, %80, %c0_i32_36 : i32
    %88 = vector.broadcast %87 : i1 to vector<32x256xi1>
    %89 = vector.broadcast %88 : vector<32x256xi1> to vector<32x256xi1>
    %90 = arith.xori %86, %89 : vector<32x256xi1>
    %91 = arith.andi %90, %84 : vector<32x256xi1>
    %92 = vector.broadcast %80 : i32 to vector<32x256xi32>
    %93 = arith.addi %82, %92 : vector<32x256xi32>
    %94 = arith.select %91, %93, %82 : vector<32x256xi1>, vector<32x256xi32>
    %c15_i32_37 = arith.constant 15 : i32
    %95 = vector.broadcast %c15_i32_37 : i32 to vector<32x256xi32>
    %96 = arith.cmpi eq, %94, %95 : vector<32x256xi32>
    %c31_i32_38 = arith.constant 31 : i32
    %97 = tpu.dynamic_rotate %56 by %c31_i32_38 dim 0 : vector<32x256xf32>, i32 -> vector<32x256xf32>
    %cst_39 = arith.constant 0.000000e+00 : f32
    %98 = vector.broadcast %cst_39 : f32 to vector<32x256xf32>
    %99 = arith.select %96, %98, %97 : vector<32x256xi1>, vector<32x256xf32>
    %100 = arith.truncf %56 : vector<32x256xf32> to vector<32x256xbf16>
    %101 = arith.truncf %78 : vector<32x256xf32> to vector<32x256xbf16>
    %102 = arith.truncf %99 : vector<32x256xf32> to vector<32x256xbf16>
    %c0_40 = arith.constant 0 : index
    %c0_41 = arith.constant 0 : index
    %103 = vector.load %arg2[%c0_40, %c0_41] : memref<2304x128xbf16, #tpu.memory_space<vmem>>, vector<256x64xbf16>
    %c256 = arith.constant 256 : index
    %c0_42 = arith.constant 0 : index
    %104 = vector.load %arg2[%c256, %c0_42] : memref<2304x128xbf16, #tpu.memory_space<vmem>>, vector<256x64xbf16>
    %c512 = arith.constant 512 : index
    %c0_43 = arith.constant 0 : index
    %105 = vector.load %arg2[%c512, %c0_43] : memref<2304x128xbf16, #tpu.memory_space<vmem>>, vector<256x64xbf16>
    %cst_44 = arith.constant dense<0.000000e+00> : vector<32x64xf32>
    %106 = tpu.matmul %100, %104, %cst_44 {dimension_numbers = #tpu.dot_dimension_numbers<[1], [0], [0], [1], [0, 0, 1, 1], [], []>} : vector<32x256xbf16>, vector<256x64xbf16>, vector<32x64xf32> -> vector<32x64xf32>
    %cst_45 = arith.constant dense<0.000000e+00> : vector<32x64xf32>
    %107 = tpu.matmul %101, %103, %cst_45 {dimension_numbers = #tpu.dot_dimension_numbers<[1], [0], [0], [1], [0, 0, 1, 1], [], []>} : vector<32x256xbf16>, vector<256x64xbf16>, vector<32x64xf32> -> vector<32x64xf32>
    %108 = arith.addf %106, %107 : vector<32x64xf32>
    %cst_46 = arith.constant dense<0.000000e+00> : vector<32x64xf32>
    %109 = tpu.matmul %102, %105, %cst_46 {dimension_numbers = #tpu.dot_dimension_numbers<[1], [0], [0], [1], [0, 0, 1, 1], [], []>} : vector<32x256xbf16>, vector<256x64xbf16>, vector<32x64xf32> -> vector<32x64xf32>
    %110 = arith.addf %108, %109 : vector<32x64xf32>
    %c152 = arith.constant 152 : index
    %c0_47 = arith.constant 0 : index
    %111 = vector.load %arg3[%c152, %c0_47] : memref<568x256xf32, #tpu.memory_space<vmem>>, vector<1x64xf32>
    %112 = vector.broadcast %111 : vector<1x64xf32> to vector<32x64xf32>
    %113 = arith.addf %110, %112 : vector<32x64xf32>
    %cst_48 = arith.constant 0.000000e+00 : f32
    %114 = vector.broadcast %cst_48 : f32 to vector<32x64xf32>
    %115 = arith.maximumf %113, %114 : vector<32x64xf32>
    %116 = tpu.iota {dimensions = array<i32: 0>} : vector<32x64xi32>
    %c16_i32_49 = arith.constant 16 : i32
    %c0_i32_50 = arith.constant 0 : i32
    %117 = arith.cmpi eq, %c16_i32_49, %c0_i32_50 : i32
    %c1_i32_51 = arith.constant 1 : i32
    %118 = arith.select %117, %c1_i32_51, %c16_i32_49 : i32
    %119 = vector.broadcast %118 : i32 to vector<32x64xi32>
    %120 = arith.remsi %116, %119 : vector<32x64xi32>
    %c0_i32_52 = arith.constant 0 : i32
    %121 = vector.broadcast %c0_i32_52 : i32 to vector<32x64xi32>
    %122 = arith.cmpi ne, %120, %121 : vector<32x64xi32>
    %c0_i32_53 = arith.constant 0 : i32
    %123 = vector.broadcast %c0_i32_53 : i32 to vector<32x64xi32>
    %124 = arith.cmpi slt, %120, %123 : vector<32x64xi32>
    %c0_i32_54 = arith.constant 0 : i32
    %125 = arith.cmpi slt, %118, %c0_i32_54 : i32
    %126 = vector.broadcast %125 : i1 to vector<32x64xi1>
    %127 = vector.broadcast %126 : vector<32x64xi1> to vector<32x64xi1>
    %128 = arith.xori %124, %127 : vector<32x64xi1>
    %129 = arith.andi %128, %122 : vector<32x64xi1>
    %130 = vector.broadcast %118 : i32 to vector<32x64xi32>
    %131 = arith.addi %120, %130 : vector<32x64xi32>
    %132 = arith.select %129, %131, %120 : vector<32x64xi1>, vector<32x64xi32>
    %c0_i32_55 = arith.constant 0 : i32
    %133 = vector.broadcast %c0_i32_55 : i32 to vector<32x64xi32>
    %134 = arith.cmpi eq, %132, %133 : vector<32x64xi32>
    %c1_i32_56 = arith.constant 1 : i32
    %135 = tpu.dynamic_rotate %115 by %c1_i32_56 dim 0 : vector<32x64xf32>, i32 -> vector<32x64xf32>
    %cst_57 = arith.constant 0.000000e+00 : f32
    %136 = vector.broadcast %cst_57 : f32 to vector<32x64xf32>
    %137 = arith.select %134, %136, %135 : vector<32x64xi1>, vector<32x64xf32>
    %c16_i32_58 = arith.constant 16 : i32
    %c0_i32_59 = arith.constant 0 : i32
    %138 = arith.cmpi eq, %c16_i32_58, %c0_i32_59 : i32
    %c1_i32_60 = arith.constant 1 : i32
    %139 = arith.select %138, %c1_i32_60, %c16_i32_58 : i32
    %140 = vector.broadcast %139 : i32 to vector<32x64xi32>
    %141 = arith.remsi %116, %140 : vector<32x64xi32>
    %c0_i32_61 = arith.constant 0 : i32
    %142 = vector.broadcast %c0_i32_61 : i32 to vector<32x64xi32>
    %143 = arith.cmpi ne, %141, %142 : vector<32x64xi32>
    %c0_i32_62 = arith.constant 0 : i32
    %144 = vector.broadcast %c0_i32_62 : i32 to vector<32x64xi32>
    %145 = arith.cmpi slt, %141, %144 : vector<32x64xi32>
    %c0_i32_63 = arith.constant 0 : i32
    %146 = arith.cmpi slt, %139, %c0_i32_63 : i32
    %147 = vector.broadcast %146 : i1 to vector<32x64xi1>
    %148 = vector.broadcast %147 : vector<32x64xi1> to vector<32x64xi1>
    %149 = arith.xori %145, %148 : vector<32x64xi1>
    %150 = arith.andi %149, %143 : vector<32x64xi1>
    %151 = vector.broadcast %139 : i32 to vector<32x64xi32>
    %152 = arith.addi %141, %151 : vector<32x64xi32>
    %153 = arith.select %150, %152, %141 : vector<32x64xi1>, vector<32x64xi32>
    %c15_i32_64 = arith.constant 15 : i32
    %154 = vector.broadcast %c15_i32_64 : i32 to vector<32x64xi32>
    %155 = arith.cmpi eq, %153, %154 : vector<32x64xi32>
    %c31_i32_65 = arith.constant 31 : i32
    %156 = tpu.dynamic_rotate %115 by %c31_i32_65 dim 0 : vector<32x64xf32>, i32 -> vector<32x64xf32>
    %cst_66 = arith.constant 0.000000e+00 : f32
    %157 = vector.broadcast %cst_66 : f32 to vector<32x64xf32>
    %158 = arith.select %155, %157, %156 : vector<32x64xi1>, vector<32x64xf32>
    %159 = arith.truncf %115 : vector<32x64xf32> to vector<32x64xbf16>
    %160 = arith.truncf %137 : vector<32x64xf32> to vector<32x64xbf16>
    %161 = arith.truncf %158 : vector<32x64xf32> to vector<32x64xbf16>
    %c768 = arith.constant 768 : index
    %c0_67 = arith.constant 0 : index
    %162 = vector.load %arg2[%c768, %c0_67] : memref<2304x128xbf16, #tpu.memory_space<vmem>>, vector<64x64xbf16>
    %c832 = arith.constant 832 : index
    %c0_68 = arith.constant 0 : index
    %163 = vector.load %arg2[%c832, %c0_68] : memref<2304x128xbf16, #tpu.memory_space<vmem>>, vector<64x64xbf16>
    %c896 = arith.constant 896 : index
    %c0_69 = arith.constant 0 : index
    %164 = vector.load %arg2[%c896, %c0_69] : memref<2304x128xbf16, #tpu.memory_space<vmem>>, vector<64x64xbf16>
    %cst_70 = arith.constant dense<0.000000e+00> : vector<32x64xf32>
    %165 = tpu.matmul %159, %163, %cst_70 {dimension_numbers = #tpu.dot_dimension_numbers<[1], [0], [0], [1], [0, 0, 1, 1], [], []>} : vector<32x64xbf16>, vector<64x64xbf16>, vector<32x64xf32> -> vector<32x64xf32>
    %cst_71 = arith.constant dense<0.000000e+00> : vector<32x64xf32>
    %166 = tpu.matmul %160, %162, %cst_71 {dimension_numbers = #tpu.dot_dimension_numbers<[1], [0], [0], [1], [0, 0, 1, 1], [], []>} : vector<32x64xbf16>, vector<64x64xbf16>, vector<32x64xf32> -> vector<32x64xf32>
    %167 = arith.addf %165, %166 : vector<32x64xf32>
    %cst_72 = arith.constant dense<0.000000e+00> : vector<32x64xf32>
    %168 = tpu.matmul %161, %164, %cst_72 {dimension_numbers = #tpu.dot_dimension_numbers<[1], [0], [0], [1], [0, 0, 1, 1], [], []>} : vector<32x64xbf16>, vector<64x64xbf16>, vector<32x64xf32> -> vector<32x64xf32>
    %169 = arith.addf %167, %168 : vector<32x64xf32>
    %c160 = arith.constant 160 : index
    %c0_73 = arith.constant 0 : index
    %170 = vector.load %arg3[%c160, %c0_73] : memref<568x256xf32, #tpu.memory_space<vmem>>, vector<1x64xf32>
    %171 = vector.broadcast %170 : vector<1x64xf32> to vector<32x64xf32>
    %172 = arith.addf %169, %171 : vector<32x64xf32>
    %cst_74 = arith.constant 0.000000e+00 : f32
    %173 = vector.broadcast %cst_74 : f32 to vector<32x64xf32>
    %174 = arith.maximumf %172, %173 : vector<32x64xf32>
    %175 = tpu.iota {dimensions = array<i32: 0>} : vector<32x64xi32>
    %c16_i32_75 = arith.constant 16 : i32
    %c0_i32_76 = arith.constant 0 : i32
    %176 = arith.cmpi eq, %c16_i32_75, %c0_i32_76 : i32
    %c1_i32_77 = arith.constant 1 : i32
    %177 = arith.select %176, %c1_i32_77, %c16_i32_75 : i32
    %178 = vector.broadcast %177 : i32 to vector<32x64xi32>
    %179 = arith.remsi %175, %178 : vector<32x64xi32>
    %c0_i32_78 = arith.constant 0 : i32
    %180 = vector.broadcast %c0_i32_78 : i32 to vector<32x64xi32>
    %181 = arith.cmpi ne, %179, %180 : vector<32x64xi32>
    %c0_i32_79 = arith.constant 0 : i32
    %182 = vector.broadcast %c0_i32_79 : i32 to vector<32x64xi32>
    %183 = arith.cmpi slt, %179, %182 : vector<32x64xi32>
    %c0_i32_80 = arith.constant 0 : i32
    %184 = arith.cmpi slt, %177, %c0_i32_80 : i32
    %185 = vector.broadcast %184 : i1 to vector<32x64xi1>
    %186 = vector.broadcast %185 : vector<32x64xi1> to vector<32x64xi1>
    %187 = arith.xori %183, %186 : vector<32x64xi1>
    %188 = arith.andi %187, %181 : vector<32x64xi1>
    %189 = vector.broadcast %177 : i32 to vector<32x64xi32>
    %190 = arith.addi %179, %189 : vector<32x64xi32>
    %191 = arith.select %188, %190, %179 : vector<32x64xi1>, vector<32x64xi32>
    %c0_i32_81 = arith.constant 0 : i32
    %192 = vector.broadcast %c0_i32_81 : i32 to vector<32x64xi32>
    %193 = arith.cmpi eq, %191, %192 : vector<32x64xi32>
    %c1_i32_82 = arith.constant 1 : i32
    %194 = tpu.dynamic_rotate %174 by %c1_i32_82 dim 0 : vector<32x64xf32>, i32 -> vector<32x64xf32>
    %cst_83 = arith.constant 0.000000e+00 : f32
    %195 = vector.broadcast %cst_83 : f32 to vector<32x64xf32>
    %196 = arith.select %193, %195, %194 : vector<32x64xi1>, vector<32x64xf32>
    %c16_i32_84 = arith.constant 16 : i32
    %c0_i32_85 = arith.constant 0 : i32
    %197 = arith.cmpi eq, %c16_i32_84, %c0_i32_85 : i32
    %c1_i32_86 = arith.constant 1 : i32
    %198 = arith.select %197, %c1_i32_86, %c16_i32_84 : i32
    %199 = vector.broadcast %198 : i32 to vector<32x64xi32>
    %200 = arith.remsi %175, %199 : vector<32x64xi32>
    %c0_i32_87 = arith.constant 0 : i32
    %201 = vector.broadcast %c0_i32_87 : i32 to vector<32x64xi32>
    %202 = arith.cmpi ne, %200, %201 : vector<32x64xi32>
    %c0_i32_88 = arith.constant 0 : i32
    %203 = vector.broadcast %c0_i32_88 : i32 to vector<32x64xi32>
    %204 = arith.cmpi slt, %200, %203 : vector<32x64xi32>
    %c0_i32_89 = arith.constant 0 : i32
    %205 = arith.cmpi slt, %198, %c0_i32_89 : i32
    %206 = vector.broadcast %205 : i1 to vector<32x64xi1>
    %207 = vector.broadcast %206 : vector<32x64xi1> to vector<32x64xi1>
    %208 = arith.xori %204, %207 : vector<32x64xi1>
    %209 = arith.andi %208, %202 : vector<32x64xi1>
    %210 = vector.broadcast %198 : i32 to vector<32x64xi32>
    %211 = arith.addi %200, %210 : vector<32x64xi32>
    %212 = arith.select %209, %211, %200 : vector<32x64xi1>, vector<32x64xi32>
    %c15_i32_90 = arith.constant 15 : i32
    %213 = vector.broadcast %c15_i32_90 : i32 to vector<32x64xi32>
    %214 = arith.cmpi eq, %212, %213 : vector<32x64xi32>
    %c31_i32_91 = arith.constant 31 : i32
    %215 = tpu.dynamic_rotate %174 by %c31_i32_91 dim 0 : vector<32x64xf32>, i32 -> vector<32x64xf32>
    %cst_92 = arith.constant 0.000000e+00 : f32
    %216 = vector.broadcast %cst_92 : f32 to vector<32x64xf32>
    %217 = arith.select %214, %216, %215 : vector<32x64xi1>, vector<32x64xf32>
    %218 = arith.truncf %174 : vector<32x64xf32> to vector<32x64xbf16>
    %219 = arith.truncf %196 : vector<32x64xf32> to vector<32x64xbf16>
    %220 = arith.truncf %217 : vector<32x64xf32> to vector<32x64xbf16>
    %c960 = arith.constant 960 : index
    %c0_93 = arith.constant 0 : index
    %221 = vector.load %arg2[%c960, %c0_93] : memref<2304x128xbf16, #tpu.memory_space<vmem>>, vector<64x64xbf16>
    %c1024 = arith.constant 1024 : index
    %c0_94 = arith.constant 0 : index
    %222 = vector.load %arg2[%c1024, %c0_94] : memref<2304x128xbf16, #tpu.memory_space<vmem>>, vector<64x64xbf16>
    %c1088 = arith.constant 1088 : index
    %c0_95 = arith.constant 0 : index
    %223 = vector.load %arg2[%c1088, %c0_95] : memref<2304x128xbf16, #tpu.memory_space<vmem>>, vector<64x64xbf16>
    %cst_96 = arith.constant dense<0.000000e+00> : vector<32x64xf32>
    %224 = tpu.matmul %218, %222, %cst_96 {dimension_numbers = #tpu.dot_dimension_numbers<[1], [0], [0], [1], [0, 0, 1, 1], [], []>} : vector<32x64xbf16>, vector<64x64xbf16>, vector<32x64xf32> -> vector<32x64xf32>
    %cst_97 = arith.constant dense<0.000000e+00> : vector<32x64xf32>
    %225 = tpu.matmul %219, %221, %cst_97 {dimension_numbers = #tpu.dot_dimension_numbers<[1], [0], [0], [1], [0, 0, 1, 1], [], []>} : vector<32x64xbf16>, vector<64x64xbf16>, vector<32x64xf32> -> vector<32x64xf32>
    %226 = arith.addf %224, %225 : vector<32x64xf32>
    %cst_98 = arith.constant dense<0.000000e+00> : vector<32x64xf32>
    %227 = tpu.matmul %220, %223, %cst_98 {dimension_numbers = #tpu.dot_dimension_numbers<[1], [0], [0], [1], [0, 0, 1, 1], [], []>} : vector<32x64xbf16>, vector<64x64xbf16>, vector<32x64xf32> -> vector<32x64xf32>
    %228 = arith.addf %226, %227 : vector<32x64xf32>
    %c168 = arith.constant 168 : index
    %c0_99 = arith.constant 0 : index
    %229 = vector.load %arg3[%c168, %c0_99] : memref<568x256xf32, #tpu.memory_space<vmem>>, vector<1x64xf32>
    %230 = vector.broadcast %229 : vector<1x64xf32> to vector<32x64xf32>
    %231 = arith.addf %228, %230 : vector<32x64xf32>
    %232 = arith.addf %115, %231 : vector<32x64xf32>
    %c176 = arith.constant 176 : index
    %c0_100 = arith.constant 0 : index
    %233 = vector.load %arg3[%c176, %c0_100] : memref<568x256xf32, #tpu.memory_space<vmem>>, vector<16x32xf32>
    %cst_101 = arith.constant dense<0.000000e+00> : vector<16x64xf32>
    %234 = tpu.matmul %233, %232, %cst_101 {dimension_numbers = #tpu.dot_dimension_numbers<[1], [0], [0], [1], [0, 0, 1, 1], [], []>} : vector<16x32xf32>, vector<32x64xf32>, vector<16x64xf32> -> vector<16x64xf32>
    %235 = arith.truncf %234 : vector<16x64xf32> to vector<16x64xbf16>
    %c1152 = arith.constant 1152 : index
    %c0_102 = arith.constant 0 : index
    %236 = vector.load %arg2[%c1152, %c0_102] : memref<2304x128xbf16, #tpu.memory_space<vmem>>, vector<64x32xbf16>
    %cst_103 = arith.constant dense<0.000000e+00> : vector<16x32xf32>
    %237 = tpu.matmul %235, %236, %cst_103 {dimension_numbers = #tpu.dot_dimension_numbers<[1], [0], [0], [1], [0, 0, 1, 1], [], []>} : vector<16x64xbf16>, vector<64x32xbf16>, vector<16x32xf32> -> vector<16x32xf32>
    %c192 = arith.constant 192 : index
    %c0_104 = arith.constant 0 : index
    %238 = vector.load %arg3[%c192, %c0_104] : memref<568x256xf32, #tpu.memory_space<vmem>>, vector<1x32xf32>
    %239 = vector.broadcast %238 : vector<1x32xf32> to vector<16x32xf32>
    %240 = arith.addf %237, %239 : vector<16x32xf32>
    %241 = tpu.iota {dimensions = array<i32: 0>} : vector<32x64xi32>
    %c16_i32_105 = arith.constant 16 : i32
    %c0_i32_106 = arith.constant 0 : i32
    %242 = arith.cmpi eq, %c16_i32_105, %c0_i32_106 : i32
    %c1_i32_107 = arith.constant 1 : i32
    %243 = arith.select %242, %c1_i32_107, %c16_i32_105 : i32
    %244 = vector.broadcast %243 : i32 to vector<32x64xi32>
    %245 = arith.remsi %241, %244 : vector<32x64xi32>
    %c0_i32_108 = arith.constant 0 : i32
    %246 = vector.broadcast %c0_i32_108 : i32 to vector<32x64xi32>
    %247 = arith.cmpi ne, %245, %246 : vector<32x64xi32>
    %c0_i32_109 = arith.constant 0 : i32
    %248 = vector.broadcast %c0_i32_109 : i32 to vector<32x64xi32>
    %249 = arith.cmpi slt, %245, %248 : vector<32x64xi32>
    %c0_i32_110 = arith.constant 0 : i32
    %250 = arith.cmpi slt, %243, %c0_i32_110 : i32
    %251 = vector.broadcast %250 : i1 to vector<32x64xi1>
    %252 = vector.broadcast %251 : vector<32x64xi1> to vector<32x64xi1>
    %253 = arith.xori %249, %252 : vector<32x64xi1>
    %254 = arith.andi %253, %247 : vector<32x64xi1>
    %255 = vector.broadcast %243 : i32 to vector<32x64xi32>
    %256 = arith.addi %245, %255 : vector<32x64xi32>
    %257 = arith.select %254, %256, %245 : vector<32x64xi1>, vector<32x64xi32>
    %c0_i32_111 = arith.constant 0 : i32
    %258 = vector.broadcast %c0_i32_111 : i32 to vector<32x64xi32>
    %259 = arith.cmpi eq, %257, %258 : vector<32x64xi32>
    %c1_i32_112 = arith.constant 1 : i32
    %260 = tpu.dynamic_rotate %232 by %c1_i32_112 dim 0 : vector<32x64xf32>, i32 -> vector<32x64xf32>
    %cst_113 = arith.constant 0.000000e+00 : f32
    %261 = vector.broadcast %cst_113 : f32 to vector<32x64xf32>
    %262 = arith.select %259, %261, %260 : vector<32x64xi1>, vector<32x64xf32>
    %c16_i32_114 = arith.constant 16 : i32
    %c0_i32_115 = arith.constant 0 : i32
    %263 = arith.cmpi eq, %c16_i32_114, %c0_i32_115 : i32
    %c1_i32_116 = arith.constant 1 : i32
    %264 = arith.select %263, %c1_i32_116, %c16_i32_114 : i32
    %265 = vector.broadcast %264 : i32 to vector<32x64xi32>
    %266 = arith.remsi %241, %265 : vector<32x64xi32>
    %c0_i32_117 = arith.constant 0 : i32
    %267 = vector.broadcast %c0_i32_117 : i32 to vector<32x64xi32>
    %268 = arith.cmpi ne, %266, %267 : vector<32x64xi32>
    %c0_i32_118 = arith.constant 0 : i32
    %269 = vector.broadcast %c0_i32_118 : i32 to vector<32x64xi32>
    %270 = arith.cmpi slt, %266, %269 : vector<32x64xi32>
    %c0_i32_119 = arith.constant 0 : i32
    %271 = arith.cmpi slt, %264, %c0_i32_119 : i32
    %272 = vector.broadcast %271 : i1 to vector<32x64xi1>
    %273 = vector.broadcast %272 : vector<32x64xi1> to vector<32x64xi1>
    %274 = arith.xori %270, %273 : vector<32x64xi1>
    %275 = arith.andi %274, %268 : vector<32x64xi1>
    %276 = vector.broadcast %264 : i32 to vector<32x64xi32>
    %277 = arith.addi %266, %276 : vector<32x64xi32>
    %278 = arith.select %275, %277, %266 : vector<32x64xi1>, vector<32x64xi32>
    %c15_i32_120 = arith.constant 15 : i32
    %279 = vector.broadcast %c15_i32_120 : i32 to vector<32x64xi32>
    %280 = arith.cmpi eq, %278, %279 : vector<32x64xi32>
    %c31_i32_121 = arith.constant 31 : i32
    %281 = tpu.dynamic_rotate %232 by %c31_i32_121 dim 0 : vector<32x64xf32>, i32 -> vector<32x64xf32>
    %cst_122 = arith.constant 0.000000e+00 : f32
    %282 = vector.broadcast %cst_122 : f32 to vector<32x64xf32>
    %283 = arith.select %280, %282, %281 : vector<32x64xi1>, vector<32x64xf32>
    %284 = arith.truncf %232 : vector<32x64xf32> to vector<32x64xbf16>
    %285 = arith.truncf %262 : vector<32x64xf32> to vector<32x64xbf16>
    %286 = arith.truncf %283 : vector<32x64xf32> to vector<32x64xbf16>
    %c1216 = arith.constant 1216 : index
    %c0_123 = arith.constant 0 : index
    %287 = vector.load %arg2[%c1216, %c0_123] : memref<2304x128xbf16, #tpu.memory_space<vmem>>, vector<64x64xbf16>
    %c1280 = arith.constant 1280 : index
    %c0_124 = arith.constant 0 : index
    %288 = vector.load %arg2[%c1280, %c0_124] : memref<2304x128xbf16, #tpu.memory_space<vmem>>, vector<64x64xbf16>
    %c1344 = arith.constant 1344 : index
    %c0_125 = arith.constant 0 : index
    %289 = vector.load %arg2[%c1344, %c0_125] : memref<2304x128xbf16, #tpu.memory_space<vmem>>, vector<64x64xbf16>
    %cst_126 = arith.constant dense<0.000000e+00> : vector<32x64xf32>
    %290 = tpu.matmul %284, %288, %cst_126 {dimension_numbers = #tpu.dot_dimension_numbers<[1], [0], [0], [1], [0, 0, 1, 1], [], []>} : vector<32x64xbf16>, vector<64x64xbf16>, vector<32x64xf32> -> vector<32x64xf32>
    %cst_127 = arith.constant dense<0.000000e+00> : vector<32x64xf32>
    %291 = tpu.matmul %285, %287, %cst_127 {dimension_numbers = #tpu.dot_dimension_numbers<[1], [0], [0], [1], [0, 0, 1, 1], [], []>} : vector<32x64xbf16>, vector<64x64xbf16>, vector<32x64xf32> -> vector<32x64xf32>
    %292 = arith.addf %290, %291 : vector<32x64xf32>
    %cst_128 = arith.constant dense<0.000000e+00> : vector<32x64xf32>
    %293 = tpu.matmul %286, %289, %cst_128 {dimension_numbers = #tpu.dot_dimension_numbers<[1], [0], [0], [1], [0, 0, 1, 1], [], []>} : vector<32x64xbf16>, vector<64x64xbf16>, vector<32x64xf32> -> vector<32x64xf32>
    %294 = arith.addf %292, %293 : vector<32x64xf32>
    %c200 = arith.constant 200 : index
    %c0_129 = arith.constant 0 : index
    %295 = vector.load %arg3[%c200, %c0_129] : memref<568x256xf32, #tpu.memory_space<vmem>>, vector<1x64xf32>
    %296 = vector.broadcast %295 : vector<1x64xf32> to vector<32x64xf32>
    %297 = arith.addf %294, %296 : vector<32x64xf32>
    %cst_130 = arith.constant 0.000000e+00 : f32
    %298 = vector.broadcast %cst_130 : f32 to vector<32x64xf32>
    %299 = arith.maximumf %297, %298 : vector<32x64xf32>
    %300 = tpu.iota {dimensions = array<i32: 0>} : vector<32x64xi32>
    %c16_i32_131 = arith.constant 16 : i32
    %c0_i32_132 = arith.constant 0 : i32
    %301 = arith.cmpi eq, %c16_i32_131, %c0_i32_132 : i32
    %c1_i32_133 = arith.constant 1 : i32
    %302 = arith.select %301, %c1_i32_133, %c16_i32_131 : i32
    %303 = vector.broadcast %302 : i32 to vector<32x64xi32>
    %304 = arith.remsi %300, %303 : vector<32x64xi32>
    %c0_i32_134 = arith.constant 0 : i32
    %305 = vector.broadcast %c0_i32_134 : i32 to vector<32x64xi32>
    %306 = arith.cmpi ne, %304, %305 : vector<32x64xi32>
    %c0_i32_135 = arith.constant 0 : i32
    %307 = vector.broadcast %c0_i32_135 : i32 to vector<32x64xi32>
    %308 = arith.cmpi slt, %304, %307 : vector<32x64xi32>
    %c0_i32_136 = arith.constant 0 : i32
    %309 = arith.cmpi slt, %302, %c0_i32_136 : i32
    %310 = vector.broadcast %309 : i1 to vector<32x64xi1>
    %311 = vector.broadcast %310 : vector<32x64xi1> to vector<32x64xi1>
    %312 = arith.xori %308, %311 : vector<32x64xi1>
    %313 = arith.andi %312, %306 : vector<32x64xi1>
    %314 = vector.broadcast %302 : i32 to vector<32x64xi32>
    %315 = arith.addi %304, %314 : vector<32x64xi32>
    %316 = arith.select %313, %315, %304 : vector<32x64xi1>, vector<32x64xi32>
    %c0_i32_137 = arith.constant 0 : i32
    %317 = vector.broadcast %c0_i32_137 : i32 to vector<32x64xi32>
    %318 = arith.cmpi eq, %316, %317 : vector<32x64xi32>
    %c1_i32_138 = arith.constant 1 : i32
    %319 = tpu.dynamic_rotate %299 by %c1_i32_138 dim 0 : vector<32x64xf32>, i32 -> vector<32x64xf32>
    %cst_139 = arith.constant 0.000000e+00 : f32
    %320 = vector.broadcast %cst_139 : f32 to vector<32x64xf32>
    %321 = arith.select %318, %320, %319 : vector<32x64xi1>, vector<32x64xf32>
    %c16_i32_140 = arith.constant 16 : i32
    %c0_i32_141 = arith.constant 0 : i32
    %322 = arith.cmpi eq, %c16_i32_140, %c0_i32_141 : i32
    %c1_i32_142 = arith.constant 1 : i32
    %323 = arith.select %322, %c1_i32_142, %c16_i32_140 : i32
    %324 = vector.broadcast %323 : i32 to vector<32x64xi32>
    %325 = arith.remsi %300, %324 : vector<32x64xi32>
    %c0_i32_143 = arith.constant 0 : i32
    %326 = vector.broadcast %c0_i32_143 : i32 to vector<32x64xi32>
    %327 = arith.cmpi ne, %325, %326 : vector<32x64xi32>
    %c0_i32_144 = arith.constant 0 : i32
    %328 = vector.broadcast %c0_i32_144 : i32 to vector<32x64xi32>
    %329 = arith.cmpi slt, %325, %328 : vector<32x64xi32>
    %c0_i32_145 = arith.constant 0 : i32
    %330 = arith.cmpi slt, %323, %c0_i32_145 : i32
    %331 = vector.broadcast %330 : i1 to vector<32x64xi1>
    %332 = vector.broadcast %331 : vector<32x64xi1> to vector<32x64xi1>
    %333 = arith.xori %329, %332 : vector<32x64xi1>
    %334 = arith.andi %333, %327 : vector<32x64xi1>
    %335 = vector.broadcast %323 : i32 to vector<32x64xi32>
    %336 = arith.addi %325, %335 : vector<32x64xi32>
    %337 = arith.select %334, %336, %325 : vector<32x64xi1>, vector<32x64xi32>
    %c15_i32_146 = arith.constant 15 : i32
    %338 = vector.broadcast %c15_i32_146 : i32 to vector<32x64xi32>
    %339 = arith.cmpi eq, %337, %338 : vector<32x64xi32>
    %c31_i32_147 = arith.constant 31 : i32
    %340 = tpu.dynamic_rotate %299 by %c31_i32_147 dim 0 : vector<32x64xf32>, i32 -> vector<32x64xf32>
    %cst_148 = arith.constant 0.000000e+00 : f32
    %341 = vector.broadcast %cst_148 : f32 to vector<32x64xf32>
    %342 = arith.select %339, %341, %340 : vector<32x64xi1>, vector<32x64xf32>
    %343 = arith.truncf %299 : vector<32x64xf32> to vector<32x64xbf16>
    %344 = arith.truncf %321 : vector<32x64xf32> to vector<32x64xbf16>
    %345 = arith.truncf %342 : vector<32x64xf32> to vector<32x64xbf16>
    %c1408 = arith.constant 1408 : index
    %c0_149 = arith.constant 0 : index
    %346 = vector.load %arg2[%c1408, %c0_149] : memref<2304x128xbf16, #tpu.memory_space<vmem>>, vector<64x64xbf16>
    %c1472 = arith.constant 1472 : index
    %c0_150 = arith.constant 0 : index
    %347 = vector.load %arg2[%c1472, %c0_150] : memref<2304x128xbf16, #tpu.memory_space<vmem>>, vector<64x64xbf16>
    %c1536 = arith.constant 1536 : index
    %c0_151 = arith.constant 0 : index
    %348 = vector.load %arg2[%c1536, %c0_151] : memref<2304x128xbf16, #tpu.memory_space<vmem>>, vector<64x64xbf16>
    %cst_152 = arith.constant dense<0.000000e+00> : vector<32x64xf32>
    %349 = tpu.matmul %343, %347, %cst_152 {dimension_numbers = #tpu.dot_dimension_numbers<[1], [0], [0], [1], [0, 0, 1, 1], [], []>} : vector<32x64xbf16>, vector<64x64xbf16>, vector<32x64xf32> -> vector<32x64xf32>
    %cst_153 = arith.constant dense<0.000000e+00> : vector<32x64xf32>
    %350 = tpu.matmul %344, %346, %cst_153 {dimension_numbers = #tpu.dot_dimension_numbers<[1], [0], [0], [1], [0, 0, 1, 1], [], []>} : vector<32x64xbf16>, vector<64x64xbf16>, vector<32x64xf32> -> vector<32x64xf32>
    %351 = arith.addf %349, %350 : vector<32x64xf32>
    %cst_154 = arith.constant dense<0.000000e+00> : vector<32x64xf32>
    %352 = tpu.matmul %345, %348, %cst_154 {dimension_numbers = #tpu.dot_dimension_numbers<[1], [0], [0], [1], [0, 0, 1, 1], [], []>} : vector<32x64xbf16>, vector<64x64xbf16>, vector<32x64xf32> -> vector<32x64xf32>
    %353 = arith.addf %351, %352 : vector<32x64xf32>
    %c208 = arith.constant 208 : index
    %c0_155 = arith.constant 0 : index
    %354 = vector.load %arg3[%c208, %c0_155] : memref<568x256xf32, #tpu.memory_space<vmem>>, vector<1x64xf32>
    %355 = vector.broadcast %354 : vector<1x64xf32> to vector<32x64xf32>
    %356 = arith.addf %353, %355 : vector<32x64xf32>
    %c216 = arith.constant 216 : index
    %c0_156 = arith.constant 0 : index
    %357 = vector.load %arg3[%c216, %c0_156] : memref<568x256xf32, #tpu.memory_space<vmem>>, vector<16x32xf32>
    %cst_157 = arith.constant dense<0.000000e+00> : vector<16x64xf32>
    %358 = tpu.matmul %357, %356, %cst_157 {dimension_numbers = #tpu.dot_dimension_numbers<[1], [0], [0], [1], [0, 0, 1, 1], [], []>} : vector<16x32xf32>, vector<32x64xf32>, vector<16x64xf32> -> vector<16x64xf32>
    %c232 = arith.constant 232 : index
    %c0_158 = arith.constant 0 : index
    %359 = vector.load %arg3[%c232, %c0_158] : memref<568x256xf32, #tpu.memory_space<vmem>>, vector<64x32xf32>
    %cst_159 = arith.constant dense<0.000000e+00> : vector<16x32xf32>
    %360 = tpu.matmul %358, %359, %cst_159 {dimension_numbers = #tpu.dot_dimension_numbers<[1], [0], [0], [1], [0, 0, 1, 1], [], []>} : vector<16x64xf32>, vector<64x32xf32>, vector<16x32xf32> -> vector<16x32xf32>
    %361 = arith.addf %240, %360 : vector<16x32xf32>
    %c296 = arith.constant 296 : index
    %c0_160 = arith.constant 0 : index
    %362 = vector.load %arg3[%c296, %c0_160] : memref<568x256xf32, #tpu.memory_space<vmem>>, vector<8x16xf32>
    %cst_161 = arith.constant dense<0.000000e+00> : vector<8x32xf32>
    %363 = tpu.matmul %362, %361, %cst_161 {dimension_numbers = #tpu.dot_dimension_numbers<[1], [0], [0], [1], [0, 0, 1, 1], [], []>} : vector<8x16xf32>, vector<16x32xf32>, vector<8x32xf32> -> vector<8x32xf32>
    %364 = arith.truncf %363 : vector<8x32xf32> to vector<8x32xbf16>
    %c1600 = arith.constant 1600 : index
    %c0_162 = arith.constant 0 : index
    %365 = vector.load %arg2[%c1600, %c0_162] : memref<2304x128xbf16, #tpu.memory_space<vmem>>, vector<32x64xbf16>
    %cst_163 = arith.constant dense<0.000000e+00> : vector<8x64xf32>
    %366 = tpu.matmul %364, %365, %cst_163 {dimension_numbers = #tpu.dot_dimension_numbers<[1], [0], [0], [1], [0, 0, 1, 1], [], []>} : vector<8x32xbf16>, vector<32x64xbf16>, vector<8x64xf32> -> vector<8x64xf32>
    %c304 = arith.constant 304 : index
    %c0_164 = arith.constant 0 : index
    %367 = vector.load %arg3[%c304, %c0_164] : memref<568x256xf32, #tpu.memory_space<vmem>>, vector<1x64xf32>
    %368 = vector.broadcast %367 : vector<1x64xf32> to vector<8x64xf32>
    %369 = arith.addf %366, %368 : vector<8x64xf32>
    %370 = tpu.iota {dimensions = array<i32: 0>} : vector<16x32xi32>
    %c8_i32 = arith.constant 8 : i32
    %c0_i32_165 = arith.constant 0 : i32
    %371 = arith.cmpi eq, %c8_i32, %c0_i32_165 : i32
    %c1_i32_166 = arith.constant 1 : i32
    %372 = arith.select %371, %c1_i32_166, %c8_i32 : i32
    %373 = vector.broadcast %372 : i32 to vector<16x32xi32>
    %374 = arith.remsi %370, %373 : vector<16x32xi32>
    %c0_i32_167 = arith.constant 0 : i32
    %375 = vector.broadcast %c0_i32_167 : i32 to vector<16x32xi32>
    %376 = arith.cmpi ne, %374, %375 : vector<16x32xi32>
    %c0_i32_168 = arith.constant 0 : i32
    %377 = vector.broadcast %c0_i32_168 : i32 to vector<16x32xi32>
    %378 = arith.cmpi slt, %374, %377 : vector<16x32xi32>
    %c0_i32_169 = arith.constant 0 : i32
    %379 = arith.cmpi slt, %372, %c0_i32_169 : i32
    %380 = vector.broadcast %379 : i1 to vector<16x32xi1>
    %381 = vector.broadcast %380 : vector<16x32xi1> to vector<16x32xi1>
    %382 = arith.xori %378, %381 : vector<16x32xi1>
    %383 = arith.andi %382, %376 : vector<16x32xi1>
    %384 = vector.broadcast %372 : i32 to vector<16x32xi32>
    %385 = arith.addi %374, %384 : vector<16x32xi32>
    %386 = arith.select %383, %385, %374 : vector<16x32xi1>, vector<16x32xi32>
    %c0_i32_170 = arith.constant 0 : i32
    %387 = vector.broadcast %c0_i32_170 : i32 to vector<16x32xi32>
    %388 = arith.cmpi eq, %386, %387 : vector<16x32xi32>
    %c1_i32_171 = arith.constant 1 : i32
    %389 = tpu.dynamic_rotate %361 by %c1_i32_171 dim 0 : vector<16x32xf32>, i32 -> vector<16x32xf32>
    %cst_172 = arith.constant 0.000000e+00 : f32
    %390 = vector.broadcast %cst_172 : f32 to vector<16x32xf32>
    %391 = arith.select %388, %390, %389 : vector<16x32xi1>, vector<16x32xf32>
    %c8_i32_173 = arith.constant 8 : i32
    %c0_i32_174 = arith.constant 0 : i32
    %392 = arith.cmpi eq, %c8_i32_173, %c0_i32_174 : i32
    %c1_i32_175 = arith.constant 1 : i32
    %393 = arith.select %392, %c1_i32_175, %c8_i32_173 : i32
    %394 = vector.broadcast %393 : i32 to vector<16x32xi32>
    %395 = arith.remsi %370, %394 : vector<16x32xi32>
    %c0_i32_176 = arith.constant 0 : i32
    %396 = vector.broadcast %c0_i32_176 : i32 to vector<16x32xi32>
    %397 = arith.cmpi ne, %395, %396 : vector<16x32xi32>
    %c0_i32_177 = arith.constant 0 : i32
    %398 = vector.broadcast %c0_i32_177 : i32 to vector<16x32xi32>
    %399 = arith.cmpi slt, %395, %398 : vector<16x32xi32>
    %c0_i32_178 = arith.constant 0 : i32
    %400 = arith.cmpi slt, %393, %c0_i32_178 : i32
    %401 = vector.broadcast %400 : i1 to vector<16x32xi1>
    %402 = vector.broadcast %401 : vector<16x32xi1> to vector<16x32xi1>
    %403 = arith.xori %399, %402 : vector<16x32xi1>
    %404 = arith.andi %403, %397 : vector<16x32xi1>
    %405 = vector.broadcast %393 : i32 to vector<16x32xi32>
    %406 = arith.addi %395, %405 : vector<16x32xi32>
    %407 = arith.select %404, %406, %395 : vector<16x32xi1>, vector<16x32xi32>
    %c7_i32 = arith.constant 7 : i32
    %408 = vector.broadcast %c7_i32 : i32 to vector<16x32xi32>
    %409 = arith.cmpi eq, %407, %408 : vector<16x32xi32>
    %c15_i32_179 = arith.constant 15 : i32
    %410 = tpu.dynamic_rotate %361 by %c15_i32_179 dim 0 : vector<16x32xf32>, i32 -> vector<16x32xf32>
    %cst_180 = arith.constant 0.000000e+00 : f32
    %411 = vector.broadcast %cst_180 : f32 to vector<16x32xf32>
    %412 = arith.select %409, %411, %410 : vector<16x32xi1>, vector<16x32xf32>
    %413 = arith.truncf %361 : vector<16x32xf32> to vector<16x32xbf16>
    %414 = arith.truncf %391 : vector<16x32xf32> to vector<16x32xbf16>
    %415 = arith.truncf %412 : vector<16x32xf32> to vector<16x32xbf16>
    %c1632 = arith.constant 1632 : index
    %c0_181 = arith.constant 0 : index
    %416 = vector.load %arg2[%c1632, %c0_181] : memref<2304x128xbf16, #tpu.memory_space<vmem>>, vector<32x128xbf16>
    %c1664 = arith.constant 1664 : index
    %c0_182 = arith.constant 0 : index
    %417 = vector.load %arg2[%c1664, %c0_182] : memref<2304x128xbf16, #tpu.memory_space<vmem>>, vector<32x128xbf16>
    %c1696 = arith.constant 1696 : index
    %c0_183 = arith.constant 0 : index
    %418 = vector.load %arg2[%c1696, %c0_183] : memref<2304x128xbf16, #tpu.memory_space<vmem>>, vector<32x128xbf16>
    %cst_184 = arith.constant dense<0.000000e+00> : vector<16x128xf32>
    %419 = tpu.matmul %413, %417, %cst_184 {dimension_numbers = #tpu.dot_dimension_numbers<[1], [0], [0], [1], [0, 0, 1, 1], [], []>} : vector<16x32xbf16>, vector<32x128xbf16>, vector<16x128xf32> -> vector<16x128xf32>
    %cst_185 = arith.constant dense<0.000000e+00> : vector<16x128xf32>
    %420 = tpu.matmul %414, %416, %cst_185 {dimension_numbers = #tpu.dot_dimension_numbers<[1], [0], [0], [1], [0, 0, 1, 1], [], []>} : vector<16x32xbf16>, vector<32x128xbf16>, vector<16x128xf32> -> vector<16x128xf32>
    %421 = arith.addf %419, %420 : vector<16x128xf32>
    %cst_186 = arith.constant dense<0.000000e+00> : vector<16x128xf32>
    %422 = tpu.matmul %415, %418, %cst_186 {dimension_numbers = #tpu.dot_dimension_numbers<[1], [0], [0], [1], [0, 0, 1, 1], [], []>} : vector<16x32xbf16>, vector<32x128xbf16>, vector<16x128xf32> -> vector<16x128xf32>
    %423 = arith.addf %421, %422 : vector<16x128xf32>
    %c312 = arith.constant 312 : index
    %c0_187 = arith.constant 0 : index
    %424 = vector.load %arg3[%c312, %c0_187] : memref<568x256xf32, #tpu.memory_space<vmem>>, vector<1x128xf32>
    %425 = vector.broadcast %424 : vector<1x128xf32> to vector<16x128xf32>
    %426 = arith.addf %423, %425 : vector<16x128xf32>
    %cst_188 = arith.constant 0.000000e+00 : f32
    %427 = vector.broadcast %cst_188 : f32 to vector<16x128xf32>
    %428 = arith.maximumf %426, %427 : vector<16x128xf32>
    %429 = tpu.iota {dimensions = array<i32: 0>} : vector<16x128xi32>
    %c8_i32_189 = arith.constant 8 : i32
    %c0_i32_190 = arith.constant 0 : i32
    %430 = arith.cmpi eq, %c8_i32_189, %c0_i32_190 : i32
    %c1_i32_191 = arith.constant 1 : i32
    %431 = arith.select %430, %c1_i32_191, %c8_i32_189 : i32
    %432 = vector.broadcast %431 : i32 to vector<16x128xi32>
    %433 = arith.remsi %429, %432 : vector<16x128xi32>
    %c0_i32_192 = arith.constant 0 : i32
    %434 = vector.broadcast %c0_i32_192 : i32 to vector<16x128xi32>
    %435 = arith.cmpi ne, %433, %434 : vector<16x128xi32>
    %c0_i32_193 = arith.constant 0 : i32
    %436 = vector.broadcast %c0_i32_193 : i32 to vector<16x128xi32>
    %437 = arith.cmpi slt, %433, %436 : vector<16x128xi32>
    %c0_i32_194 = arith.constant 0 : i32
    %438 = arith.cmpi slt, %431, %c0_i32_194 : i32
    %439 = vector.broadcast %438 : i1 to vector<16x128xi1>
    %440 = vector.broadcast %439 : vector<16x128xi1> to vector<16x128xi1>
    %441 = arith.xori %437, %440 : vector<16x128xi1>
    %442 = arith.andi %441, %435 : vector<16x128xi1>
    %443 = vector.broadcast %431 : i32 to vector<16x128xi32>
    %444 = arith.addi %433, %443 : vector<16x128xi32>
    %445 = arith.select %442, %444, %433 : vector<16x128xi1>, vector<16x128xi32>
    %c0_i32_195 = arith.constant 0 : i32
    %446 = vector.broadcast %c0_i32_195 : i32 to vector<16x128xi32>
    %447 = arith.cmpi eq, %445, %446 : vector<16x128xi32>
    %c1_i32_196 = arith.constant 1 : i32
    %448 = tpu.dynamic_rotate %428 by %c1_i32_196 dim 0 : vector<16x128xf32>, i32 -> vector<16x128xf32>
    %cst_197 = arith.constant 0.000000e+00 : f32
    %449 = vector.broadcast %cst_197 : f32 to vector<16x128xf32>
    %450 = arith.select %447, %449, %448 : vector<16x128xi1>, vector<16x128xf32>
    %c8_i32_198 = arith.constant 8 : i32
    %c0_i32_199 = arith.constant 0 : i32
    %451 = arith.cmpi eq, %c8_i32_198, %c0_i32_199 : i32
    %c1_i32_200 = arith.constant 1 : i32
    %452 = arith.select %451, %c1_i32_200, %c8_i32_198 : i32
    %453 = vector.broadcast %452 : i32 to vector<16x128xi32>
    %454 = arith.remsi %429, %453 : vector<16x128xi32>
    %c0_i32_201 = arith.constant 0 : i32
    %455 = vector.broadcast %c0_i32_201 : i32 to vector<16x128xi32>
    %456 = arith.cmpi ne, %454, %455 : vector<16x128xi32>
    %c0_i32_202 = arith.constant 0 : i32
    %457 = vector.broadcast %c0_i32_202 : i32 to vector<16x128xi32>
    %458 = arith.cmpi slt, %454, %457 : vector<16x128xi32>
    %c0_i32_203 = arith.constant 0 : i32
    %459 = arith.cmpi slt, %452, %c0_i32_203 : i32
    %460 = vector.broadcast %459 : i1 to vector<16x128xi1>
    %461 = vector.broadcast %460 : vector<16x128xi1> to vector<16x128xi1>
    %462 = arith.xori %458, %461 : vector<16x128xi1>
    %463 = arith.andi %462, %456 : vector<16x128xi1>
    %464 = vector.broadcast %452 : i32 to vector<16x128xi32>
    %465 = arith.addi %454, %464 : vector<16x128xi32>
    %466 = arith.select %463, %465, %454 : vector<16x128xi1>, vector<16x128xi32>
    %c7_i32_204 = arith.constant 7 : i32
    %467 = vector.broadcast %c7_i32_204 : i32 to vector<16x128xi32>
    %468 = arith.cmpi eq, %466, %467 : vector<16x128xi32>
    %c15_i32_205 = arith.constant 15 : i32
    %469 = tpu.dynamic_rotate %428 by %c15_i32_205 dim 0 : vector<16x128xf32>, i32 -> vector<16x128xf32>
    %cst_206 = arith.constant 0.000000e+00 : f32
    %470 = vector.broadcast %cst_206 : f32 to vector<16x128xf32>
    %471 = arith.select %468, %470, %469 : vector<16x128xi1>, vector<16x128xf32>
    %472 = arith.truncf %428 : vector<16x128xf32> to vector<16x128xbf16>
    %473 = arith.truncf %450 : vector<16x128xf32> to vector<16x128xbf16>
    %474 = arith.truncf %471 : vector<16x128xf32> to vector<16x128xbf16>
    %c1728 = arith.constant 1728 : index
    %c0_207 = arith.constant 0 : index
    %475 = vector.load %arg2[%c1728, %c0_207] : memref<2304x128xbf16, #tpu.memory_space<vmem>>, vector<128x128xbf16>
    %c1856 = arith.constant 1856 : index
    %c0_208 = arith.constant 0 : index
    %476 = vector.load %arg2[%c1856, %c0_208] : memref<2304x128xbf16, #tpu.memory_space<vmem>>, vector<128x128xbf16>
    %c1984 = arith.constant 1984 : index
    %c0_209 = arith.constant 0 : index
    %477 = vector.load %arg2[%c1984, %c0_209] : memref<2304x128xbf16, #tpu.memory_space<vmem>>, vector<128x128xbf16>
    %cst_210 = arith.constant dense<0.000000e+00> : vector<16x128xf32>
    %478 = tpu.matmul %472, %476, %cst_210 {dimension_numbers = #tpu.dot_dimension_numbers<[1], [0], [0], [1], [0, 0, 1, 1], [], []>} : vector<16x128xbf16>, vector<128x128xbf16>, vector<16x128xf32> -> vector<16x128xf32>
    %cst_211 = arith.constant dense<0.000000e+00> : vector<16x128xf32>
    %479 = tpu.matmul %473, %475, %cst_211 {dimension_numbers = #tpu.dot_dimension_numbers<[1], [0], [0], [1], [0, 0, 1, 1], [], []>} : vector<16x128xbf16>, vector<128x128xbf16>, vector<16x128xf32> -> vector<16x128xf32>
    %480 = arith.addf %478, %479 : vector<16x128xf32>
    %cst_212 = arith.constant dense<0.000000e+00> : vector<16x128xf32>
    %481 = tpu.matmul %474, %477, %cst_212 {dimension_numbers = #tpu.dot_dimension_numbers<[1], [0], [0], [1], [0, 0, 1, 1], [], []>} : vector<16x128xbf16>, vector<128x128xbf16>, vector<16x128xf32> -> vector<16x128xf32>
    %482 = arith.addf %480, %481 : vector<16x128xf32>
    %c320 = arith.constant 320 : index
    %c0_213 = arith.constant 0 : index
    %483 = vector.load %arg3[%c320, %c0_213] : memref<568x256xf32, #tpu.memory_space<vmem>>, vector<1x128xf32>
    %484 = vector.broadcast %483 : vector<1x128xf32> to vector<16x128xf32>
    %485 = arith.addf %482, %484 : vector<16x128xf32>
    %c328 = arith.constant 328 : index
    %c0_214 = arith.constant 0 : index
    %486 = vector.load %arg3[%c328, %c0_214] : memref<568x256xf32, #tpu.memory_space<vmem>>, vector<8x16xf32>
    %cst_215 = arith.constant dense<0.000000e+00> : vector<8x128xf32>
    %487 = tpu.matmul %486, %485, %cst_215 {dimension_numbers = #tpu.dot_dimension_numbers<[1], [0], [0], [1], [0, 0, 1, 1], [], []>} : vector<8x16xf32>, vector<16x128xf32>, vector<8x128xf32> -> vector<8x128xf32>
    %c336 = arith.constant 336 : index
    %c0_216 = arith.constant 0 : index
    %488 = vector.load %arg3[%c336, %c0_216] : memref<568x256xf32, #tpu.memory_space<vmem>>, vector<128x64xf32>
    %cst_217 = arith.constant dense<0.000000e+00> : vector<8x64xf32>
    %489 = tpu.matmul %487, %488, %cst_217 {dimension_numbers = #tpu.dot_dimension_numbers<[1], [0], [0], [1], [0, 0, 1, 1], [], []>} : vector<8x128xf32>, vector<128x64xf32>, vector<8x64xf32> -> vector<8x64xf32>
    %490 = arith.addf %369, %489 : vector<8x64xf32>
    %491 = tpu.iota {dimensions = array<i32: 0>} : vector<8x64xi32>
    %c4_i32 = arith.constant 4 : i32
    %c0_i32_218 = arith.constant 0 : i32
    %492 = arith.cmpi eq, %c4_i32, %c0_i32_218 : i32
    %c1_i32_219 = arith.constant 1 : i32
    %493 = arith.select %492, %c1_i32_219, %c4_i32 : i32
    %494 = vector.broadcast %493 : i32 to vector<8x64xi32>
    %495 = arith.remsi %491, %494 : vector<8x64xi32>
    %c0_i32_220 = arith.constant 0 : i32
    %496 = vector.broadcast %c0_i32_220 : i32 to vector<8x64xi32>
    %497 = arith.cmpi ne, %495, %496 : vector<8x64xi32>
    %c0_i32_221 = arith.constant 0 : i32
    %498 = vector.broadcast %c0_i32_221 : i32 to vector<8x64xi32>
    %499 = arith.cmpi slt, %495, %498 : vector<8x64xi32>
    %c0_i32_222 = arith.constant 0 : i32
    %500 = arith.cmpi slt, %493, %c0_i32_222 : i32
    %501 = vector.broadcast %500 : i1 to vector<8x64xi1>
    %502 = vector.broadcast %501 : vector<8x64xi1> to vector<8x64xi1>
    %503 = arith.xori %499, %502 : vector<8x64xi1>
    %504 = arith.andi %503, %497 : vector<8x64xi1>
    %505 = vector.broadcast %493 : i32 to vector<8x64xi32>
    %506 = arith.addi %495, %505 : vector<8x64xi32>
    %507 = arith.select %504, %506, %495 : vector<8x64xi1>, vector<8x64xi32>
    %c0_i32_223 = arith.constant 0 : i32
    %508 = vector.broadcast %c0_i32_223 : i32 to vector<8x64xi32>
    %509 = arith.cmpi eq, %507, %508 : vector<8x64xi32>
    %c1_i32_224 = arith.constant 1 : i32
    %510 = tpu.dynamic_rotate %490 by %c1_i32_224 dim 0 : vector<8x64xf32>, i32 -> vector<8x64xf32>
    %cst_225 = arith.constant 0.000000e+00 : f32
    %511 = vector.broadcast %cst_225 : f32 to vector<8x64xf32>
    %512 = arith.select %509, %511, %510 : vector<8x64xi1>, vector<8x64xf32>
    %c4_i32_226 = arith.constant 4 : i32
    %c0_i32_227 = arith.constant 0 : i32
    %513 = arith.cmpi eq, %c4_i32_226, %c0_i32_227 : i32
    %c1_i32_228 = arith.constant 1 : i32
    %514 = arith.select %513, %c1_i32_228, %c4_i32_226 : i32
    %515 = vector.broadcast %514 : i32 to vector<8x64xi32>
    %516 = arith.remsi %491, %515 : vector<8x64xi32>
    %c0_i32_229 = arith.constant 0 : i32
    %517 = vector.broadcast %c0_i32_229 : i32 to vector<8x64xi32>
    %518 = arith.cmpi ne, %516, %517 : vector<8x64xi32>
    %c0_i32_230 = arith.constant 0 : i32
    %519 = vector.broadcast %c0_i32_230 : i32 to vector<8x64xi32>
    %520 = arith.cmpi slt, %516, %519 : vector<8x64xi32>
    %c0_i32_231 = arith.constant 0 : i32
    %521 = arith.cmpi slt, %514, %c0_i32_231 : i32
    %522 = vector.broadcast %521 : i1 to vector<8x64xi1>
    %523 = vector.broadcast %522 : vector<8x64xi1> to vector<8x64xi1>
    %524 = arith.xori %520, %523 : vector<8x64xi1>
    %525 = arith.andi %524, %518 : vector<8x64xi1>
    %526 = vector.broadcast %514 : i32 to vector<8x64xi32>
    %527 = arith.addi %516, %526 : vector<8x64xi32>
    %528 = arith.select %525, %527, %516 : vector<8x64xi1>, vector<8x64xi32>
    %c3_i32 = arith.constant 3 : i32
    %529 = vector.broadcast %c3_i32 : i32 to vector<8x64xi32>
    %530 = arith.cmpi eq, %528, %529 : vector<8x64xi32>
    %c7_i32_232 = arith.constant 7 : i32
    %531 = tpu.dynamic_rotate %490 by %c7_i32_232 dim 0 : vector<8x64xf32>, i32 -> vector<8x64xf32>
    %cst_233 = arith.constant 0.000000e+00 : f32
    %532 = vector.broadcast %cst_233 : f32 to vector<8x64xf32>
    %533 = arith.select %530, %532, %531 : vector<8x64xi1>, vector<8x64xf32>
    %534 = arith.truncf %490 : vector<8x64xf32> to vector<8x64xbf16>
    %535 = arith.truncf %512 : vector<8x64xf32> to vector<8x64xbf16>
    %536 = arith.truncf %533 : vector<8x64xf32> to vector<8x64xbf16>
    %c2112 = arith.constant 2112 : index
    %c0_234 = arith.constant 0 : index
    %537 = vector.load %arg2[%c2112, %c0_234] : memref<2304x128xbf16, #tpu.memory_space<vmem>>, vector<64x64xbf16>
    %c2176 = arith.constant 2176 : index
    %c0_235 = arith.constant 0 : index
    %538 = vector.load %arg2[%c2176, %c0_235] : memref<2304x128xbf16, #tpu.memory_space<vmem>>, vector<64x64xbf16>
    %c2240 = arith.constant 2240 : index
    %c0_236 = arith.constant 0 : index
    %539 = vector.load %arg2[%c2240, %c0_236] : memref<2304x128xbf16, #tpu.memory_space<vmem>>, vector<64x64xbf16>
    %cst_237 = arith.constant dense<0.000000e+00> : vector<8x64xf32>
    %540 = tpu.matmul %534, %538, %cst_237 {dimension_numbers = #tpu.dot_dimension_numbers<[1], [0], [0], [1], [0, 0, 1, 1], [], []>} : vector<8x64xbf16>, vector<64x64xbf16>, vector<8x64xf32> -> vector<8x64xf32>
    %cst_238 = arith.constant dense<0.000000e+00> : vector<8x64xf32>
    %541 = tpu.matmul %535, %537, %cst_238 {dimension_numbers = #tpu.dot_dimension_numbers<[1], [0], [0], [1], [0, 0, 1, 1], [], []>} : vector<8x64xbf16>, vector<64x64xbf16>, vector<8x64xf32> -> vector<8x64xf32>
    %542 = arith.addf %540, %541 : vector<8x64xf32>
    %cst_239 = arith.constant dense<0.000000e+00> : vector<8x64xf32>
    %543 = tpu.matmul %536, %539, %cst_239 {dimension_numbers = #tpu.dot_dimension_numbers<[1], [0], [0], [1], [0, 0, 1, 1], [], []>} : vector<8x64xbf16>, vector<64x64xbf16>, vector<8x64xf32> -> vector<8x64xf32>
    %544 = arith.addf %542, %543 : vector<8x64xf32>
    %c464 = arith.constant 464 : index
    %c0_240 = arith.constant 0 : index
    %545 = vector.load %arg3[%c464, %c0_240] : memref<568x256xf32, #tpu.memory_space<vmem>>, vector<1x64xf32>
    %546 = vector.broadcast %545 : vector<1x64xf32> to vector<8x64xf32>
    %547 = arith.addf %544, %546 : vector<8x64xf32>
    %cst_241 = arith.constant 0.000000e+00 : f32
    %548 = vector.broadcast %cst_241 : f32 to vector<8x64xf32>
    %549 = arith.maximumf %547, %548 : vector<8x64xf32>
    %c472 = arith.constant 472 : index
    %c0_242 = arith.constant 0 : index
    %550 = vector.load %arg3[%c472, %c0_242] : memref<568x256xf32, #tpu.memory_space<vmem>>, vector<2x8xf32>
    %cst_243 = arith.constant dense<0.000000e+00> : vector<2x64xf32>
    %551 = tpu.matmul %550, %549, %cst_243 {dimension_numbers = #tpu.dot_dimension_numbers<[1], [0], [0], [1], [0, 0, 1, 1], [], []>} : vector<2x8xf32>, vector<8x64xf32>, vector<2x64xf32> -> vector<2x64xf32>
    %c480 = arith.constant 480 : index
    %c0_244 = arith.constant 0 : index
    %552 = vector.load %arg3[%c480, %c0_244] : memref<568x256xf32, #tpu.memory_space<vmem>>, vector<64x16xf32>
    %cst_245 = arith.constant dense<0.000000e+00> : vector<2x16xf32>
    %553 = tpu.matmul %551, %552, %cst_245 {dimension_numbers = #tpu.dot_dimension_numbers<[1], [0], [0], [1], [0, 0, 1, 1], [], []>} : vector<2x64xf32>, vector<64x16xf32>, vector<2x16xf32> -> vector<2x16xf32>
    %c544 = arith.constant 544 : index
    %c0_246 = arith.constant 0 : index
    %554 = vector.load %arg3[%c544, %c0_246] : memref<568x256xf32, #tpu.memory_space<vmem>>, vector<16x2xf32>
    %cst_247 = arith.constant dense<0.000000e+00> : vector<2x2xf32>
    %555 = tpu.matmul %553, %554, %cst_247 {dimension_numbers = #tpu.dot_dimension_numbers<[1], [0], [0], [1], [0, 0, 1, 1], [], []>} : vector<2x16xf32>, vector<16x2xf32>, vector<2x2xf32> -> vector<2x2xf32>
    %c560 = arith.constant 560 : index
    %c0_248 = arith.constant 0 : index
    %556 = vector.load %arg3[%c560, %c0_248] : memref<568x256xf32, #tpu.memory_space<vmem>>, vector<1x2xf32>
    %557 = vector.broadcast %556 : vector<1x2xf32> to vector<2x2xf32>
    %558 = arith.addf %555, %557 : vector<2x2xf32>
    %c0_249 = arith.constant 0 : index
    %c0_250 = arith.constant 0 : index
    %c0_251 = arith.constant 0 : index
    %559 = vector.load %arg4[%c0_249, %c0_250, %c0_251] : memref<1x2x2xf32, #tpu.memory_space<vmem>>, vector<1x2x2xf32>
    %560 = vector.shape_cast %559 : vector<1x2x2xf32> to vector<2x2xf32>
    %561 = vector.shape_cast %558 : vector<2x2xf32> to vector<1x2x2xf32>
    tpu.vector_store %arg4[%c0_249, %c0_250, %c0_251], %561 {strides = array<i32>} : memref<1x2x2xf32, #tpu.memory_space<vmem>>, vector<1x2x2xf32>,
    return
  }
  func.func @transform_0(%arg0: i32) -> (i32, i32) {
    %c0_i32 = arith.constant 0 : i32
    %c0_i32_0 = arith.constant 0 : i32
    return %arg0, %c0_i32 : i32, i32
  }
  func.func @transform_1(%arg0: i32) -> (i32, i32) {
    %c0_i32 = arith.constant 0 : i32
    %c0_i32_0 = arith.constant 0 : i32
    %c0_i32_1 = arith.constant 0 : i32
    return %c0_i32, %c0_i32_0 : i32, i32
  }
  func.func @transform_2(%arg0: i32) -> (i32, i32) {
    %c0_i32 = arith.constant 0 : i32
    %c0_i32_0 = arith.constant 0 : i32
    %c0_i32_1 = arith.constant 0 : i32
    return %c0_i32, %c0_i32_0 : i32, i32
  }
  func.func @transform_3(%arg0: i32) -> (i32, i32, i32) {
    %c0_i32 = arith.constant 0 : i32
    %c0_i32_0 = arith.constant 0 : i32
    %c0_i32_1 = arith.constant 0 : i32
    return %arg0, %c0_i32, %c0_i32_0 : i32, i32, i32
  }
}

</mosaic_0001>

<llo_original>
// kernel: tpu_custom_call.1
$region0: #{tpu_custom_call.1}
  #allocation0 [shape = 'u32[]', space=smem, size = 0x4, offset = 0x4, fixed_abs, tag = 'smem constant byte address 0x4 - core index']
  #allocation1 [shape = 'u32[72,128]{1,0:T(1,128)}', space=vmem, size = 0x9000, scoped, tag = 'internal scratch']
  %s0 = inlined_call_operand.hbm [shape: f32[32,48], index: 0, kind: input, shape index: {}]
  %s1 = inlined_call_operand.hbm [shape: bf16[2304,128], index: 1, kind: input, shape index: {}]
  %s2 = inlined_call_operand.hbm [shape: f32[568,256], index: 2, kind: input, shape index: {}]
  %s3 = inlined_call_operand.hbm [shape: f32[1,2,2], index: 3, kind: output, shape index: {}]
  %s4 = sld [smem:[#allocation0]]
  $region34: #{tpu_custom_call.1} parent=0
    _
  %s6 = ssub.s32 1, %s4
  %s7 = scalar_select 0, %s6, %s4
  $region1: #{tpu_custom_call.1} parent=0
    #allocation2 [shape = 'u8[16384]{0}', space=vmem, size = 0x4000, scoped, tag = 'input window, operand 0, single buffered']
    #allocation3 [shape = 's32[1]{0}', space=sflag, size = 0x4, scoped, tag = 'scoped memory for tpu_custom_call.1']
    #allocation4 [shape = 's32[1]{0}', space=sflag, size = 0x4, scoped, tag = 'scoped memory for tpu_custom_call.1']
    #allocation5 [shape = 'u8[589824]{0}', space=vmem, size = 0x90000, scoped, tag = 'input window, operand 1, single buffered']
    #allocation6 [shape = 's32[1]{0}', space=sflag, size = 0x4, scoped, tag = 'scoped memory for tpu_custom_call.1']
    #allocation7 [shape = 'u8[581632]{0}', space=vmem, size = 0x8e000, scoped, tag = 'input window, operand 2, single buffered']
    #allocation8 [shape = 'u8[1024]{0}', space=vmem, size = 0x400, scoped, tag = 'output window, operand 0, single buffered']
    %8 = vsyncpa [#allocation3], 0
    %9 = vsyncpa [#allocation6], 0
    %10 = vsyncpa [#allocation4], 0
    // Predicated region
    $region2: #{tpu_custom_call.1} parent=1 // pred_check
      _
    $region3: #{tpu_custom_call.1} parent=1 // pred_check_branch
      %12 = sbr.rel (0) target = $region5
    $region4: #{tpu_custom_call.1} parent=1 // pred_region
      %14 = vsyncadd [#allocation3], 0
      %s15 = sshll.u32 %s0, 4
      %s16 = int_to_ptr.hbm [resolvable:$true] %s15
      %s17 = sshll.u32 [#allocation2], 4
      %s18 = int_to_ptr.vmem [resolvable:$true] %s17
      %23 = dma.hbm_to_vmem [thread:$0]  %s16, 512, %s18, [#allocation3], 128, 128, 8
    $region5: #{tpu_custom_call.1} parent=1 // pred_fallthru
      _
    // Predicated region
    $region6: #{tpu_custom_call.1} parent=1 // pred_check
      _
    $region7: #{tpu_custom_call.1} parent=1 // pred_check_branch
      %25 = sbr.rel (0) target = $region9
    $region8: #{tpu_custom_call.1} parent=1 // pred_region
      %27 = vsyncadd [#allocation6], 0
      %s28 = sshll.u32 %s1, 4
      %s29 = int_to_ptr.hbm [resolvable:$true] %s28
      %s30 = sshll.u32 [#allocation5], 4
      %s31 = int_to_ptr.vmem [resolvable:$true] %s30
      %36 = dma.hbm_to_vmem [thread:$0]  %s29, 18432, %s31, [#allocation6], 64, 64, 4
    $region9: #{tpu_custom_call.1} parent=1 // pred_fallthru
      _
    // Predicated region
    $region10: #{tpu_custom_call.1} parent=1 // pred_check
      _
    $region11: #{tpu_custom_call.1} parent=1 // pred_check_branch
      %38 = sbr.rel (0) target = $region13
    $region12: #{tpu_custom_call.1} parent=1 // pred_region
      %40 = vsyncadd [#allocation6], 0
      %s41 = sshll.u32 %s2, 4
      %s42 = int_to_ptr.hbm [resolvable:$true] %s41
      %s43 = sshll.u32 [#allocation7], 4
      %s44 = int_to_ptr.vmem [resolvable:$true] %s43
      %49 = dma.hbm_to_vmem [thread:$0]  %s42, 18176, %s44, [#allocation6], 256, 256, 16
    $region13: #{tpu_custom_call.1} parent=1 // pred_fallthru
      _
    // Predicated region
    $region14: #{tpu_custom_call.1} parent=1 // pred_check
      _
    $region15: #{tpu_custom_call.1} parent=1 // pred_check_branch
      %51 = sbr.rel (0) target = $region17
    $region16: #{tpu_custom_call.1} parent=1 // pred_region
      %53 = dma.done [#allocation3], 512
    $region17: #{tpu_custom_call.1} parent=1 // pred_fallthru
      _
    // Predicated region
    $region18: #{tpu_custom_call.1} parent=1 // pred_check
      _
    $region19: #{tpu_custom_call.1} parent=1 // pred_check_branch
      %55 = sbr.rel (0) target = $region21
    $region20: #{tpu_custom_call.1} parent=1 // pred_region
      %57 = dma.done [#allocation6], 18432
    $region21: #{tpu_custom_call.1} parent=1 // pred_fallthru
      _
    // Predicated region
    $region22: #{tpu_custom_call.1} parent=1 // pred_check
      _
    $region23: #{tpu_custom_call.1} parent=1 // pred_check_branch
      %59 = sbr.rel (0) target = $region25
    $region24: #{tpu_custom_call.1} parent=1 // pred_region
      %61 = dma.done [#allocation6], 18176
    $region25: #{tpu_custom_call.1} parent=1 // pred_fallthru
      _
    %v63 = vld [vmem:[#allocation2] sm:$0xff]
    %v64 = vld [vmem:[#allocation2 + $0x8] sm:$0xff]
    %v65 = vld [vmem:[#allocation2 + $0x10] sm:$0xff]
    %v66 = vld [vmem:[#allocation2 + $0x18] sm:$0xff]
    %v67 = vlaneseq
    %v68 = vshrl.u32 %v67, 7
    %v69 = vadd.s32 %v68, 8
    %v70 = vadd.s32 %v68, 16
    %v71 = vadd.s32 %v68, 24
    %vm72 = vcmp.lt.s32.totalorder %v68, 0
    %v73 = vsub.s32 0, %v68
    %v74 = vsel %vm72, %v73, %v68
    %v75 = vshrl.u32 %v74, 4
    %v76 = vand.u32 %v74, 15
    %v77 = vsub.s32 0, %v76
    %v78 = vsel %vm72, %v77, %v76
    %vm79 = vcmp.lt.s32.totalorder %v69, 0
    %v80 = vsub.s32 0, %v69
    %v81 = vsel %vm79, %v80, %v69
    %v82 = vshrl.u32 %v81, 4
    %v83 = vand.u32 %v81, 15
    %v84 = vsub.s32 0, %v83
    %v85 = vsel %vm79, %v84, %v83
    %vm86 = vcmp.lt.s32.totalorder %v70, 0
    %v87 = vsub.s32 0, %v70
    %v88 = vsel %vm86, %v87, %v70
    %v89 = vshrl.u32 %v88, 4
    %v90 = vand.u32 %v88, 15
    %v91 = vsub.s32 0, %v90
    %v92 = vsel %vm86, %v91, %v90
    %vm93 = vcmp.lt.s32.totalorder %v71, 0
    %v94 = vsub.s32 0, %v71
    %v95 = vsel %vm93, %v94, %v71
    %v96 = vshrl.u32 %v95, 4
    %v97 = vand.u32 %v95, 15
    %v98 = vsub.s32 0, %v97
    %v99 = vsel %vm93, %v98, %v97
    %vm100 = vcmp.ne.s32.totalorder %v78, 0
    %vm101 = vcmp.ne.s32.totalorder %v85, 0
    %vm102 = vcmp.ne.s32.totalorder %v92, 0
    %vm103 = vcmp.ne.s32.totalorder %v99, 0
    %vm104 = vcmp.lt.s32.totalorder %v78, 0
    %vm105 = vcmp.lt.s32.totalorder %v85, 0
    %vm106 = vcmp.lt.s32.totalorder %v92, 0
    %vm107 = vcmp.lt.s32.totalorder %v99, 0
    %vm108 = vmand %vm104, %vm100
    %vm109 = vmand %vm105, %vm101
    %vm110 = vmand %vm106, %vm102
    %vm111 = vmand %vm107, %vm103
    %v112 = vadd.s32 %v78, 16
    %v113 = vadd.s32 %v85, 16
    %v114 = vadd.s32 %v92, 16
    %v115 = vadd.s32 %v99, 16
    %v116 = vsel %vm108, %v112, %v78
    %v117 = vsel %vm109, %v113, %v85
    %v118 = vsel %vm110, %v114, %v92
    %v119 = vsel %vm111, %v115, %v99
    %vm120 = vcmp.eq.s32.totalorder %v116, 0
    %vm121 = vcmp.eq.s32.totalorder %v117, 0
    %vm122 = vcmp.eq.s32.totalorder %v118, 0
    %vm123 = vcmp.eq.s32.totalorder %v119, 0
    %v124 = vrot.slane %v63, 7
    %v125 = vrot.slane %v64, 7
    %v126 = vrot.slane %v65, 7
    %v127 = vrot.slane %v66, 7
    %vm128 = vcmp.lt.s32.totalorder %v68, 1
    %v129 = vsel %vm128, %v126, %v127
    %v130 = vsel %vm128, %v125, %v126
    %v131 = vsel %vm128, %v124, %v125
    %v132 = vsel %vm128, %v127, %v124
    %v133 = vsel %vm120, 0.0, %v132
    %v134 = vsel %vm121, 0.0, %v131
    %v135 = vsel %vm122, 0.0, %v130
    %v136 = vsel %vm123, 0.0, %v129
    %vm137 = vcmp.eq.s32.totalorder %v116, 15
    %vm138 = vcmp.eq.s32.totalorder %v117, 15
    %vm139 = vcmp.eq.s32.totalorder %v118, 15
    %vm140 = vcmp.eq.s32.totalorder %v119, 15
    %v141 = vrot.slane %v63, 1
    %v142 = vrot.slane %v64, 1
    %v143 = vrot.slane %v65, 1
    %v144 = vrot.slane %v66, 1
    %vm145 = vcmp.lt.s32.totalorder %v68, 7
    %v146 = vsel %vm145, %v143, %v144
    %v147 = vsel %vm145, %v142, %v143
    %v148 = vsel %vm145, %v141, %v142
    %v149 = vsel %vm145, %v144, %v141
    %v150 = vsel %vm137, 0.0, %v148
    %v151 = vsel %vm138, 0.0, %v147
    %v152 = vsel %vm139, 0.0, %v146
    %v153 = vsel %vm140, 0.0, %v149
    %v154 = vld [vmem:[#allocation7] sm:$0xff]
    %v155 = vld [vmem:[#allocation7 + $0x8] sm:$0xff]
    %v156 = vld [vmem:[#allocation7 + $0x10] sm:$0xff]
    %v157 = vld [vmem:[#allocation7 + $0x18] sm:$0xff]
    %v158 = vld [vmem:[#allocation7 + $0x20] sm:$0xff]
    %v159 = vld [vmem:[#allocation7 + $0x28] sm:$0xff]
    %v160 = vld [vmem:[#allocation7 + $0x30] sm:$0xff]
    %v161 = vld [vmem:[#allocation7 + $0x38] sm:$0xff]
    %v162 = vld [vmem:[#allocation7 + $0x40] sm:$0xff]
    %v163 = vld [vmem:[#allocation7 + $0x48] sm:$0xff]
    %v164 = vld [vmem:[#allocation7 + $0x50] sm:$0xff]
    %v165 = vld [vmem:[#allocation7 + $0x58] sm:$0xff]
    %v166 = vld [vmem:[#allocation7 + $0x60] sm:$0xff]
    %v167 = vld [vmem:[#allocation7 + $0x68] sm:$0xff]
    %v168 = vld [vmem:[#allocation7 + $0x70] sm:$0xff]
    %v169 = vld [vmem:[#allocation7 + $0x78] sm:$0xff]
    %v170 = vld [vmem:[#allocation7 + $0x80] sm:$0xff]
    %v171 = vld [vmem:[#allocation7 + $0x88] sm:$0xff]
    %v172 = vld [vmem:[#allocation7 + $0x90] sm:$0xff]
    %v173 = vld [vmem:[#allocation7 + $0x98] sm:$0xff]
    %v174 = vld [vmem:[#allocation7 + $0xa0] sm:$0xff]
    %v175 = vld [vmem:[#allocation7 + $0xa8] sm:$0xff]
    %v176 = vld [vmem:[#allocation7 + $0xb0] sm:$0xff]
    %v177 = vld [vmem:[#allocation7 + $0xb8] sm:$0xff]
    %v178 = vld [vmem:[#allocation7 + $0xc0] sm:$0xff]
    %v179 = vld [vmem:[#allocation7 + $0xc8] sm:$0xff]
    %v180 = vld [vmem:[#allocation7 + $0xd0] sm:$0xff]
    %v181 = vld [vmem:[#allocation7 + $0xd8] sm:$0xff]
    %v182 = vld [vmem:[#allocation7 + $0xe0] sm:$0xff]
    %v183 = vld [vmem:[#allocation7 + $0xe8] sm:$0xff]
    %v184 = vld [vmem:[#allocation7 + $0xf0] sm:$0xff]
    %v185 = vld [vmem:[#allocation7 + $0xf8] sm:$0xff]
    %v186 = vld [vmem:[#allocation7 + $0x100] sm:$0xff]
    %v187 = vld [vmem:[#allocation7 + $0x108] sm:$0xff]
    %v188 = vld [vmem:[#allocation7 + $0x110] sm:$0xff]
    %v189 = vld [vmem:[#allocation7 + $0x118] sm:$0xff]
    %vm190 = vcmask 392192
    %v192 = vsel %vm190, %v133, 0
    %v195 = vsel %vm190, %v134, 0
    %v198 = vsel %vm190, %v135, 0
    %v201 = vsel %vm190, %v136, 0
    %203 = vmatpush.msra.mxu0 0.0
    %204 = vmatpush.msra.mxu0 0.0
    %205 = vmatpush.msra.mxu0 0.0
    %206 = vmatpush.msra.mxu0 0.0
    %207 = vmatpush.msra.mxu0 0.0
    %208 = vmatpush.msra.mxu0 0.0
    %209 = vmatpush.msra.mxu0 0.0
    %210 = vmatpush.msra.mxu0 0.0
    %211 = vmatpush.msra.mxu0 0.0
    %212 = vmatpush.msra.mxu0 0.0
    %213 = vmatpush.msra.mxu0 %v164
    %214 = vmatpush.msra.mxu0 %v162
    %215 = vmatpush.msra.mxu0 %v160
    %216 = vmatpush.msra.mxu0 %v158
    %217 = vmatpush.msra.mxu0 %v156
    %218 = vmatpush.msra.mxu0 %v154
    %219 = vmatmul.f32.gmra.mxu0 %v192
    %v220 = vpop.f32.mrf.mxu0
    %v221 = vadd.f32 0.0, %v220
    %222 = vmatmul.f32.gmra.mxu0 %v195
    %v223 = vpop.f32.mrf.mxu0
    %v224 = vadd.f32 0.0, %v223
    %225 = vmatmul.f32.gmra.mxu0 %v198
    %v226 = vpop.f32.mrf.mxu0
    %v227 = vadd.f32 0.0, %v226
    %228 = vmatmul.f32.gmra.mxu0 %v201
    %v229 = vpop.f32.mrf.mxu0
    %v230 = vadd.f32 0.0, %v229
    %231 = vdwg.mxu0
    %232 = vmatpush.msra.mxu0 0.0
    %233 = vmatpush.msra.mxu0 0.0
    %234 = vmatpush.msra.mxu0 0.0
    %235 = vmatpush.msra.mxu0 0.0
    %236 = vmatpush.msra.mxu0 0.0
    %237 = vmatpush.msra.mxu0 0.0
    %238 = vmatpush.msra.mxu0 0.0
    %239 = vmatpush.msra.mxu0 0.0
    %240 = vmatpush.msra.mxu0 0.0
    %241 = vmatpush.msra.mxu0 0.0
    %242 = vmatpush.msra.mxu0 %v165
    %243 = vmatpush.msra.mxu0 %v163
    %244 = vmatpush.msra.mxu0 %v161
    %245 = vmatpush.msra.mxu0 %v159
    %246 = vmatpush.msra.mxu0 %v157
    %247 = vmatpush.msra.mxu0 %v155
    %248 = vmatmul.f32.gmra.mxu0 %v192
    %v249 = vpop.f32.mrf.mxu0
    %v250 = vadd.f32 0.0, %v249
    %251 = vmatmul.f32.gmra.mxu0 %v195
    %v252 = vpop.f32.mrf.mxu0
    %v253 = vadd.f32 0.0, %v252
    %254 = vmatmul.f32.gmra.mxu0 %v198
    %v255 = vpop.f32.mrf.mxu0
    %v256 = vadd.f32 0.0, %v255
    %257 = vmatmul.f32.gmra.mxu0 %v201
    %v258 = vpop.f32.mrf.mxu0
    %v259 = vadd.f32 0.0, %v258
    %260 = vdwg.mxu0
    %v262 = vsel %vm190, %v63, 0
    %v265 = vsel %vm190, %v64, 0
    %v268 = vsel %vm190, %v65, 0
    %v271 = vsel %vm190, %v66, 0
    %273 = vmatpush.msra.mxu0 0.0
    %274 = vmatpush.msra.mxu0 0.0
    %275 = vmatpush.msra.mxu0 0.0
    %276 = vmatpush.msra.mxu0 0.0
    %277 = vmatpush.msra.mxu0 0.0
    %278 = vmatpush.msra.mxu0 0.0
    %279 = vmatpush.msra.mxu0 0.0
    %280 = vmatpush.msra.mxu0 0.0
    %281 = vmatpush.msra.mxu0 0.0
    %282 = vmatpush.msra.mxu0 0.0
    %283 = vmatpush.msra.mxu0 %v176
    %284 = vmatpush.msra.mxu0 %v174
    %285 = vmatpush.msra.mxu0 %v172
    %286 = vmatpush.msra.mxu0 %v170
    %287 = vmatpush.msra.mxu0 %v168
    %288 = vmatpush.msra.mxu0 %v166
    %289 = vmatmul.f32.gmra.mxu0 %v262
    %v290 = vpop.f32.mrf.mxu0
    %v291 = vadd.f32 %v221, %v290
    %292 = vmatmul.f32.gmra.mxu0 %v265
    %v293 = vpop.f32.mrf.mxu0
    %v294 = vadd.f32 %v224, %v293
    %295 = vmatmul.f32.gmra.mxu0 %v268
    %v296 = vpop.f32.mrf.mxu0
    %v297 = vadd.f32 %v227, %v296
    %298 = vmatmul.f32.gmra.mxu0 %v271
    %v299 = vpop.f32.mrf.mxu0
    %v300 = vadd.f32 %v230, %v299
    %301 = vdwg.mxu0
    %302 = vmatpush.msra.mxu0 0.0
    %303 = vmatpush.msra.mxu0 0.0
    %304 = vmatpush.msra.mxu0 0.0
    %305 = vmatpush.msra.mxu0 0.0
    %306 = vmatpush.msra.mxu0 0.0
    %307 = vmatpush.msra.mxu0 0.0
    %308 = vmatpush.msra.mxu0 0.0
    %309 = vmatpush.msra.mxu0 0.0
    %310 = vmatpush.msra.mxu0 0.0
    %311 = vmatpush.msra.mxu0 0.0
    %312 = vmatpush.msra.mxu0 %v177
    %313 = vmatpush.msra.mxu0 %v175
    %314 = vmatpush.msra.mxu0 %v173
    %315 = vmatpush.msra.mxu0 %v171
    %316 = vmatpush.msra.mxu0 %v169
    %317 = vmatpush.msra.mxu0 %v167
    %318 = vmatmul.f32.gmra.mxu0 %v262
    %v319 = vpop.f32.mrf.mxu0
    %v320 = vadd.f32 %v250, %v319
    %321 = vmatmul.f32.gmra.mxu0 %v265
    %v322 = vpop.f32.mrf.mxu0
    %v323 = vadd.f32 %v253, %v322
    %324 = vmatmul.f32.gmra.mxu0 %v268
    %v325 = vpop.f32.mrf.mxu0
    %v326 = vadd.f32 %v256, %v325
    %327 = vmatmul.f32.gmra.mxu0 %v271
    %v328 = vpop.f32.mrf.mxu0
    %v329 = vadd.f32 %v259, %v328
    %330 = vdwg.mxu0
    %v332 = vsel %vm190, %v150, 0
    %v335 = vsel %vm190, %v151, 0
    %v338 = vsel %vm190, %v152, 0
    %v341 = vsel %vm190, %v153, 0
    %343 = vmatpush.msra.mxu0 0.0
    %344 = vmatpush.msra.mxu0 0.0
    %345 = vmatpush.msra.mxu0 0.0
    %346 = vmatpush.msra.mxu0 0.0
    %347 = vmatpush.msra.mxu0 0.0
    %348 = vmatpush.msra.mxu0 0.0
    %349 = vmatpush.msra.mxu0 0.0
    %350 = vmatpush.msra.mxu0 0.0
    %351 = vmatpush.msra.mxu0 0.0
    %352 = vmatpush.msra.mxu0 0.0
    %353 = vmatpush.msra.mxu0 %v188
    %354 = vmatpush.msra.mxu0 %v186
    %355 = vmatpush.msra.mxu0 %v184
    %356 = vmatpush.msra.mxu0 %v182
    %357 = vmatpush.msra.mxu0 %v180
    %358 = vmatpush.msra.mxu0 %v178
    %359 = vmatmul.f32.gmra.mxu0 %v332
    %v360 = vpop.f32.mrf.mxu0
    %v361 = vadd.f32 0.0, %v360
    %362 = vmatmul.f32.gmra.mxu0 %v335
    %v363 = vpop.f32.mrf.mxu0
    %v364 = vadd.f32 0.0, %v363
    %365 = vmatmul.f32.gmra.mxu0 %v338
    %v366 = vpop.f32.mrf.mxu0
    %v367 = vadd.f32 0.0, %v366
    %368 = vmatmul.f32.gmra.mxu0 %v341
    %v369 = vpop.f32.mrf.mxu0
    %v370 = vadd.f32 0.0, %v369
    %371 = vdwg.mxu0
    %372 = vmatpush.msra.mxu0 0.0
    %373 = vmatpush.msra.mxu0 0.0
    %374 = vmatpush.msra.mxu0 0.0
    %375 = vmatpush.msra.mxu0 0.0
    %376 = vmatpush.msra.mxu0 0.0
    %377 = vmatpush.msra.mxu0 0.0
    %378 = vmatpush.msra.mxu0 0.0
    %379 = vmatpush.msra.mxu0 0.0
    %380 = vmatpush.msra.mxu0 0.0
    %381 = vmatpush.msra.mxu0 0.0
    %382 = vmatpush.msra.mxu0 %v189
    %383 = vmatpush.msra.mxu0 %v187
    %384 = vmatpush.msra.mxu0 %v185
    %385 = vmatpush.msra.mxu0 %v183
    %386 = vmatpush.msra.mxu0 %v181
    %387 = vmatpush.msra.mxu0 %v179
    %388 = vmatmul.f32.gmra.mxu0 %v332
    %v389 = vpop.f32.mrf.mxu0
    %v390 = vadd.f32 0.0, %v389
    %391 = vmatmul.f32.gmra.mxu0 %v335
    %v392 = vpop.f32.mrf.mxu0
    %v393 = vadd.f32 0.0, %v392
    %394 = vmatmul.f32.gmra.mxu0 %v338
    %v395 = vpop.f32.mrf.mxu0
    %v396 = vadd.f32 0.0, %v395
    %397 = vmatmul.f32.gmra.mxu0 %v341
    %v398 = vpop.f32.mrf.mxu0
    %v399 = vadd.f32 0.0, %v398
    %400 = vdwg.mxu0
    %v401 = vadd.f32 %v291, %v361
    %v402 = vadd.f32 %v320, %v390
    %v403 = vadd.f32 %v294, %v364
    %v404 = vadd.f32 %v323, %v393
    %v405 = vadd.f32 %v297, %v367
    %v406 = vadd.f32 %v326, %v396
    %v407 = vadd.f32 %v300, %v370
    %v408 = vadd.f32 %v329, %v399
    %s409 = scalar_lea.vmem [#allocation7], 288
    %v410 = vld [vmem:[%s409] ss:$8 sm:$0x3]
    %v412 = vperm.slane %v410, 0
    %v413 = vperm.slane %v410, 1
    %v416 = vadd.f32 %v401, %v412
    %v417 = vadd.f32 %v402, %v413
    %v418 = vadd.f32 %v403, %v412
    %v419 = vadd.f32 %v404, %v413
    %v420 = vadd.f32 %v405, %v412
    %v421 = vadd.f32 %v406, %v413
    %v422 = vadd.f32 %v407, %v412
    %v423 = vadd.f32 %v408, %v413
    %v424 = vmax.f32 %v416, 0.0
    %v425 = vmax.f32 %v417, 0.0
    %v426 = vmax.f32 %v418, 0.0
    %v427 = vmax.f32 %v419, 0.0
    %v428 = vmax.f32 %v420, 0.0
    %v429 = vmax.f32 %v421, 0.0
    %v430 = vmax.f32 %v422, 0.0
    %v431 = vmax.f32 %v423, 0.0
    %v432 = vrot.slane %v424, 7
    %v433 = vrot.slane %v425, 7
    %v434 = vrot.slane %v426, 7
    %v435 = vrot.slane %v427, 7
    %v436 = vrot.slane %v428, 7
    %v437 = vrot.slane %v429, 7
    %v438 = vrot.slane %v430, 7
    %v439 = vrot.slane %v431, 7
    %v440 = vsel %vm128, %v436, %v438
    %v441 = vsel %vm128, %v437, %v439
    %v442 = vsel %vm128, %v434, %v436
    %v443 = vsel %vm128, %v435, %v437
    %v444 = vsel %vm128, %v432, %v434
    %v445 = vsel %vm128, %v433, %v435
    %v446 = vsel %vm128, %v438, %v432
    %v447 = vsel %vm128, %v439, %v433
    %v448 = vsel %vm120, 0.0, %v446
    %v449 = vsel %vm120, 0.0, %v447
    %v450 = vsel %vm121, 0.0, %v444
    %v451 = vsel %vm121, 0.0, %v445
    %v452 = vsel %vm122, 0.0, %v442
    %v453 = vsel %vm122, 0.0, %v443
    %v454 = vsel %vm123, 0.0, %v440
    %v455 = vsel %vm123, 0.0, %v441
    %v456 = vrot.slane %v424, 1
    %v457 = vrot.slane %v425, 1
    %v458 = vrot.slane %v426, 1
    %v459 = vrot.slane %v427, 1
    %v460 = vrot.slane %v428, 1
    %v461 = vrot.slane %v429, 1
    %v462 = vrot.slane %v430, 1
    %v463 = vrot.slane %v431, 1
    %v464 = vsel %vm145, %v460, %v462
    %v465 = vsel %vm145, %v461, %v463
    %v466 = vsel %vm145, %v458, %v460
    %v467 = vsel %vm145, %v459, %v461
    %v468 = vsel %vm145, %v456, %v458
    %v469 = vsel %vm145, %v457, %v459
    %v470 = vsel %vm145, %v462, %v456
    %v471 = vsel %vm145, %v463, %v457
    %v472 = vsel %vm137, 0.0, %v468
    %v473 = vsel %vm137, 0.0, %v469
    %v474 = vsel %vm138, 0.0, %v466
    %v475 = vsel %vm138, 0.0, %v467
    %v476 = vsel %vm139, 0.0, %v464
    %v477 = vsel %vm139, 0.0, %v465
    %v478 = vsel %vm140, 0.0, %v470
    %v479 = vsel %vm140, 0.0, %v471
    %v480 = vpack.c.bf16 %v426, %v424
    %v481 = vpack.c.bf16 %v427, %v425
    %v482 = vpack.c.bf16 %v430, %v428
    %v483 = vpack.c.bf16 %v431, %v429
    %v484 = vpack.c.bf16 %v450, %v448
    %v485 = vpack.c.bf16 %v451, %v449
    %v486 = vpack.c.bf16 %v454, %v452
    %v487 = vpack.c.bf16 %v455, %v453
    %v488 = vpack.c.bf16 %v474, %v472
    %v489 = vpack.c.bf16 %v475, %v473
    %v490 = vpack.c.bf16 %v478, %v476
    %v491 = vpack.c.bf16 %v479, %v477
    %v492 = vld [vmem:[#allocation5] sm:$0xf]
    %v493 = vld [vmem:[#allocation5 + $0x4] sm:$0xf]
    %v494 = vld [vmem:[#allocation5 + $0x8] sm:$0xf]
    %v495 = vld [vmem:[#allocation5 + $0xc] sm:$0xf]
    %v496 = vld [vmem:[#allocation5 + $0x10] sm:$0xf]
    %v497 = vld [vmem:[#allocation5 + $0x14] sm:$0xf]
    %v498 = vld [vmem:[#allocation5 + $0x18] sm:$0xf]
    %v499 = vld [vmem:[#allocation5 + $0x1c] sm:$0xf]
    %v500 = vld [vmem:[#allocation5 + $0x20] sm:$0xf]
    %v501 = vld [vmem:[#allocation5 + $0x24] sm:$0xf]
    %v502 = vld [vmem:[#allocation5 + $0x28] sm:$0xf]
    %v503 = vld [vmem:[#allocation5 + $0x2c] sm:$0xf]
    %v504 = vld [vmem:[#allocation5 + $0x30] sm:$0xf]
    %v505 = vld [vmem:[#allocation5 + $0x34] sm:$0xf]
    %v506 = vld [vmem:[#allocation5 + $0x38] sm:$0xf]
    %v507 = vld [vmem:[#allocation5 + $0x3c] sm:$0xf]
    %v508 = vld [vmem:[#allocation5 + $0x40] sm:$0xf]
    %v509 = vld [vmem:[#allocation5 + $0x44] sm:$0xf]
    %v510 = vld [vmem:[#allocation5 + $0x48] sm:$0xf]
    %v511 = vld [vmem:[#allocation5 + $0x4c] sm:$0xf]
    %v512 = vld [vmem:[#allocation5 + $0x50] sm:$0xf]
    %v513 = vld [vmem:[#allocation5 + $0x54] sm:$0xf]
    %v514 = vld [vmem:[#allocation5 + $0x58] sm:$0xf]
    %v515 = vld [vmem:[#allocation5 + $0x5c] sm:$0xf]
    %v516 = vld [vmem:[#allocation5 + $0x60] sm:$0xf]
    %v517 = vld [vmem:[#allocation5 + $0x64] sm:$0xf]
    %v518 = vld [vmem:[#allocation5 + $0x68] sm:$0xf]
    %v519 = vld [vmem:[#allocation5 + $0x6c] sm:$0xf]
    %v520 = vld [vmem:[#allocation5 + $0x70] sm:$0xf]
    %v521 = vld [vmem:[#allocation5 + $0x74] sm:$0xf]
    %v522 = vld [vmem:[#allocation5 + $0x78] sm:$0xf]
    %v523 = vld [vmem:[#allocation5 + $0x7c] sm:$0xf]
    %v524 = vld [vmem:[#allocation5 + $0x80] sm:$0xf]
    %v525 = vld [vmem:[#allocation5 + $0x84] sm:$0xf]
    %v526 = vld [vmem:[#allocation5 + $0x88] sm:$0xf]
    %v527 = vld [vmem:[#allocation5 + $0x8c] sm:$0xf]
    %v528 = vld [vmem:[#allocation5 + $0x90] sm:$0xf]
    %v529 = vld [vmem:[#allocation5 + $0x94] sm:$0xf]
    %v530 = vld [vmem:[#allocation5 + $0x98] sm:$0xf]
    %v531 = vld [vmem:[#allocation5 + $0x9c] sm:$0xf]
    %v532 = vld [vmem:[#allocation5 + $0xa0] sm:$0xf]
    %v533 = vld [vmem:[#allocation5 + $0xa4] sm:$0xf]
    %v534 = vld [vmem:[#allocation5 + $0xa8] sm:$0xf]
    %v535 = vld [vmem:[#allocation5 + $0xac] sm:$0xf]
    %v536 = vld [vmem:[#allocation5 + $0xb0] sm:$0xf]
    %v537 = vld [vmem:[#allocation5 + $0xb4] sm:$0xf]
    %v538 = vld [vmem:[#allocation5 + $0xb8] sm:$0xf]
    %v539 = vld [vmem:[#allocation5 + $0xbc] sm:$0xf]
    %v540 = vld [vmem:[#allocation5 + $0xc0] sm:$0xf]
    %v541 = vld [vmem:[#allocation5 + $0xc4] sm:$0xf]
    %v542 = vld [vmem:[#allocation5 + $0xc8] sm:$0xf]
    %v543 = vld [vmem:[#allocation5 + $0xcc] sm:$0xf]
    %v544 = vld [vmem:[#allocation5 + $0xd0] sm:$0xf]
    %v545 = vld [vmem:[#allocation5 + $0xd4] sm:$0xf]
    %v546 = vld [vmem:[#allocation5 + $0xd8] sm:$0xf]
    %v547 = vld [vmem:[#allocation5 + $0xdc] sm:$0xf]
    %v548 = vld [vmem:[#allocation5 + $0xe0] sm:$0xf]
    %v549 = vld [vmem:[#allocation5 + $0xe4] sm:$0xf]
    %v550 = vld [vmem:[#allocation5 + $0xe8] sm:$0xf]
    %v551 = vld [vmem:[#allocation5 + $0xec] sm:$0xf]
    %v552 = vld [vmem:[#allocation5 + $0xf0] sm:$0xf]
    %v553 = vld [vmem:[#allocation5 + $0xf4] sm:$0xf]
    %v554 = vld [vmem:[#allocation5 + $0xf8] sm:$0xf]
    %v555 = vld [vmem:[#allocation5 + $0xfc] sm:$0xf]
    %v556 = vld [vmem:[#allocation5 + $0x100] sm:$0xf]
    %v557 = vld [vmem:[#allocation5 + $0x104] sm:$0xf]
    %v558 = vld [vmem:[#allocation5 + $0x108] sm:$0xf]
    %v559 = vld [vmem:[#allocation5 + $0x10c] sm:$0xf]
    %v560 = vld [vmem:[#allocation5 + $0x110] sm:$0xf]
    %v561 = vld [vmem:[#allocation5 + $0x114] sm:$0xf]
    %v562 = vld [vmem:[#allocation5 + $0x118] sm:$0xf]
    %v563 = vld [vmem:[#allocation5 + $0x11c] sm:$0xf]
    %v564 = vld [vmem:[#allocation5 + $0x120] sm:$0xf]
    %v565 = vld [vmem:[#allocation5 + $0x124] sm:$0xf]
    %v566 = vld [vmem:[#allocation5 + $0x128] sm:$0xf]
    %v567 = vld [vmem:[#allocation5 + $0x12c] sm:$0xf]
    %v568 = vld [vmem:[#allocation5 + $0x130] sm:$0xf]
    %v569 = vld [vmem:[#allocation5 + $0x134] sm:$0xf]
    %v570 = vld [vmem:[#allocation5 + $0x138] sm:$0xf]
    %v571 = vld [vmem:[#allocation5 + $0x13c] sm:$0xf]
    %v572 = vld [vmem:[#allocation5 + $0x140] sm:$0xf]
    %v573 = vld [vmem:[#allocation5 + $0x144] sm:$0xf]
    %v574 = vld [vmem:[#allocation5 + $0x148] sm:$0xf]
    %v575 = vld [vmem:[#allocation5 + $0x14c] sm:$0xf]
    %v576 = vld [vmem:[#allocation5 + $0x150] sm:$0xf]
    %v577 = vld [vmem:[#allocation5 + $0x154] sm:$0xf]
    %v578 = vld [vmem:[#allocation5 + $0x158] sm:$0xf]
    %v579 = vld [vmem:[#allocation5 + $0x15c] sm:$0xf]
    %v580 = vld [vmem:[#allocation5 + $0x160] sm:$0xf]
    %v581 = vld [vmem:[#allocation5 + $0x164] sm:$0xf]
    %v582 = vld [vmem:[#allocation5 + $0x168] sm:$0xf]
    %v583 = vld [vmem:[#allocation5 + $0x16c] sm:$0xf]
    %v584 = vld [vmem:[#allocation5 + $0x170] sm:$0xf]
    %v585 = vld [vmem:[#allocation5 + $0x174] sm:$0xf]
    %v586 = vld [vmem:[#allocation5 + $0x178] sm:$0xf]
    %v587 = vld [vmem:[#allocation5 + $0x17c] sm:$0xf]
    %v620 = vunpack.c.l.b16 %v492
    %v621 = vunpack.c.l.b16 %v493
    %v622 = vunpack.c.l.b16 %v494
    %v623 = vunpack.c.l.b16 %v495
    %v624 = vunpack.c.l.b16 %v496
    %v625 = vunpack.c.l.b16 %v497
    %v626 = vunpack.c.l.b16 %v498
    %v627 = vunpack.c.l.b16 %v499
    %v628 = vunpack.c.l.b16 %v500
    %v629 = vunpack.c.l.b16 %v501
    %v630 = vunpack.c.l.b16 %v502
    %v631 = vunpack.c.l.b16 %v503
    %v632 = vunpack.c.l.b16 %v504
    %v633 = vunpack.c.l.b16 %v505
    %v634 = vunpack.c.l.b16 %v506
    %v635 = vunpack.c.l.b16 %v507
    %v636 = vunpack.c.l.b16 %v508
    %v637 = vunpack.c.l.b16 %v509
    %v638 = vunpack.c.l.b16 %v510
    %v639 = vunpack.c.l.b16 %v511
    %v640 = vunpack.c.l.b16 %v512
    %v641 = vunpack.c.l.b16 %v513
    %v642 = vunpack.c.l.b16 %v514
    %v643 = vunpack.c.l.b16 %v515
    %v644 = vunpack.c.l.b16 %v516
    %v645 = vunpack.c.l.b16 %v517
    %v646 = vunpack.c.l.b16 %v518
    %v647 = vunpack.c.l.b16 %v519
    %v648 = vunpack.c.l.b16 %v520
    %v649 = vunpack.c.l.b16 %v521
    %v650 = vunpack.c.l.b16 %v522
    %v651 = vunpack.c.l.b16 %v523
    %v652 = vpack.c.b16 %v621, %v620
    %v653 = vpack.c.b16 %v623, %v622
    %v654 = vpack.c.b16 %v625, %v624
    %v655 = vpack.c.b16 %v627, %v626
    %v656 = vpack.c.b16 %v629, %v628
    %v657 = vpack.c.b16 %v631, %v630
    %v658 = vpack.c.b16 %v633, %v632
    %v659 = vpack.c.b16 %v635, %v634
    %v660 = vpack.c.b16 %v637, %v636
    %v661 = vpack.c.b16 %v639, %v638
    %v662 = vpack.c.b16 %v641, %v640
    %v663 = vpack.c.b16 %v643, %v642
    %v664 = vpack.c.b16 %v645, %v644
    %v665 = vpack.c.b16 %v647, %v646
    %v666 = vpack.c.b16 %v649, %v648
    %v667 = vpack.c.b16 %v651, %v650
    %684 = vmatpush.bf16.msra.mxu0 %v659
    %685 = vmatpush.bf16.msra.mxu0 %v658
    %686 = vmatpush.bf16.msra.mxu0 %v657
    %687 = vmatpush.bf16.msra.mxu0 %v656
    %688 = vmatpush.bf16.msra.mxu0 %v655
    %689 = vmatpush.bf16.msra.mxu0 %v654
    %690 = vmatpush.bf16.msra.mxu0 %v653
    %691 = vmatpush.bf16.msra.mxu0 %v652
    %692 = vmatmul.bf16.gmra.mxu0 %v484
    %v693 = vpop.f32.mrf.mxu0
    %v694 = vadd.f32 0.0, %v693
    %v695 = vpop.f32.mrf.mxu0
    %v696 = vadd.f32 0.0, %v695
    %697 = vmatmul.bf16.gmra.mxu0 %v486
    %v698 = vpop.f32.mrf.mxu0
    %v699 = vadd.f32 0.0, %v698
    %v700 = vpop.f32.mrf.mxu0
    %v701 = vadd.f32 0.0, %v700
    %702 = vdwg.mxu0
    %703 = vmatpush.bf16.msra.mxu0 %v667
    %704 = vmatpush.bf16.msra.mxu0 %v666
    %705 = vmatpush.bf16.msra.mxu0 %v665
    %706 = vmatpush.bf16.msra.mxu0 %v664
    %707 = vmatpush.bf16.msra.mxu0 %v663
    %708 = vmatpush.bf16.msra.mxu0 %v662
    %709 = vmatpush.bf16.msra.mxu0 %v661
    %710 = vmatpush.bf16.msra.mxu0 %v660
    %711 = vmatmul.bf16.gmra.mxu0 %v485
    %v712 = vpop.f32.mrf.mxu0
    %v713 = vadd.f32 %v694, %v712
    %v714 = vpop.f32.mrf.mxu0
    %v715 = vadd.f32 %v696, %v714
    %716 = vmatmul.bf16.gmra.mxu0 %v487
    %v717 = vpop.f32.mrf.mxu0
    %v718 = vadd.f32 %v699, %v717
    %v719 = vpop.f32.mrf.mxu0
    %v720 = vadd.f32 %v701, %v719
    %721 = vdwg.mxu0
    %v754 = vunpack.c.l.b16 %v524
    %v755 = vunpack.c.l.b16 %v525
    %v756 = vunpack.c.l.b16 %v526
    %v757 = vunpack.c.l.b16 %v527
    %v758 = vunpack.c.l.b16 %v528
    %v759 = vunpack.c.l.b16 %v529
    %v760 = vunpack.c.l.b16 %v530
    %v761 = vunpack.c.l.b16 %v531
    %v762 = vunpack.c.l.b16 %v532
    %v763 = vunpack.c.l.b16 %v533
    %v764 = vunpack.c.l.b16 %v534
    %v765 = vunpack.c.l.b16 %v535
    %v766 = vunpack.c.l.b16 %v536
    %v767 = vunpack.c.l.b16 %v537
    %v768 = vunpack.c.l.b16 %v538
    %v769 = vunpack.c.l.b16 %v539
    %v770 = vunpack.c.l.b16 %v540
    %v771 = vunpack.c.l.b16 %v541
    %v772 = vunpack.c.l.b16 %v542
    %v773 = vunpack.c.l.b16 %v543
    %v774 = vunpack.c.l.b16 %v544
    %v775 = vunpack.c.l.b16 %v545
    %v776 = vunpack.c.l.b16 %v546
    %v777 = vunpack.c.l.b16 %v547
    %v778 = vunpack.c.l.b16 %v548
    %v779 = vunpack.c.l.b16 %v549
    %v780 = vunpack.c.l.b16 %v550
    %v781 = vunpack.c.l.b16 %v551
    %v782 = vunpack.c.l.b16 %v552
    %v783 = vunpack.c.l.b16 %v553
    %v784 = vunpack.c.l.b16 %v554
    %v785 = vunpack.c.l.b16 %v555
    %v786 = vpack.c.b16 %v755, %v754
    %v787 = vpack.c.b16 %v757, %v756
    %v788 = vpack.c.b16 %v759, %v758
    %v789 = vpack.c.b16 %v761, %v760
    %v790 = vpack.c.b16 %v763, %v762
    %v791 = vpack.c.b16 %v765, %v764
    %v792 = vpack.c.b16 %v767, %v766
    %v793 = vpack.c.b16 %v769, %v768
    %v794 = vpack.c.b16 %v771, %v770
    %v795 = vpack.c.b16 %v773, %v772
    %v796 = vpack.c.b16 %v775, %v774
    %v797 = vpack.c.b16 %v777, %v776
    %v798 = vpack.c.b16 %v779, %v778
    %v799 = vpack.c.b16 %v781, %v780
    %v800 = vpack.c.b16 %v783, %v782
    %v801 = vpack.c.b16 %v785, %v784
    %818 = vmatpush.bf16.msra.mxu0 %v793
    %819 = vmatpush.bf16.msra.mxu0 %v792
    %820 = vmatpush.bf16.msra.mxu0 %v791
    %821 = vmatpush.bf16.msra.mxu0 %v790
    %822 = vmatpush.bf16.msra.mxu0 %v789
    %823 = vmatpush.bf16.msra.mxu0 %v788
    %824 = vmatpush.bf16.msra.mxu0 %v787
    %825 = vmatpush.bf16.msra.mxu0 %v786
    %826 = vmatmul.bf16.gmra.mxu0 %v480
    %v827 = vpop.f32.mrf.mxu0
    %v828 = vadd.f32 %v713, %v827
    %v829 = vpop.f32.mrf.mxu0
    %v830 = vadd.f32 %v715, %v829
    %831 = vmatmul.bf16.gmra.mxu0 %v482
    %v832 = vpop.f32.mrf.mxu0
    %v833 = vadd.f32 %v718, %v832
    %v834 = vpop.f32.mrf.mxu0
    %v835 = vadd.f32 %v720, %v834
    %836 = vdwg.mxu0
    %837 = vmatpush.bf16.msra.mxu0 %v801
    %838 = vmatpush.bf16.msra.mxu0 %v800
    %839 = vmatpush.bf16.msra.mxu0 %v799
    %840 = vmatpush.bf16.msra.mxu0 %v798
    %841 = vmatpush.bf16.msra.mxu0 %v797
    %842 = vmatpush.bf16.msra.mxu0 %v796
    %843 = vmatpush.bf16.msra.mxu0 %v795
    %844 = vmatpush.bf16.msra.mxu0 %v794
    %845 = vmatmul.bf16.gmra.mxu0 %v481
    %v846 = vpop.f32.mrf.mxu0
    %v847 = vadd.f32 %v828, %v846
    %v848 = vpop.f32.mrf.mxu0
    %v849 = vadd.f32 %v830, %v848
    %850 = vmatmul.bf16.gmra.mxu0 %v483
    %v851 = vpop.f32.mrf.mxu0
    %v852 = vadd.f32 %v833, %v851
    %v853 = vpop.f32.mrf.mxu0
    %v854 = vadd.f32 %v835, %v853
    %855 = vdwg.mxu0
    %v888 = vunpack.c.l.b16 %v556
    %v889 = vunpack.c.l.b16 %v557
    %v890 = vunpack.c.l.b16 %v558
    %v891 = vunpack.c.l.b16 %v559
    %v892 = vunpack.c.l.b16 %v560
    %v893 = vunpack.c.l.b16 %v561
    %v894 = vunpack.c.l.b16 %v562
    %v895 = vunpack.c.l.b16 %v563
    %v896 = vunpack.c.l.b16 %v564
    %v897 = vunpack.c.l.b16 %v565
    %v898 = vunpack.c.l.b16 %v566
    %v899 = vunpack.c.l.b16 %v567
    %v900 = vunpack.c.l.b16 %v568
    %v901 = vunpack.c.l.b16 %v569
    %v902 = vunpack.c.l.b16 %v570
    %v903 = vunpack.c.l.b16 %v571
    %v904 = vunpack.c.l.b16 %v572
    %v905 = vunpack.c.l.b16 %v573
    %v906 = vunpack.c.l.b16 %v574
    %v907 = vunpack.c.l.b16 %v575
    %v908 = vunpack.c.l.b16 %v576
    %v909 = vunpack.c.l.b16 %v577
    %v910 = vunpack.c.l.b16 %v578
    %v911 = vunpack.c.l.b16 %v579
    %v912 = vunpack.c.l.b16 %v580
    %v913 = vunpack.c.l.b16 %v581
    %v914 = vunpack.c.l.b16 %v582
    %v915 = vunpack.c.l.b16 %v583
    %v916 = vunpack.c.l.b16 %v584
    %v917 = vunpack.c.l.b16 %v585
    %v918 = vunpack.c.l.b16 %v586
    %v919 = vunpack.c.l.b16 %v587
    %v920 = vpack.c.b16 %v889, %v888
    %v921 = vpack.c.b16 %v891, %v890
    %v922 = vpack.c.b16 %v893, %v892
    %v923 = vpack.c.b16 %v895, %v894
    %v924 = vpack.c.b16 %v897, %v896
    %v925 = vpack.c.b16 %v899, %v898
    %v926 = vpack.c.b16 %v901, %v900
    %v927 = vpack.c.b16 %v903, %v902
    %v928 = vpack.c.b16 %v905, %v904
    %v929 = vpack.c.b16 %v907, %v906
    %v930 = vpack.c.b16 %v909, %v908
    %v931 = vpack.c.b16 %v911, %v910
    %v932 = vpack.c.b16 %v913, %v912
    %v933 = vpack.c.b16 %v915, %v914
    %v934 = vpack.c.b16 %v917, %v916
    %v935 = vpack.c.b16 %v919, %v918
    %952 = vmatpush.bf16.msra.mxu0 %v927
    %953 = vmatpush.bf16.msra.mxu0 %v926
    %954 = vmatpush.bf16.msra.mxu0 %v925
    %955 = vmatpush.bf16.msra.mxu0 %v924
    %956 = vmatpush.bf16.msra.mxu0 %v923
    %957 = vmatpush.bf16.msra.mxu0 %v922
    %958 = vmatpush.bf16.msra.mxu0 %v921
    %959 = vmatpush.bf16.msra.mxu0 %v920
    %960 = vmatmul.bf16.gmra.mxu0 %v488
    %v961 = vpop.f32.mrf.mxu0
    %v962 = vadd.f32 0.0, %v961
    %v963 = vpop.f32.mrf.mxu0
    %v964 = vadd.f32 0.0, %v963
    %965 = vmatmul.bf16.gmra.mxu0 %v490
    %v966 = vpop.f32.mrf.mxu0
    %v967 = vadd.f32 0.0, %v966
    %v968 = vpop.f32.mrf.mxu0
    %v969 = vadd.f32 0.0, %v968
    %970 = vdwg.mxu0
    %971 = vmatpush.bf16.msra.mxu0 %v935
    %972 = vmatpush.bf16.msra.mxu0 %v934
    %973 = vmatpush.bf16.msra.mxu0 %v933
    %974 = vmatpush.bf16.msra.mxu0 %v932
    %975 = vmatpush.bf16.msra.mxu0 %v931
    %976 = vmatpush.bf16.msra.mxu0 %v930
    %977 = vmatpush.bf16.msra.mxu0 %v929
    %978 = vmatpush.bf16.msra.mxu0 %v928
    %979 = vmatmul.bf16.gmra.mxu0 %v489
    %v980 = vpop.f32.mrf.mxu0
    %v981 = vadd.f32 %v962, %v980
    %v982 = vpop.f32.mrf.mxu0
    %v983 = vadd.f32 %v964, %v982
    %984 = vmatmul.bf16.gmra.mxu0 %v491
    %v985 = vpop.f32.mrf.mxu0
    %v986 = vadd.f32 %v967, %v985
    %v987 = vpop.f32.mrf.mxu0
    %v988 = vadd.f32 %v969, %v987
    %989 = vdwg.mxu0
    %v990 = vadd.f32 %v847, %v981
    %v991 = vadd.f32 %v849, %v983
    %v992 = vadd.f32 %v852, %v986
    %v993 = vadd.f32 %v854, %v988
    %v994 = vld [vmem:[#allocation7 + $0x130] ss:$0 sm:$0xff]
    %v995 = vadd.f32 %v990, %v994
    %v996 = vadd.f32 %v991, %v994
    %v997 = vadd.f32 %v992, %v994
    %v998 = vadd.f32 %v993, %v994
    %v999 = vmax.f32 %v995, 0.0
    %v1000 = vmax.f32 %v996, 0.0
    %v1001 = vmax.f32 %v997, 0.0
    %v1002 = vmax.f32 %v998, 0.0
    %v1003 = vrot.slane %v999, 7
    %v1004 = vrot.slane %v1000, 7
    %v1005 = vrot.slane %v1001, 7
    %v1006 = vrot.slane %v1002, 7
    %v1007 = vsel %vm128, %v1005, %v1006
    %v1008 = vsel %vm128, %v1004, %v1005
    %v1009 = vsel %vm128, %v1003, %v1004
    %v1010 = vsel %vm128, %v1006, %v1003
    %v1011 = vsel %vm120, 0.0, %v1010
    %v1012 = vsel %vm121, 0.0, %v1009
    %v1013 = vsel %vm122, 0.0, %v1008
    %v1014 = vsel %vm123, 0.0, %v1007
    %v1015 = vrot.slane %v999, 1
    %v1016 = vrot.slane %v1000, 1
    %v1017 = vrot.slane %v1001, 1
    %v1018 = vrot.slane %v1002, 1
    %v1019 = vsel %vm145, %v1017, %v1018
    %v1020 = vsel %vm145, %v1016, %v1017
    %v1021 = vsel %vm145, %v1015, %v1016
    %v1022 = vsel %vm145, %v1018, %v1015
    %v1023 = vsel %vm137, 0.0, %v1021
    %v1024 = vsel %vm138, 0.0, %v1020
    %v1025 = vsel %vm139, 0.0, %v1019
    %v1026 = vsel %vm140, 0.0, %v1022
    %v1027 = vpack.c.bf16 %v1000, %v999
    %v1028 = vpack.c.bf16 %v1002, %v1001
    %v1029 = vpack.c.bf16 %v1012, %v1011
    %v1030 = vpack.c.bf16 %v1014, %v1013
    %v1031 = vpack.c.bf16 %v1024, %v1023
    %v1032 = vpack.c.bf16 %v1026, %v1025
    %v1033 = vld [vmem:[#allocation5 + $0x180] sm:$0xf]
    %v1034 = vld [vmem:[#allocation5 + $0x184] sm:$0xf]
    %v1035 = vld [vmem:[#allocation5 + $0x188] sm:$0xf]
    %v1036 = vld [vmem:[#allocation5 + $0x18c] sm:$0xf]
    %v1037 = vld [vmem:[#allocation5 + $0x190] sm:$0xf]
    %v1038 = vld [vmem:[#allocation5 + $0x194] sm:$0xf]
    %v1039 = vld [vmem:[#allocation5 + $0x198] sm:$0xf]
    %v1040 = vld [vmem:[#allocation5 + $0x19c] sm:$0xf]
    %v1041 = vld [vmem:[#allocation5 + $0x1a0] sm:$0xf]
    %v1042 = vld [vmem:[#allocation5 + $0x1a4] sm:$0xf]
    %v1043 = vld [vmem:[#allocation5 + $0x1a8] sm:$0xf]
    %v1044 = vld [vmem:[#allocation5 + $0x1ac] sm:$0xf]
    %v1045 = vld [vmem:[#allocation5 + $0x1b0] sm:$0xf]
    %v1046 = vld [vmem:[#allocation5 + $0x1b4] sm:$0xf]
    %v1047 = vld [vmem:[#allocation5 + $0x1b8] sm:$0xf]
    %v1048 = vld [vmem:[#allocation5 + $0x1bc] sm:$0xf]
    %v1049 = vld [vmem:[#allocation5 + $0x1c0] sm:$0xf]
    %v1050 = vld [vmem:[#allocation5 + $0x1c4] sm:$0xf]
    %v1051 = vld [vmem:[#allocation5 + $0x1c8] sm:$0xf]
    %v1052 = vld [vmem:[#allocation5 + $0x1cc] sm:$0xf]
    %v1053 = vld [vmem:[#allocation5 + $0x1d0] sm:$0xf]
    %v1054 = vld [vmem:[#allocation5 + $0x1d4] sm:$0xf]
    %v1055 = vld [vmem:[#allocation5 + $0x1d8] sm:$0xf]
    %v1056 = vld [vmem:[#allocation5 + $0x1dc] sm:$0xf]
    %v1065 = vunpack.c.l.b16 %v1033
    %v1066 = vunpack.c.l.b16 %v1034
    %v1067 = vunpack.c.l.b16 %v1035
    %v1068 = vunpack.c.l.b16 %v1036
    %v1069 = vunpack.c.l.b16 %v1037
    %v1070 = vunpack.c.l.b16 %v1038
    %v1071 = vunpack.c.l.b16 %v1039
    %v1072 = vunpack.c.l.b16 %v1040
    %v1073 = vpack.c.b16 %v1066, %v1065
    %v1074 = vpack.c.b16 %v1068, %v1067
    %v1075 = vpack.c.b16 %v1070, %v1069
    %v1076 = vpack.c.b16 %v1072, %v1071
    %vm1081 = vcmask 523264
    %v1083 = vsel %vm1081, %v1029, 0
    %v1086 = vsel %vm1081, %v1030, 0
    %1088 = vmatpush.bf16.msra.mxu0 0
    %1089 = vmatpush.bf16.msra.mxu0 0
    %1090 = vmatpush.bf16.msra.mxu0 0
    %1091 = vmatpush.bf16.msra.mxu0 0
    %1092 = vmatpush.bf16.msra.mxu0 %v1076
    %1093 = vmatpush.bf16.msra.mxu0 %v1075
    %1094 = vmatpush.bf16.msra.mxu0 %v1074
    %1095 = vmatpush.bf16.msra.mxu0 %v1073
    %1096 = vmatmul.bf16.gmra.mxu0 %v1083
    %v1097 = vpop.f32.mrf.mxu0
    %v1098 = vadd.f32 0.0, %v1097
    %v1099 = vpop.f32.mrf.mxu0
    %v1100 = vadd.f32 0.0, %v1099
    %1101 = vmatmul.bf16.gmra.mxu0 %v1086
    %v1102 = vpop.f32.mrf.mxu0
    %v1103 = vadd.f32 0.0, %v1102
    %v1104 = vpop.f32.mrf.mxu0
    %v1105 = vadd.f32 0.0, %v1104
    %1106 = vdwg.mxu0
    %v1115 = vunpack.c.l.b16 %v1041
    %v1116 = vunpack.c.l.b16 %v1042
    %v1117 = vunpack.c.l.b16 %v1043
    %v1118 = vunpack.c.l.b16 %v1044
    %v1119 = vunpack.c.l.b16 %v1045
    %v1120 = vunpack.c.l.b16 %v1046
    %v1121 = vunpack.c.l.b16 %v1047
    %v1122 = vunpack.c.l.b16 %v1048
    %v1123 = vpack.c.b16 %v1116, %v1115
    %v1124 = vpack.c.b16 %v1118, %v1117
    %v1125 = vpack.c.b16 %v1120, %v1119
    %v1126 = vpack.c.b16 %v1122, %v1121
    %v1132 = vsel %vm1081, %v1027, 0
    %v1135 = vsel %vm1081, %v1028, 0
    %1137 = vmatpush.bf16.msra.mxu0 0
    %1138 = vmatpush.bf16.msra.mxu0 0
    %1139 = vmatpush.bf16.msra.mxu0 0
    %1140 = vmatpush.bf16.msra.mxu0 0
    %1141 = vmatpush.bf16.msra.mxu0 %v1126
    %1142 = vmatpush.bf16.msra.mxu0 %v1125
    %1143 = vmatpush.bf16.msra.mxu0 %v1124
    %1144 = vmatpush.bf16.msra.mxu0 %v1123
    %1145 = vmatmul.bf16.gmra.mxu0 %v1132
    %v1146 = vpop.f32.mrf.mxu0
    %v1147 = vadd.f32 %v1098, %v1146
    %v1148 = vpop.f32.mrf.mxu0
    %v1149 = vadd.f32 %v1100, %v1148
    %1150 = vmatmul.bf16.gmra.mxu0 %v1135
    %v1151 = vpop.f32.mrf.mxu0
    %v1152 = vadd.f32 %v1103, %v1151
    %v1153 = vpop.f32.mrf.mxu0
    %v1154 = vadd.f32 %v1105, %v1153
    %1155 = vdwg.mxu0
    %v1164 = vunpack.c.l.b16 %v1049
    %v1165 = vunpack.c.l.b16 %v1050
    %v1166 = vunpack.c.l.b16 %v1051
    %v1167 = vunpack.c.l.b16 %v1052
    %v1168 = vunpack.c.l.b16 %v1053
    %v1169 = vunpack.c.l.b16 %v1054
    %v1170 = vunpack.c.l.b16 %v1055
    %v1171 = vunpack.c.l.b16 %v1056
    %v1172 = vpack.c.b16 %v1165, %v1164
    %v1173 = vpack.c.b16 %v1167, %v1166
    %v1174 = vpack.c.b16 %v1169, %v1168
    %v1175 = vpack.c.b16 %v1171, %v1170
    %v1181 = vsel %vm1081, %v1031, 0
    %v1184 = vsel %vm1081, %v1032, 0
    %1186 = vmatpush.bf16.msra.mxu0 0
    %1187 = vmatpush.bf16.msra.mxu0 0
    %1188 = vmatpush.bf16.msra.mxu0 0
    %1189 = vmatpush.bf16.msra.mxu0 0
    %1190 = vmatpush.bf16.msra.mxu0 %v1175
    %1191 = vmatpush.bf16.msra.mxu0 %v1174
    %1192 = vmatpush.bf16.msra.mxu0 %v1173
    %1193 = vmatpush.bf16.msra.mxu0 %v1172
    %1194 = vmatmul.bf16.gmra.mxu0 %v1181
    %v1195 = vpop.f32.mrf.mxu0
    %v1196 = vadd.f32 0.0, %v1195
    %v1197 = vpop.f32.mrf.mxu0
    %v1198 = vadd.f32 0.0, %v1197
    %1199 = vmatmul.bf16.gmra.mxu0 %v1184
    %v1200 = vpop.f32.mrf.mxu0
    %v1201 = vadd.f32 0.0, %v1200
    %v1202 = vpop.f32.mrf.mxu0
    %v1203 = vadd.f32 0.0, %v1202
    %1204 = vdwg.mxu0
    %v1205 = vadd.f32 %v1147, %v1196
    %v1206 = vadd.f32 %v1149, %v1198
    %v1207 = vadd.f32 %v1152, %v1201
    %v1208 = vadd.f32 %v1154, %v1203
    %v1209 = vld [vmem:[#allocation7 + $0x140] ss:$0 sm:$0xff]
    %v1210 = vadd.f32 %v1205, %v1209
    %v1211 = vadd.f32 %v1206, %v1209
    %v1212 = vadd.f32 %v1207, %v1209
    %v1213 = vadd.f32 %v1208, %v1209
    %v1214 = vmax.f32 %v1210, 0.0
    %v1215 = vmax.f32 %v1211, 0.0
    %v1216 = vmax.f32 %v1212, 0.0
    %v1217 = vmax.f32 %v1213, 0.0
    %v1218 = vrot.slane %v1214, 7
    %v1219 = vrot.slane %v1215, 7
    %v1220 = vrot.slane %v1216, 7
    %v1221 = vrot.slane %v1217, 7
    %v1222 = vsel %vm128, %v1220, %v1221
    %v1223 = vsel %vm128, %v1219, %v1220
    %v1224 = vsel %vm128, %v1218, %v1219
    %v1225 = vsel %vm128, %v1221, %v1218
    %v1226 = vsel %vm120, 0.0, %v1225
    %v1227 = vsel %vm121, 0.0, %v1224
    %v1228 = vsel %vm122, 0.0, %v1223
    %v1229 = vsel %vm123, 0.0, %v1222
    %v1230 = vrot.slane %v1214, 1
    %v1231 = vrot.slane %v1215, 1
    %v1232 = vrot.slane %v1216, 1
    %v1233 = vrot.slane %v1217, 1
    %v1234 = vsel %vm145, %v1232, %v1233
    %v1235 = vsel %vm145, %v1231, %v1232
    %v1236 = vsel %vm145, %v1230, %v1231
    %v1237 = vsel %vm145, %v1233, %v1230
    %v1238 = vsel %vm137, 0.0, %v1236
    %v1239 = vsel %vm138, 0.0, %v1235
    %v1240 = vsel %vm139, 0.0, %v1234
    %v1241 = vsel %vm140, 0.0, %v1237
    %v1242 = vpack.c.bf16 %v1215, %v1214
    %v1243 = vpack.c.bf16 %v1217, %v1216
    %v1244 = vpack.c.bf16 %v1227, %v1226
    %v1245 = vpack.c.bf16 %v1229, %v1228
    %v1246 = vpack.c.bf16 %v1239, %v1238
    %v1247 = vpack.c.bf16 %v1241, %v1240
    %v1248 = vld [vmem:[#allocation5 + $0x1e0] sm:$0xf]
    %v1249 = vld [vmem:[#allocation5 + $0x1e4] sm:$0xf]
    %v1250 = vld [vmem:[#allocation5 + $0x1e8] sm:$0xf]
    %v1251 = vld [vmem:[#allocation5 + $0x1ec] sm:$0xf]
    %v1252 = vld [vmem:[#allocation5 + $0x1f0] sm:$0xf]
    %v1253 = vld [vmem:[#allocation5 + $0x1f4] sm:$0xf]
    %v1254 = vld [vmem:[#allocation5 + $0x1f8] sm:$0xf]
    %v1255 = vld [vmem:[#allocation5 + $0x1fc] sm:$0xf]
    %v1256 = vld [vmem:[#allocation5 + $0x200] sm:$0xf]
    %v1257 = vld [vmem:[#allocation5 + $0x204] sm:$0xf]
    %v1258 = vld [vmem:[#allocation5 + $0x208] sm:$0xf]
    %v1259 = vld [vmem:[#allocation5 + $0x20c] sm:$0xf]
    %v1260 = vld [vmem:[#allocation5 + $0x210] sm:$0xf]
    %v1261 = vld [vmem:[#allocation5 + $0x214] sm:$0xf]
    %v1262 = vld [vmem:[#allocation5 + $0x218] sm:$0xf]
    %v1263 = vld [vmem:[#allocation5 + $0x21c] sm:$0xf]
    %v1264 = vld [vmem:[#allocation5 + $0x220] sm:$0xf]
    %v1265 = vld [vmem:[#allocation5 + $0x224] sm:$0xf]
    %v1266 = vld [vmem:[#allocation5 + $0x228] sm:$0xf]
    %v1267 = vld [vmem:[#allocation5 + $0x22c] sm:$0xf]
    %v1268 = vld [vmem:[#allocation5 + $0x230] sm:$0xf]
    %v1269 = vld [vmem:[#allocation5 + $0x234] sm:$0xf]
    %v1270 = vld [vmem:[#allocation5 + $0x238] sm:$0xf]
    %v1271 = vld [vmem:[#allocation5 + $0x23c] sm:$0xf]
    %v1280 = vunpack.c.l.b16 %v1248
    %v1281 = vunpack.c.l.b16 %v1249
    %v1282 = vunpack.c.l.b16 %v1250
    %v1283 = vunpack.c.l.b16 %v1251
    %v1284 = vunpack.c.l.b16 %v1252
    %v1285 = vunpack.c.l.b16 %v1253
    %v1286 = vunpack.c.l.b16 %v1254
    %v1287 = vunpack.c.l.b16 %v1255
    %v1288 = vpack.c.b16 %v1281, %v1280
    %v1289 = vpack.c.b16 %v1283, %v1282
    %v1290 = vpack.c.b16 %v1285, %v1284
    %v1291 = vpack.c.b16 %v1287, %v1286
    %v1297 = vsel %vm1081, %v1244, 0
    %v1300 = vsel %vm1081, %v1245, 0
    %1302 = vmatpush.bf16.msra.mxu0 0
    %1303 = vmatpush.bf16.msra.mxu0 0
    %1304 = vmatpush.bf16.msra.mxu0 0
    %1305 = vmatpush.bf16.msra.mxu0 0
    %1306 = vmatpush.bf16.msra.mxu0 %v1291
    %1307 = vmatpush.bf16.msra.mxu0 %v1290
    %1308 = vmatpush.bf16.msra.mxu0 %v1289
    %1309 = vmatpush.bf16.msra.mxu0 %v1288
    %1310 = vmatmul.bf16.gmra.mxu0 %v1297
    %v1311 = vpop.f32.mrf.mxu0
    %v1312 = vadd.f32 0.0, %v1311
    %v1313 = vpop.f32.mrf.mxu0
    %v1314 = vadd.f32 0.0, %v1313
    %1315 = vmatmul.bf16.gmra.mxu0 %v1300
    %v1316 = vpop.f32.mrf.mxu0
    %v1317 = vadd.f32 0.0, %v1316
    %v1318 = vpop.f32.mrf.mxu0
    %v1319 = vadd.f32 0.0, %v1318
    %1320 = vdwg.mxu0
    %v1329 = vunpack.c.l.b16 %v1256
    %v1330 = vunpack.c.l.b16 %v1257
    %v1331 = vunpack.c.l.b16 %v1258
    %v1332 = vunpack.c.l.b16 %v1259
    %v1333 = vunpack.c.l.b16 %v1260
    %v1334 = vunpack.c.l.b16 %v1261
    %v1335 = vunpack.c.l.b16 %v1262
    %v1336 = vunpack.c.l.b16 %v1263
    %v1337 = vpack.c.b16 %v1330, %v1329
    %v1338 = vpack.c.b16 %v1332, %v1331
    %v1339 = vpack.c.b16 %v1334, %v1333
    %v1340 = vpack.c.b16 %v1336, %v1335
    %v1346 = vsel %vm1081, %v1242, 0
    %v1349 = vsel %vm1081, %v1243, 0
    %1351 = vmatpush.bf16.msra.mxu0 0
    %1352 = vmatpush.bf16.msra.mxu0 0
    %1353 = vmatpush.bf16.msra.mxu0 0
    %1354 = vmatpush.bf16.msra.mxu0 0
    %1355 = vmatpush.bf16.msra.mxu0 %v1340
    %1356 = vmatpush.bf16.msra.mxu0 %v1339
    %1357 = vmatpush.bf16.msra.mxu0 %v1338
    %1358 = vmatpush.bf16.msra.mxu0 %v1337
    %1359 = vmatmul.bf16.gmra.mxu0 %v1346
    %v1360 = vpop.f32.mrf.mxu0
    %v1361 = vadd.f32 %v1312, %v1360
    %v1362 = vpop.f32.mrf.mxu0
    %v1363 = vadd.f32 %v1314, %v1362
    %1364 = vmatmul.bf16.gmra.mxu0 %v1349
    %v1365 = vpop.f32.mrf.mxu0
    %v1366 = vadd.f32 %v1317, %v1365
    %v1367 = vpop.f32.mrf.mxu0
    %v1368 = vadd.f32 %v1319, %v1367
    %1369 = vdwg.mxu0
    %v1378 = vunpack.c.l.b16 %v1264
    %v1379 = vunpack.c.l.b16 %v1265
    %v1380 = vunpack.c.l.b16 %v1266
    %v1381 = vunpack.c.l.b16 %v1267
    %v1382 = vunpack.c.l.b16 %v1268
    %v1383 = vunpack.c.l.b16 %v1269
    %v1384 = vunpack.c.l.b16 %v1270
    %v1385 = vunpack.c.l.b16 %v1271
    %v1386 = vpack.c.b16 %v1379, %v1378
    %v1387 = vpack.c.b16 %v1381, %v1380
    %v1388 = vpack.c.b16 %v1383, %v1382
    %v1389 = vpack.c.b16 %v1385, %v1384
    %v1395 = vsel %vm1081, %v1246, 0
    %v1398 = vsel %vm1081, %v1247, 0
    %1400 = vmatpush.bf16.msra.mxu0 0
    %1401 = vmatpush.bf16.msra.mxu0 0
    %1402 = vmatpush.bf16.msra.mxu0 0
    %1403 = vmatpush.bf16.msra.mxu0 0
    %1404 = vmatpush.bf16.msra.mxu0 %v1389
    %1405 = vmatpush.bf16.msra.mxu0 %v1388
    %1406 = vmatpush.bf16.msra.mxu0 %v1387
    %1407 = vmatpush.bf16.msra.mxu0 %v1386
    %1408 = vmatmul.bf16.gmra.mxu0 %v1395
    %v1409 = vpop.f32.mrf.mxu0
    %v1410 = vadd.f32 0.0, %v1409
    %v1411 = vpop.f32.mrf.mxu0
    %v1412 = vadd.f32 0.0, %v1411
    %1413 = vmatmul.bf16.gmra.mxu0 %v1398
    %v1414 = vpop.f32.mrf.mxu0
    %v1415 = vadd.f32 0.0, %v1414
    %v1416 = vpop.f32.mrf.mxu0
    %v1417 = vadd.f32 0.0, %v1416
    %1418 = vdwg.mxu0
    %v1419 = vadd.f32 %v1361, %v1410
    %v1420 = vadd.f32 %v1363, %v1412
    %v1421 = vadd.f32 %v1366, %v1415
    %v1422 = vadd.f32 %v1368, %v1417
    %v1423 = vld [vmem:[#allocation7 + $0x150] ss:$0 sm:$0xff]
    %v1424 = vadd.f32 %v1419, %v1423
    %v1425 = vadd.f32 %v1420, %v1423
    %v1426 = vadd.f32 %v1421, %v1423
    %v1427 = vadd.f32 %v1422, %v1423
    %v1428 = vadd.f32 %v999, %v1424
    %v1429 = vadd.f32 %v1000, %v1425
    %v1430 = vadd.f32 %v1001, %v1426
    %v1431 = vadd.f32 %v1002, %v1427
    %v1432 = vld [vmem:[#allocation7 + $0x160] sm:$0xff]
    %v1433 = vld [vmem:[#allocation7 + $0x170] sm:$0xff]
    %vm1434 = vcmask 261120
    %v1436 = vsel %vm1434, %v1432, 0
    %v1439 = vsel %vm1434, %v1433, 0
    %1441 = vmatpush.msra.mxu0 0.0
    %1442 = vmatpush.msra.mxu0 0.0
    %1443 = vmatpush.msra.mxu0 0.0
    %1444 = vmatpush.msra.mxu0 0.0
    %1445 = vmatpush.msra.mxu0 0.0
    %1446 = vmatpush.msra.mxu0 0.0
    %1447 = vmatpush.msra.mxu0 0.0
    %1448 = vmatpush.msra.mxu0 0.0
    %1449 = vmatpush.msra.mxu0 0.0
    %1450 = vmatpush.msra.mxu0 0.0
    %1451 = vmatpush.msra.mxu0 0.0
    %1452 = vmatpush.msra.mxu0 0.0
    %1453 = vmatpush.msra.mxu0 %v1431
    %1454 = vmatpush.msra.mxu0 %v1430
    %1455 = vmatpush.msra.mxu0 %v1429
    %1456 = vmatpush.msra.mxu0 %v1428
    %1457 = vmatmul.f32.gmra.mxu0 %v1436
    %v1458 = vpop.f32.mrf.mxu0
    %v1459 = vadd.f32 0.0, %v1458
    %1460 = vmatmul.f32.gmra.mxu0 %v1439
    %v1461 = vpop.f32.mrf.mxu0
    %v1462 = vadd.f32 0.0, %v1461
    %1463 = vdwg.mxu0
    %v1464 = vpack.c.bf16 %v1462, %v1459
    %v1465 = vld [vmem:[#allocation5 + $0x240] sm:$0xf]
    %v1466 = vld [vmem:[#allocation5 + $0x244] sm:$0xf]
    %v1467 = vld [vmem:[#allocation5 + $0x248] sm:$0xf]
    %v1468 = vld [vmem:[#allocation5 + $0x24c] sm:$0xf]
    %v1469 = vld [vmem:[#allocation5 + $0x250] sm:$0xf]
    %v1470 = vld [vmem:[#allocation5 + $0x254] sm:$0xf]
    %v1471 = vld [vmem:[#allocation5 + $0x258] sm:$0xf]
    %v1472 = vld [vmem:[#allocation5 + $0x25c] sm:$0xf]
    %v1473 = vld [vmem:[#allocation7 + $0x180] ss:$0 sm:$0xff]
    %v1482 = vunpack.c.l.b16 %v1465
    %v1483 = vunpack.c.l.b16 %v1466
    %v1484 = vunpack.c.l.b16 %v1467
    %v1485 = vunpack.c.l.b16 %v1468
    %v1486 = vunpack.c.l.b16 %v1469
    %v1487 = vunpack.c.l.b16 %v1470
    %v1488 = vunpack.c.l.b16 %v1471
    %v1489 = vunpack.c.l.b16 %v1472
    %v1490 = vpack.c.b16 %v1483, %v1482
    %v1491 = vpack.c.b16 %v1485, %v1484
    %v1492 = vpack.c.b16 %v1487, %v1486
    %v1493 = vpack.c.b16 %v1489, %v1488
    %v1499 = vsel %vm1081, %v1464, 0
    %1501 = vmatpush.bf16.msra.mxu0 0
    %1502 = vmatpush.bf16.msra.mxu0 0
    %1503 = vmatpush.bf16.msra.mxu0 0
    %1504 = vmatpush.bf16.msra.mxu0 0
    %1505 = vmatpush.bf16.msra.mxu0 %v1493
    %1506 = vmatpush.bf16.msra.mxu0 %v1492
    %1507 = vmatpush.bf16.msra.mxu0 %v1491
    %1508 = vmatpush.bf16.msra.mxu0 %v1490
    %1509 = vmatmul.bf16.gmra.mxu0 %v1499
    %v1510 = vpop.f32.mrf.mxu0
    %v1511 = vadd.f32 %v1473, %v1510
    %v1512 = vpop.f32.mrf.mxu0
    %v1513 = vadd.f32 %v1473, %v1512
    %1514 = vdwg.mxu0
    %v1515 = vrot.slane %v1428, 7
    %v1516 = vrot.slane %v1429, 7
    %v1517 = vrot.slane %v1430, 7
    %v1518 = vrot.slane %v1431, 7
    %v1519 = vsel %vm128, %v1517, %v1518
    %v1520 = vsel %vm128, %v1516, %v1517
    %v1521 = vsel %vm128, %v1515, %v1516
    %v1522 = vsel %vm128, %v1518, %v1515
    %v1523 = vsel %vm120, 0.0, %v1522
    %v1524 = vsel %vm121, 0.0, %v1521
    %v1525 = vsel %vm122, 0.0, %v1520
    %v1526 = vsel %vm123, 0.0, %v1519
    %v1527 = vrot.slane %v1428, 1
    %v1528 = vrot.slane %v1429, 1
    %v1529 = vrot.slane %v1430, 1
    %v1530 = vrot.slane %v1431, 1
    %v1531 = vsel %vm145, %v1529, %v1530
    %v1532 = vsel %vm145, %v1528, %v1529
    %v1533 = vsel %vm145, %v1527, %v1528
    %v1534 = vsel %vm145, %v1530, %v1527
    %v1535 = vsel %vm137, 0.0, %v1533
    %v1536 = vsel %vm138, 0.0, %v1532
    %v1537 = vsel %vm139, 0.0, %v1531
    %v1538 = vsel %vm140, 0.0, %v1534
    %v1539 = vpack.c.bf16 %v1429, %v1428
    %v1540 = vpack.c.bf16 %v1431, %v1430
    %v1541 = vpack.c.bf16 %v1524, %v1523
    %v1542 = vpack.c.bf16 %v1526, %v1525
    %v1543 = vpack.c.bf16 %v1536, %v1535
    %v1544 = vpack.c.bf16 %v1538, %v1537
    %v1545 = vld [vmem:[#allocation5 + $0x260] sm:$0xf]
    %v1546 = vld [vmem:[#allocation5 + $0x264] sm:$0xf]
    %v1547 = vld [vmem:[#allocation5 + $0x268] sm:$0xf]
    %v1548 = vld [vmem:[#allocation5 + $0x26c] sm:$0xf]
    %v1549 = vld [vmem:[#allocation5 + $0x270] sm:$0xf]
    %v1550 = vld [vmem:[#allocation5 + $0x274] sm:$0xf]
    %v1551 = vld [vmem:[#allocation5 + $0x278] sm:$0xf]
    %v1552 = vld [vmem:[#allocation5 + $0x27c] sm:$0xf]
    %v1553 = vld [vmem:[#allocation5 + $0x280] sm:$0xf]
    %v1554 = vld [vmem:[#allocation5 + $0x284] sm:$0xf]
    %v1555 = vld [vmem:[#allocation5 + $0x288] sm:$0xf]
    %v1556 = vld [vmem:[#allocation5 + $0x28c] sm:$0xf]
    %v1557 = vld [vmem:[#allocation5 + $0x290] sm:$0xf]
    %v1558 = vld [vmem:[#allocation5 + $0x294] sm:$0xf]
    %v1559 = vld [vmem:[#allocation5 + $0x298] sm:$0xf]
    %v1560 = vld [vmem:[#allocation5 + $0x29c] sm:$0xf]
    %v1561 = vld [vmem:[#allocation5 + $0x2a0] sm:$0xf]
    %v1562 = vld [vmem:[#allocation5 + $0x2a4] sm:$0xf]
    %v1563 = vld [vmem:[#allocation5 + $0x2a8] sm:$0xf]
    %v1564 = vld [vmem:[#allocation5 + $0x2ac] sm:$0xf]
    %v1565 = vld [vmem:[#allocation5 + $0x2b0] sm:$0xf]
    %v1566 = vld [vmem:[#allocation5 + $0x2b4] sm:$0xf]
    %v1567 = vld [vmem:[#allocation5 + $0x2b8] sm:$0xf]
    %v1568 = vld [vmem:[#allocation5 + $0x2bc] sm:$0xf]
    %v1577 = vunpack.c.l.b16 %v1545
    %v1578 = vunpack.c.l.b16 %v1546
    %v1579 = vunpack.c.l.b16 %v1547
    %v1580 = vunpack.c.l.b16 %v1548
    %v1581 = vunpack.c.l.b16 %v1549
    %v1582 = vunpack.c.l.b16 %v1550
    %v1583 = vunpack.c.l.b16 %v1551
    %v1584 = vunpack.c.l.b16 %v1552
    %v1585 = vpack.c.b16 %v1578, %v1577
    %v1586 = vpack.c.b16 %v1580, %v1579
    %v1587 = vpack.c.b16 %v1582, %v1581
    %v1588 = vpack.c.b16 %v1584, %v1583
    %v1594 = vsel %vm1081, %v1541, 0
    %v1597 = vsel %vm1081, %v1542, 0
    %1599 = vmatpush.bf16.msra.mxu0 0
    %1600 = vmatpush.bf16.msra.mxu0 0
    %1601 = vmatpush.bf16.msra.mxu0 0
    %1602 = vmatpush.bf16.msra.mxu0 0
    %1603 = vmatpush.bf16.msra.mxu0 %v1588
    %1604 = vmatpush.bf16.msra.mxu0 %v1587
    %1605 = vmatpush.bf16.msra.mxu0 %v1586
    %1606 = vmatpush.bf16.msra.mxu0 %v1585
    %1607 = vmatmul.bf16.gmra.mxu0 %v1594
    %v1608 = vpop.f32.mrf.mxu0
    %v1609 = vadd.f32 0.0, %v1608
    %v1610 = vpop.f32.mrf.mxu0
    %v1611 = vadd.f32 0.0, %v1610
    %1612 = vmatmul.bf16.gmra.mxu0 %v1597
    %v1613 = vpop.f32.mrf.mxu0
    %v1614 = vadd.f32 0.0, %v1613
    %v1615 = vpop.f32.mrf.mxu0
    %v1616 = vadd.f32 0.0, %v1615
    %1617 = vdwg.mxu0
    %v1626 = vunpack.c.l.b16 %v1553
    %v1627 = vunpack.c.l.b16 %v1554
    %v1628 = vunpack.c.l.b16 %v1555
    %v1629 = vunpack.c.l.b16 %v1556
    %v1630 = vunpack.c.l.b16 %v1557
    %v1631 = vunpack.c.l.b16 %v1558
    %v1632 = vunpack.c.l.b16 %v1559
    %v1633 = vunpack.c.l.b16 %v1560
    %v1634 = vpack.c.b16 %v1627, %v1626
    %v1635 = vpack.c.b16 %v1629, %v1628
    %v1636 = vpack.c.b16 %v1631, %v1630
    %v1637 = vpack.c.b16 %v1633, %v1632
    %v1643 = vsel %vm1081, %v1539, 0
    %v1646 = vsel %vm1081, %v1540, 0
    %1648 = vmatpush.bf16.msra.mxu0 0
    %1649 = vmatpush.bf16.msra.mxu0 0
    %1650 = vmatpush.bf16.msra.mxu0 0
    %1651 = vmatpush.bf16.msra.mxu0 0
    %1652 = vmatpush.bf16.msra.mxu0 %v1637
    %1653 = vmatpush.bf16.msra.mxu0 %v1636
    %1654 = vmatpush.bf16.msra.mxu0 %v1635
    %1655 = vmatpush.bf16.msra.mxu0 %v1634
    %1656 = vmatmul.bf16.gmra.mxu0 %v1643
    %v1657 = vpop.f32.mrf.mxu0
    %v1658 = vadd.f32 %v1609, %v1657
    %v1659 = vpop.f32.mrf.mxu0
    %v1660 = vadd.f32 %v1611, %v1659
    %1661 = vmatmul.bf16.gmra.mxu0 %v1646
    %v1662 = vpop.f32.mrf.mxu0
    %v1663 = vadd.f32 %v1614, %v1662
    %v1664 = vpop.f32.mrf.mxu0
    %v1665 = vadd.f32 %v1616, %v1664
    %1666 = vdwg.mxu0
    %v1675 = vunpack.c.l.b16 %v1561
    %v1676 = vunpack.c.l.b16 %v1562
    %v1677 = vunpack.c.l.b16 %v1563
    %v1678 = vunpack.c.l.b16 %v1564
    %v1679 = vunpack.c.l.b16 %v1565
    %v1680 = vunpack.c.l.b16 %v1566
    %v1681 = vunpack.c.l.b16 %v1567
    %v1682 = vunpack.c.l.b16 %v1568
    %v1683 = vpack.c.b16 %v1676, %v1675
    %v1684 = vpack.c.b16 %v1678, %v1677
    %v1685 = vpack.c.b16 %v1680, %v1679
    %v1686 = vpack.c.b16 %v1682, %v1681
    %v1692 = vsel %vm1081, %v1543, 0
    %v1695 = vsel %vm1081, %v1544, 0
    %1697 = vmatpush.bf16.msra.mxu0 0
    %1698 = vmatpush.bf16.msra.mxu0 0
    %1699 = vmatpush.bf16.msra.mxu0 0
    %1700 = vmatpush.bf16.msra.mxu0 0
    %1701 = vmatpush.bf16.msra.mxu0 %v1686
    %1702 = vmatpush.bf16.msra.mxu0 %v1685
    %1703 = vmatpush.bf16.msra.mxu0 %v1684
    %1704 = vmatpush.bf16.msra.mxu0 %v1683
    %1705 = vmatmul.bf16.gmra.mxu0 %v1692
    %v1706 = vpop.f32.mrf.mxu0
    %v1707 = vadd.f32 0.0, %v1706
    %v1708 = vpop.f32.mrf.mxu0
    %v1709 = vadd.f32 0.0, %v1708
    %1710 = vmatmul.bf16.gmra.mxu0 %v1695
    %v1711 = vpop.f32.mrf.mxu0
    %v1712 = vadd.f32 0.0, %v1711
    %v1713 = vpop.f32.mrf.mxu0
    %v1714 = vadd.f32 0.0, %v1713
    %1715 = vdwg.mxu0
    %v1716 = vadd.f32 %v1658, %v1707
    %v1717 = vadd.f32 %v1660, %v1709
    %v1718 = vadd.f32 %v1663, %v1712
    %v1719 = vadd.f32 %v1665, %v1714
    %v1720 = vld [vmem:[#allocation7 + $0x190] ss:$0 sm:$0xff]
    %v1721 = vadd.f32 %v1716, %v1720
    %v1722 = vadd.f32 %v1717, %v1720
    %v1723 = vadd.f32 %v1718, %v1720
    %v1724 = vadd.f32 %v1719, %v1720
    %v1725 = vmax.f32 %v1721, 0.0
    %v1726 = vmax.f32 %v1722, 0.0
    %v1727 = vmax.f32 %v1723, 0.0
    %v1728 = vmax.f32 %v1724, 0.0
    %v1729 = vrot.slane %v1725, 7
    %v1730 = vrot.slane %v1726, 7
    %v1731 = vrot.slane %v1727, 7
    %v1732 = vrot.slane %v1728, 7
    %v1733 = vsel %vm128, %v1731, %v1732
    %v1734 = vsel %vm128, %v1730, %v1731
    %v1735 = vsel %vm128, %v1729, %v1730
    %v1736 = vsel %vm128, %v1732, %v1729
    %v1737 = vsel %vm120, 0.0, %v1736
    %v1738 = vsel %vm121, 0.0, %v1735
    %v1739 = vsel %vm122, 0.0, %v1734
    %v1740 = vsel %vm123, 0.0, %v1733
    %v1741 = vrot.slane %v1725, 1
    %v1742 = vrot.slane %v1726, 1
    %v1743 = vrot.slane %v1727, 1
    %v1744 = vrot.slane %v1728, 1
    %v1745 = vsel %vm145, %v1743, %v1744
    %v1746 = vsel %vm145, %v1742, %v1743
    %v1747 = vsel %vm145, %v1741, %v1742
    %v1748 = vsel %vm145, %v1744, %v1741
    %v1749 = vsel %vm137, 0.0, %v1747
    %v1750 = vsel %vm138, 0.0, %v1746
    %v1751 = vsel %vm139, 0.0, %v1745
    %v1752 = vsel %vm140, 0.0, %v1748
    %v1753 = vpack.c.bf16 %v1726, %v1725
    %v1754 = vpack.c.bf16 %v1728, %v1727
    %v1755 = vpack.c.bf16 %v1738, %v1737
    %v1756 = vpack.c.bf16 %v1740, %v1739
    %v1757 = vpack.c.bf16 %v1750, %v1749
    %v1758 = vpack.c.bf16 %v1752, %v1751
    %v1759 = vld [vmem:[#allocation5 + $0x2c0] sm:$0xf]
    %v1760 = vld [vmem:[#allocation5 + $0x2c4] sm:$0xf]
    %v1761 = vld [vmem:[#allocation5 + $0x2c8] sm:$0xf]
    %v1762 = vld [vmem:[#allocation5 + $0x2cc] sm:$0xf]
    %v1763 = vld [vmem:[#allocation5 + $0x2d0] sm:$0xf]
    %v1764 = vld [vmem:[#allocation5 + $0x2d4] sm:$0xf]
    %v1765 = vld [vmem:[#allocation5 + $0x2d8] sm:$0xf]
    %v1766 = vld [vmem:[#allocation5 + $0x2dc] sm:$0xf]
    %v1767 = vld [vmem:[#allocation5 + $0x2e0] sm:$0xf]
    %v1768 = vld [vmem:[#allocation5 + $0x2e4] sm:$0xf]
    %v1769 = vld [vmem:[#allocation5 + $0x2e8] sm:$0xf]
    %v1770 = vld [vmem:[#allocation5 + $0x2ec] sm:$0xf]
    %v1771 = vld [vmem:[#allocation5 + $0x2f0] sm:$0xf]
    %v1772 = vld [vmem:[#allocation5 + $0x2f4] sm:$0xf]
    %v1773 = vld [vmem:[#allocation5 + $0x2f8] sm:$0xf]
    %v1774 = vld [vmem:[#allocation5 + $0x2fc] sm:$0xf]
    %v1775 = vld [vmem:[#allocation5 + $0x300] sm:$0xf]
    %v1776 = vld [vmem:[#allocation5 + $0x304] sm:$0xf]
    %v1777 = vld [vmem:[#allocation5 + $0x308] sm:$0xf]
    %v1778 = vld [vmem:[#allocation5 + $0x30c] sm:$0xf]
    %v1779 = vld [vmem:[#allocation5 + $0x310] sm:$0xf]
    %v1780 = vld [vmem:[#allocation5 + $0x314] sm:$0xf]
    %v1781 = vld [vmem:[#allocation5 + $0x318] sm:$0xf]
    %v1782 = vld [vmem:[#allocation5 + $0x31c] sm:$0xf]
    %v1791 = vunpack.c.l.b16 %v1759
    %v1792 = vunpack.c.l.b16 %v1760
    %v1793 = vunpack.c.l.b16 %v1761
    %v1794 = vunpack.c.l.b16 %v1762
    %v1795 = vunpack.c.l.b16 %v1763
    %v1796 = vunpack.c.l.b16 %v1764
    %v1797 = vunpack.c.l.b16 %v1765
    %v1798 = vunpack.c.l.b16 %v1766
    %v1799 = vpack.c.b16 %v1792, %v1791
    %v1800 = vpack.c.b16 %v1794, %v1793
    %v1801 = vpack.c.b16 %v1796, %v1795
    %v1802 = vpack.c.b16 %v1798, %v1797
    %v1808 = vsel %vm1081, %v1755, 0
    %v1811 = vsel %vm1081, %v1756, 0
    %1813 = vmatpush.bf16.msra.mxu0 0
    %1814 = vmatpush.bf16.msra.mxu0 0
    %1815 = vmatpush.bf16.msra.mxu0 0
    %1816 = vmatpush.bf16.msra.mxu0 0
    %1817 = vmatpush.bf16.msra.mxu0 %v1802
    %1818 = vmatpush.bf16.msra.mxu0 %v1801
    %1819 = vmatpush.bf16.msra.mxu0 %v1800
    %1820 = vmatpush.bf16.msra.mxu0 %v1799
    %1821 = vmatmul.bf16.gmra.mxu0 %v1808
    %v1822 = vpop.f32.mrf.mxu0
    %v1823 = vadd.f32 0.0, %v1822
    %v1824 = vpop.f32.mrf.mxu0
    %v1825 = vadd.f32 0.0, %v1824
    %1826 = vmatmul.bf16.gmra.mxu0 %v1811
    %v1827 = vpop.f32.mrf.mxu0
    %v1828 = vadd.f32 0.0, %v1827
    %v1829 = vpop.f32.mrf.mxu0
    %v1830 = vadd.f32 0.0, %v1829
    %1831 = vdwg.mxu0
    %v1840 = vunpack.c.l.b16 %v1767
    %v1841 = vunpack.c.l.b16 %v1768
    %v1842 = vunpack.c.l.b16 %v1769
    %v1843 = vunpack.c.l.b16 %v1770
    %v1844 = vunpack.c.l.b16 %v1771
    %v1845 = vunpack.c.l.b16 %v1772
    %v1846 = vunpack.c.l.b16 %v1773
    %v1847 = vunpack.c.l.b16 %v1774
    %v1848 = vpack.c.b16 %v1841, %v1840
    %v1849 = vpack.c.b16 %v1843, %v1842
    %v1850 = vpack.c.b16 %v1845, %v1844
    %v1851 = vpack.c.b16 %v1847, %v1846
    %v1857 = vsel %vm1081, %v1753, 0
    %v1860 = vsel %vm1081, %v1754, 0
    %1862 = vmatpush.bf16.msra.mxu0 0
    %1863 = vmatpush.bf16.msra.mxu0 0
    %1864 = vmatpush.bf16.msra.mxu0 0
    %1865 = vmatpush.bf16.msra.mxu0 0
    %1866 = vmatpush.bf16.msra.mxu0 %v1851
    %1867 = vmatpush.bf16.msra.mxu0 %v1850
    %1868 = vmatpush.bf16.msra.mxu0 %v1849
    %1869 = vmatpush.bf16.msra.mxu0 %v1848
    %1870 = vmatmul.bf16.gmra.mxu0 %v1857
    %v1871 = vpop.f32.mrf.mxu0
    %v1872 = vadd.f32 %v1823, %v1871
    %v1873 = vpop.f32.mrf.mxu0
    %v1874 = vadd.f32 %v1825, %v1873
    %1875 = vmatmul.bf16.gmra.mxu0 %v1860
    %v1876 = vpop.f32.mrf.mxu0
    %v1877 = vadd.f32 %v1828, %v1876
    %v1878 = vpop.f32.mrf.mxu0
    %v1879 = vadd.f32 %v1830, %v1878
    %1880 = vdwg.mxu0
    %v1889 = vunpack.c.l.b16 %v1775
    %v1890 = vunpack.c.l.b16 %v1776
    %v1891 = vunpack.c.l.b16 %v1777
    %v1892 = vunpack.c.l.b16 %v1778
    %v1893 = vunpack.c.l.b16 %v1779
    %v1894 = vunpack.c.l.b16 %v1780
    %v1895 = vunpack.c.l.b16 %v1781
    %v1896 = vunpack.c.l.b16 %v1782
    %v1897 = vpack.c.b16 %v1890, %v1889
    %v1898 = vpack.c.b16 %v1892, %v1891
    %v1899 = vpack.c.b16 %v1894, %v1893
    %v1900 = vpack.c.b16 %v1896, %v1895
    %v1906 = vsel %vm1081, %v1757, 0
    %v1909 = vsel %vm1081, %v1758, 0
    %1911 = vmatpush.bf16.msra.mxu0 0
    %1912 = vmatpush.bf16.msra.mxu0 0
    %1913 = vmatpush.bf16.msra.mxu0 0
    %1914 = vmatpush.bf16.msra.mxu0 0
    %1915 = vmatpush.bf16.msra.mxu0 %v1900
    %1916 = vmatpush.bf16.msra.mxu0 %v1899
    %1917 = vmatpush.bf16.msra.mxu0 %v1898
    %1918 = vmatpush.bf16.msra.mxu0 %v1897
    %1919 = vmatmul.bf16.gmra.mxu0 %v1906
    %v1920 = vpop.f32.mrf.mxu0
    %v1921 = vadd.f32 0.0, %v1920
    %v1922 = vpop.f32.mrf.mxu0
    %v1923 = vadd.f32 0.0, %v1922
    %1924 = vmatmul.bf16.gmra.mxu0 %v1909
    %v1925 = vpop.f32.mrf.mxu0
    %v1926 = vadd.f32 0.0, %v1925
    %v1927 = vpop.f32.mrf.mxu0
    %v1928 = vadd.f32 0.0, %v1927
    %1929 = vdwg.mxu0
    %v1930 = vadd.f32 %v1872, %v1921
    %v1931 = vadd.f32 %v1874, %v1923
    %v1932 = vadd.f32 %v1877, %v1926
    %v1933 = vadd.f32 %v1879, %v1928
    %v1934 = vld [vmem:[#allocation7 + $0x1a0] ss:$0 sm:$0xff]
    %v1935 = vadd.f32 %v1930, %v1934
    %v1936 = vadd.f32 %v1931, %v1934
    %v1937 = vadd.f32 %v1932, %v1934
    %v1938 = vadd.f32 %v1933, %v1934
    %v1939 = vld [vmem:[#allocation7 + $0x1b0] sm:$0xff]
    %v1940 = vld [vmem:[#allocation7 + $0x1c0] sm:$0xff]
    %v1942 = vsel %vm1434, %v1939, 0
    %v1945 = vsel %vm1434, %v1940, 0
    %1947 = vmatpush.msra.mxu0 0.0
    %1948 = vmatpush.msra.mxu0 0.0
    %1949 = vmatpush.msra.mxu0 0.0
    %1950 = vmatpush.msra.mxu0 0.0
    %1951 = vmatpush.msra.mxu0 0.0
    %1952 = vmatpush.msra.mxu0 0.0
    %1953 = vmatpush.msra.mxu0 0.0
    %1954 = vmatpush.msra.mxu0 0.0
    %1955 = vmatpush.msra.mxu0 0.0
    %1956 = vmatpush.msra.mxu0 0.0
    %1957 = vmatpush.msra.mxu0 0.0
    %1958 = vmatpush.msra.mxu0 0.0
    %1959 = vmatpush.msra.mxu0 %v1938
    %1960 = vmatpush.msra.mxu0 %v1937
    %1961 = vmatpush.msra.mxu0 %v1936
    %1962 = vmatpush.msra.mxu0 %v1935
    %1963 = vmatmul.f32.gmra.mxu0 %v1942
    %v1964 = vpop.f32.mrf.mxu0
    %v1965 = vadd.f32 0.0, %v1964
    %1966 = vmatmul.f32.gmra.mxu0 %v1945
    %v1967 = vpop.f32.mrf.mxu0
    %v1968 = vadd.f32 0.0, %v1967
    %1969 = vdwg.mxu0
    %v1970 = vld [vmem:[#allocation7 + $0x1d0] sm:$0xff]
    %v1971 = vld [vmem:[#allocation7 + $0x1e0] sm:$0xff]
    %v1972 = vld [vmem:[#allocation7 + $0x1f0] sm:$0xff]
    %v1973 = vld [vmem:[#allocation7 + $0x200] sm:$0xff]
    %v1974 = vld [vmem:[#allocation7 + $0x210] sm:$0xff]
    %v1975 = vld [vmem:[#allocation7 + $0x220] sm:$0xff]
    %v1976 = vld [vmem:[#allocation7 + $0x230] sm:$0xff]
    %v1977 = vld [vmem:[#allocation7 + $0x240] sm:$0xff]
    %v1979 = vsel %vm1081, %v1965, 0
    %v1982 = vsel %vm1081, %v1968, 0
    %1984 = vmatpush.msra.mxu0 0.0
    %1985 = vmatpush.msra.mxu0 0.0
    %1986 = vmatpush.msra.mxu0 0.0
    %1987 = vmatpush.msra.mxu0 0.0
    %1988 = vmatpush.msra.mxu0 0.0
    %1989 = vmatpush.msra.mxu0 0.0
    %1990 = vmatpush.msra.mxu0 0.0
    %1991 = vmatpush.msra.mxu0 0.0
    %1992 = vmatpush.msra.mxu0 %v1977
    %1993 = vmatpush.msra.mxu0 %v1976
    %1994 = vmatpush.msra.mxu0 %v1975
    %1995 = vmatpush.msra.mxu0 %v1974
    %1996 = vmatpush.msra.mxu0 %v1973
    %1997 = vmatpush.msra.mxu0 %v1972
    %1998 = vmatpush.msra.mxu0 %v1971
    %1999 = vmatpush.msra.mxu0 %v1970
    %2000 = vmatmul.f32.gmra.mxu0 %v1979
    %v2001 = vpop.f32.mrf.mxu0
    %v2002 = vadd.f32 0.0, %v2001
    %2003 = vmatmul.f32.gmra.mxu0 %v1982
    %v2004 = vpop.f32.mrf.mxu0
    %v2005 = vadd.f32 0.0, %v2004
    %2006 = vdwg.mxu0
    %v2007 = vadd.f32 %v1511, %v2002
    %v2008 = vadd.f32 %v1513, %v2005
    %v2009 = vld [vmem:[#allocation7 + $0x250] sm:$0xff]
    %vm2010 = vcmask 130048
    %v2012 = vsel %vm2010, %v2009, 0
    %2014 = vmatpush.msra.mxu0 0.0
    %2015 = vmatpush.msra.mxu0 0.0
    %2016 = vmatpush.msra.mxu0 0.0
    %2017 = vmatpush.msra.mxu0 0.0
    %2018 = vmatpush.msra.mxu0 0.0
    %2019 = vmatpush.msra.mxu0 0.0
    %2020 = vmatpush.msra.mxu0 0.0
    %2021 = vmatpush.msra.mxu0 0.0
    %2022 = vmatpush.msra.mxu0 0.0
    %2023 = vmatpush.msra.mxu0 0.0
    %2024 = vmatpush.msra.mxu0 0.0
    %2025 = vmatpush.msra.mxu0 0.0
    %2026 = vmatpush.msra.mxu0 0.0
    %2027 = vmatpush.msra.mxu0 0.0
    %2028 = vmatpush.msra.mxu0 %v2008
    %2029 = vmatpush.msra.mxu0 %v2007
    %2030 = vmatmul.f32.gmra.mxu0 %v2012
    %v2031 = vpop.f32.mrf.mxu0
    %v2032 = vadd.f32 0.0, %v2031
    %2033 = vdwg.mxu0
    %v2034 = vpack.c.bf16 %v2032, %v2032
    %v2035 = vld [vmem:[#allocation5 + $0x320] sm:$0xf]
    %v2036 = vld [vmem:[#allocation5 + $0x324] sm:$0xf]
    %v2037 = vld [vmem:[#allocation5 + $0x328] sm:$0xf]
    %v2038 = vld [vmem:[#allocation5 + $0x32c] sm:$0xf]
    %v2039 = vld [vmem:[#allocation7 + $0x260] ss:$0 sm:$0xff]
    %v2044 = vunpack.c.l.b16 %v2035
    %v2045 = vunpack.c.l.b16 %v2036
    %v2046 = vunpack.c.l.b16 %v2037
    %v2047 = vunpack.c.l.b16 %v2038
    %v2048 = vpack.c.b16 %v2045, %v2044
    %v2049 = vpack.c.b16 %v2047, %v2046
    %v2053 = vsel %vm1434, %v2034, 0
    %2055 = vmatpush.bf16.msra.mxu0 0
    %2056 = vmatpush.bf16.msra.mxu0 0
    %2057 = vmatpush.bf16.msra.mxu0 0
    %2058 = vmatpush.bf16.msra.mxu0 0
    %2059 = vmatpush.bf16.msra.mxu0 0
    %2060 = vmatpush.bf16.msra.mxu0 0
    %2061 = vmatpush.bf16.msra.mxu0 %v2049
    %2062 = vmatpush.bf16.msra.mxu0 %v2048
    %2063 = vmatmul.bf16.gmra.mxu0 %v2053
    %v2064 = vpop.f32.mrf.mxu0
    %v2065 = vadd.f32 %v2039, %v2064
    %v2066 = vpop.f32.mrf.mxu0
    %2067 = vdwg.mxu0
    %vm2068 = vcmp.lt.s32.totalorder %v68, 0
    %v2069 = vsub.s32 0, %v68
    %v2070 = vsel %vm2068, %v2069, %v68
    %v2071 = vshrl.u32 %v2070, 3
    %v2072 = vand.u32 %v2070, 7
    %v2073 = vsub.s32 0, %v2072
    %v2074 = vsel %vm2068, %v2073, %v2072
    %vm2075 = vcmp.lt.s32.totalorder %v69, 0
    %v2076 = vsub.s32 0, %v69
    %v2077 = vsel %vm2075, %v2076, %v69
    %v2078 = vshrl.u32 %v2077, 3
    %v2079 = vand.u32 %v2077, 7
    %v2080 = vsub.s32 0, %v2079
    %v2081 = vsel %vm2075, %v2080, %v2079
    %vm2082 = vcmp.ne.s32.totalorder %v2074, 0
    %vm2083 = vcmp.ne.s32.totalorder %v2081, 0
    %vm2084 = vcmp.lt.s32.totalorder %v2074, 0
    %vm2085 = vcmp.lt.s32.totalorder %v2081, 0
    %vm2086 = vmand %vm2084, %vm2082
    %vm2087 = vmand %vm2085, %vm2083
    %v2088 = vadd.s32 %v2074, 8
    %v2089 = vadd.s32 %v2081, 8
    %v2090 = vsel %vm2086, %v2088, %v2074
    %v2091 = vsel %vm2087, %v2089, %v2081
    %vm2092 = vcmp.eq.s32.totalorder %v2090, 0
    %vm2093 = vcmp.eq.s32.totalorder %v2091, 0
    %v2094 = vrot.slane %v2007, 7
    %v2095 = vrot.slane %v2008, 7
    %v2096 = vsel %vm128, %v2094, %v2095
    %v2097 = vsel %vm128, %v2095, %v2094
    %v2098 = vsel %vm2092, 0.0, %v2097
    %v2099 = vsel %vm2093, 0.0, %v2096
    %vm2100 = vcmp.eq.s32.totalorder %v2090, 7
    %vm2101 = vcmp.eq.s32.totalorder %v2091, 7
    %v2102 = vrot.slane %v2007, 1
    %v2103 = vrot.slane %v2008, 1
    %v2104 = vsel %vm145, %v2102, %v2103
    %v2105 = vsel %vm145, %v2103, %v2102
    %v2106 = vsel %vm2100, 0.0, %v2104
    %v2107 = vsel %vm2101, 0.0, %v2105
    %v2108 = vpack.c.bf16 %v2008, %v2007
    %v2109 = vpack.c.bf16 %v2099, %v2098
    %v2110 = vpack.c.bf16 %v2107, %v2106
    %v2111 = vld [vmem:[#allocation5 + $0x330] sm:$0xf]
    %v2112 = vld [vmem:[#allocation5 + $0x334] sm:$0xf]
    %v2113 = vld [vmem:[#allocation5 + $0x338] sm:$0xf]
    %v2114 = vld [vmem:[#allocation5 + $0x33c] sm:$0xf]
    %v2115 = vld [vmem:[#allocation5 + $0x340] sm:$0xf]
    %v2116 = vld [vmem:[#allocation5 + $0x344] sm:$0xf]
    %v2117 = vld [vmem:[#allocation5 + $0x348] sm:$0xf]
    %v2118 = vld [vmem:[#allocation5 + $0x34c] sm:$0xf]
    %v2119 = vld [vmem:[#allocation5 + $0x350] sm:$0xf]
    %v2120 = vld [vmem:[#allocation5 + $0x354] sm:$0xf]
    %v2121 = vld [vmem:[#allocation5 + $0x358] sm:$0xf]
    %v2122 = vld [vmem:[#allocation5 + $0x35c] sm:$0xf]
    %v2127 = vunpack.c.l.b16 %v2111
    %v2128 = vunpack.c.l.b16 %v2112
    %v2129 = vunpack.c.l.b16 %v2113
    %v2130 = vunpack.c.l.b16 %v2114
    %v2131 = vpack.c.b16 %v2128, %v2127
    %v2132 = vpack.c.b16 %v2130, %v2129
    %v2136 = vsel %vm1434, %v2109, 0
    %2138 = vmatpush.bf16.msra.mxu0 0
    %2139 = vmatpush.bf16.msra.mxu0 0
    %2140 = vmatpush.bf16.msra.mxu0 0
    %2141 = vmatpush.bf16.msra.mxu0 0
    %2142 = vmatpush.bf16.msra.mxu0 0
    %2143 = vmatpush.bf16.msra.mxu0 0
    %2144 = vmatpush.bf16.msra.mxu0 %v2132
    %2145 = vmatpush.bf16.msra.mxu0 %v2131
    %2146 = vmatmul.bf16.gmra.mxu0 %v2136
    %v2147 = vpop.f32.mrf.mxu0
    %v2148 = vadd.f32 0.0, %v2147
    %v2149 = vpop.f32.mrf.mxu0
    %v2150 = vadd.f32 0.0, %v2149
    %2151 = vdwg.mxu0
    %v2156 = vunpack.c.l.b16 %v2115
    %v2157 = vunpack.c.l.b16 %v2116
    %v2158 = vunpack.c.l.b16 %v2117
    %v2159 = vunpack.c.l.b16 %v2118
    %v2160 = vpack.c.b16 %v2157, %v2156
    %v2161 = vpack.c.b16 %v2159, %v2158
    %v2165 = vsel %vm1434, %v2108, 0
    %2167 = vmatpush.bf16.msra.mxu0 0
    %2168 = vmatpush.bf16.msra.mxu0 0
    %2169 = vmatpush.bf16.msra.mxu0 0
    %2170 = vmatpush.bf16.msra.mxu0 0
    %2171 = vmatpush.bf16.msra.mxu0 0
    %2172 = vmatpush.bf16.msra.mxu0 0
    %2173 = vmatpush.bf16.msra.mxu0 %v2161
    %2174 = vmatpush.bf16.msra.mxu0 %v2160
    %2175 = vmatmul.bf16.gmra.mxu0 %v2165
    %v2176 = vpop.f32.mrf.mxu0
    %v2177 = vadd.f32 %v2148, %v2176
    %v2178 = vpop.f32.mrf.mxu0
    %v2179 = vadd.f32 %v2150, %v2178
    %2180 = vdwg.mxu0
    %v2185 = vunpack.c.l.b16 %v2119
    %v2186 = vunpack.c.l.b16 %v2120
    %v2187 = vunpack.c.l.b16 %v2121
    %v2188 = vunpack.c.l.b16 %v2122
    %v2189 = vpack.c.b16 %v2186, %v2185
    %v2190 = vpack.c.b16 %v2188, %v2187
    %v2194 = vsel %vm1434, %v2110, 0
    %2196 = vmatpush.bf16.msra.mxu0 0
    %2197 = vmatpush.bf16.msra.mxu0 0
    %2198 = vmatpush.bf16.msra.mxu0 0
    %2199 = vmatpush.bf16.msra.mxu0 0
    %2200 = vmatpush.bf16.msra.mxu0 0
    %2201 = vmatpush.bf16.msra.mxu0 0
    %2202 = vmatpush.bf16.msra.mxu0 %v2190
    %2203 = vmatpush.bf16.msra.mxu0 %v2189
    %2204 = vmatmul.bf16.gmra.mxu0 %v2194
    %v2205 = vpop.f32.mrf.mxu0
    %v2206 = vadd.f32 0.0, %v2205
    %v2207 = vpop.f32.mrf.mxu0
    %v2208 = vadd.f32 0.0, %v2207
    %2209 = vdwg.mxu0
    %v2210 = vadd.f32 %v2177, %v2206
    %v2211 = vadd.f32 %v2179, %v2208
    %v2212 = vld [vmem:[#allocation7 + $0x270] ss:$0 sm:$0xff]
    %v2213 = vadd.f32 %v2210, %v2212
    %v2214 = vadd.f32 %v2211, %v2212
    %v2215 = vmax.f32 %v2213, 0.0
    %v2216 = vmax.f32 %v2214, 0.0
    %v2217 = vrot.slane %v2215, 7
    %v2218 = vrot.slane %v2216, 7
    %v2219 = vsel %vm128, %v2217, %v2218
    %v2220 = vsel %vm128, %v2218, %v2217
    %v2221 = vsel %vm2092, 0.0, %v2220
    %v2222 = vsel %vm2093, 0.0, %v2219
    %v2223 = vrot.slane %v2215, 1
    %v2224 = vrot.slane %v2216, 1
    %v2225 = vsel %vm145, %v2223, %v2224
    %v2226 = vsel %vm145, %v2224, %v2223
    %v2227 = vsel %vm2100, 0.0, %v2225
    %v2228 = vsel %vm2101, 0.0, %v2226
    %v2229 = vpack.c.bf16 %v2216, %v2215
    %v2230 = vpack.c.bf16 %v2222, %v2221
    %v2231 = vpack.c.bf16 %v2228, %v2227
    %v2232 = vld [vmem:[#allocation5 + $0x360] sm:$0xf]
    %v2233 = vld [vmem:[#allocation5 + $0x364] sm:$0xf]
    %v2234 = vld [vmem:[#allocation5 + $0x368] sm:$0xf]
    %v2235 = vld [vmem:[#allocation5 + $0x36c] sm:$0xf]
    %v2236 = vld [vmem:[#allocation5 + $0x370] sm:$0xf]
    %v2237 = vld [vmem:[#allocation5 + $0x374] sm:$0xf]
    %v2238 = vld [vmem:[#allocation5 + $0x378] sm:$0xf]
    %v2239 = vld [vmem:[#allocation5 + $0x37c] sm:$0xf]
    %v2240 = vld [vmem:[#allocation5 + $0x380] sm:$0xf]
    %v2241 = vld [vmem:[#allocation5 + $0x384] sm:$0xf]
    %v2242 = vld [vmem:[#allocation5 + $0x388] sm:$0xf]
    %v2243 = vld [vmem:[#allocation5 + $0x38c] sm:$0xf]
    %v2244 = vld [vmem:[#allocation5 + $0x390] sm:$0xf]
    %v2245 = vld [vmem:[#allocation5 + $0x394] sm:$0xf]
    %v2246 = vld [vmem:[#allocation5 + $0x398] sm:$0xf]
    %v2247 = vld [vmem:[#allocation5 + $0x39c] sm:$0xf]
    %v2248 = vld [vmem:[#allocation5 + $0x3a0] sm:$0xf]
    %v2249 = vld [vmem:[#allocation5 + $0x3a4] sm:$0xf]
    %v2250 = vld [vmem:[#allocation5 + $0x3a8] sm:$0xf]
    %v2251 = vld [vmem:[#allocation5 + $0x3ac] sm:$0xf]
    %v2252 = vld [vmem:[#allocation5 + $0x3b0] sm:$0xf]
    %v2253 = vld [vmem:[#allocation5 + $0x3b4] sm:$0xf]
    %v2254 = vld [vmem:[#allocation5 + $0x3b8] sm:$0xf]
    %v2255 = vld [vmem:[#allocation5 + $0x3bc] sm:$0xf]
    %v2256 = vld [vmem:[#allocation5 + $0x3c0] sm:$0xf]
    %v2257 = vld [vmem:[#allocation5 + $0x3c4] sm:$0xf]
    %v2258 = vld [vmem:[#allocation5 + $0x3c8] sm:$0xf]
    %v2259 = vld [vmem:[#allocation5 + $0x3cc] sm:$0xf]
    %v2260 = vld [vmem:[#allocation5 + $0x3d0] sm:$0xf]
    %v2261 = vld [vmem:[#allocation5 + $0x3d4] sm:$0xf]
    %v2262 = vld [vmem:[#allocation5 + $0x3d8] sm:$0xf]
    %v2263 = vld [vmem:[#allocation5 + $0x3dc] sm:$0xf]
    %v2264 = vld [vmem:[#allocation5 + $0x3e0] sm:$0xf]
    %v2265 = vld [vmem:[#allocation5 + $0x3e4] sm:$0xf]
    %v2266 = vld [vmem:[#allocation5 + $0x3e8] sm:$0xf]
    %v2267 = vld [vmem:[#allocation5 + $0x3ec] sm:$0xf]
    %v2268 = vld [vmem:[#allocation5 + $0x3f0] sm:$0xf]
    %v2269 = vld [vmem:[#allocation5 + $0x3f4] sm:$0xf]
    %v2270 = vld [vmem:[#allocation5 + $0x3f8] sm:$0xf]
    %v2271 = vld [vmem:[#allocation5 + $0x3fc] sm:$0xf]
    %v2272 = vld [vmem:[#allocation5 + $0x400] sm:$0xf]
    %v2273 = vld [vmem:[#allocation5 + $0x404] sm:$0xf]
    %v2274 = vld [vmem:[#allocation5 + $0x408] sm:$0xf]
    %v2275 = vld [vmem:[#allocation5 + $0x40c] sm:$0xf]
    %v2276 = vld [vmem:[#allocation5 + $0x410] sm:$0xf]
    %v2277 = vld [vmem:[#allocation5 + $0x414] sm:$0xf]
    %v2278 = vld [vmem:[#allocation5 + $0x418] sm:$0xf]
    %v2279 = vld [vmem:[#allocation5 + $0x41c] sm:$0xf]
    %v2296 = vunpack.c.l.b16 %v2232
    %v2297 = vunpack.c.l.b16 %v2233
    %v2298 = vunpack.c.l.b16 %v2234
    %v2299 = vunpack.c.l.b16 %v2235
    %v2300 = vunpack.c.l.b16 %v2236
    %v2301 = vunpack.c.l.b16 %v2237
    %v2302 = vunpack.c.l.b16 %v2238
    %v2303 = vunpack.c.l.b16 %v2239
    %v2304 = vunpack.c.l.b16 %v2240
    %v2305 = vunpack.c.l.b16 %v2241
    %v2306 = vunpack.c.l.b16 %v2242
    %v2307 = vunpack.c.l.b16 %v2243
    %v2308 = vunpack.c.l.b16 %v2244
    %v2309 = vunpack.c.l.b16 %v2245
    %v2310 = vunpack.c.l.b16 %v2246
    %v2311 = vunpack.c.l.b16 %v2247
    %v2312 = vpack.c.b16 %v2297, %v2296
    %v2313 = vpack.c.b16 %v2299, %v2298
    %v2314 = vpack.c.b16 %v2301, %v2300
    %v2315 = vpack.c.b16 %v2303, %v2302
    %v2316 = vpack.c.b16 %v2305, %v2304
    %v2317 = vpack.c.b16 %v2307, %v2306
    %v2318 = vpack.c.b16 %v2309, %v2308
    %v2319 = vpack.c.b16 %v2311, %v2310
    %2328 = vmatpush.bf16.msra.mxu0 %v2319
    %2329 = vmatpush.bf16.msra.mxu0 %v2318
    %2330 = vmatpush.bf16.msra.mxu0 %v2317
    %2331 = vmatpush.bf16.msra.mxu0 %v2316
    %2332 = vmatpush.bf16.msra.mxu0 %v2315
    %2333 = vmatpush.bf16.msra.mxu0 %v2314
    %2334 = vmatpush.bf16.msra.mxu0 %v2313
    %2335 = vmatpush.bf16.msra.mxu0 %v2312
    %2336 = vmatmul.bf16.gmra.mxu0 %v2230
    %v2337 = vpop.f32.mrf.mxu0
    %v2338 = vadd.f32 0.0, %v2337
    %v2339 = vpop.f32.mrf.mxu0
    %v2340 = vadd.f32 0.0, %v2339
    %2341 = vdwg.mxu0
    %v2358 = vunpack.c.l.b16 %v2248
    %v2359 = vunpack.c.l.b16 %v2249
    %v2360 = vunpack.c.l.b16 %v2250
    %v2361 = vunpack.c.l.b16 %v2251
    %v2362 = vunpack.c.l.b16 %v2252
    %v2363 = vunpack.c.l.b16 %v2253
    %v2364 = vunpack.c.l.b16 %v2254
    %v2365 = vunpack.c.l.b16 %v2255
    %v2366 = vunpack.c.l.b16 %v2256
    %v2367 = vunpack.c.l.b16 %v2257
    %v2368 = vunpack.c.l.b16 %v2258
    %v2369 = vunpack.c.l.b16 %v2259
    %v2370 = vunpack.c.l.b16 %v2260
    %v2371 = vunpack.c.l.b16 %v2261
    %v2372 = vunpack.c.l.b16 %v2262
    %v2373 = vunpack.c.l.b16 %v2263
    %v2374 = vpack.c.b16 %v2359, %v2358
    %v2375 = vpack.c.b16 %v2361, %v2360
    %v2376 = vpack.c.b16 %v2363, %v2362
    %v2377 = vpack.c.b16 %v2365, %v2364
    %v2378 = vpack.c.b16 %v2367, %v2366
    %v2379 = vpack.c.b16 %v2369, %v2368
    %v2380 = vpack.c.b16 %v2371, %v2370
    %v2381 = vpack.c.b16 %v2373, %v2372
    %2390 = vmatpush.bf16.msra.mxu0 %v2381
    %2391 = vmatpush.bf16.msra.mxu0 %v2380
    %2392 = vmatpush.bf16.msra.mxu0 %v2379
    %2393 = vmatpush.bf16.msra.mxu0 %v2378
    %2394 = vmatpush.bf16.msra.mxu0 %v2377
    %2395 = vmatpush.bf16.msra.mxu0 %v2376
    %2396 = vmatpush.bf16.msra.mxu0 %v2375
    %2397 = vmatpush.bf16.msra.mxu0 %v2374
    %2398 = vmatmul.bf16.gmra.mxu0 %v2229
    %v2399 = vpop.f32.mrf.mxu0
    %v2400 = vadd.f32 %v2338, %v2399
    %v2401 = vpop.f32.mrf.mxu0
    %v2402 = vadd.f32 %v2340, %v2401
    %2403 = vdwg.mxu0
    %v2420 = vunpack.c.l.b16 %v2264
    %v2421 = vunpack.c.l.b16 %v2265
    %v2422 = vunpack.c.l.b16 %v2266
    %v2423 = vunpack.c.l.b16 %v2267
    %v2424 = vunpack.c.l.b16 %v2268
    %v2425 = vunpack.c.l.b16 %v2269
    %v2426 = vunpack.c.l.b16 %v2270
    %v2427 = vunpack.c.l.b16 %v2271
    %v2428 = vunpack.c.l.b16 %v2272
    %v2429 = vunpack.c.l.b16 %v2273
    %v2430 = vunpack.c.l.b16 %v2274
    %v2431 = vunpack.c.l.b16 %v2275
    %v2432 = vunpack.c.l.b16 %v2276
    %v2433 = vunpack.c.l.b16 %v2277
    %v2434 = vunpack.c.l.b16 %v2278
    %v2435 = vunpack.c.l.b16 %v2279
    %v2436 = vpack.c.b16 %v2421, %v2420
    %v2437 = vpack.c.b16 %v2423, %v2422
    %v2438 = vpack.c.b16 %v2425, %v2424
    %v2439 = vpack.c.b16 %v2427, %v2426
    %v2440 = vpack.c.b16 %v2429, %v2428
    %v2441 = vpack.c.b16 %v2431, %v2430
    %v2442 = vpack.c.b16 %v2433, %v2432
    %v2443 = vpack.c.b16 %v2435, %v2434
    %2452 = vmatpush.bf16.msra.mxu0 %v2443
    %2453 = vmatpush.bf16.msra.mxu0 %v2442
    %2454 = vmatpush.bf16.msra.mxu0 %v2441
    %2455 = vmatpush.bf16.msra.mxu0 %v2440
    %2456 = vmatpush.bf16.msra.mxu0 %v2439
    %2457 = vmatpush.bf16.msra.mxu0 %v2438
    %2458 = vmatpush.bf16.msra.mxu0 %v2437
    %2459 = vmatpush.bf16.msra.mxu0 %v2436
    %2460 = vmatmul.bf16.gmra.mxu0 %v2231
    %v2461 = vpop.f32.mrf.mxu0
    %v2462 = vadd.f32 0.0, %v2461
    %v2463 = vpop.f32.mrf.mxu0
    %v2464 = vadd.f32 0.0, %v2463
    %2465 = vdwg.mxu0
    %v2466 = vadd.f32 %v2400, %v2462
    %v2467 = vadd.f32 %v2402, %v2464
    %v2468 = vld [vmem:[#allocation7 + $0x280] ss:$0 sm:$0xff]
    %v2469 = vadd.f32 %v2466, %v2468
    %v2470 = vadd.f32 %v2467, %v2468
    %v2471 = vld [vmem:[#allocation7 + $0x290] sm:$0xff]
    %v2473 = vsel %vm2010, %v2471, 0
    %2475 = vmatpush.msra.mxu0 0.0
    %2476 = vmatpush.msra.mxu0 0.0
    %2477 = vmatpush.msra.mxu0 0.0
    %2478 = vmatpush.msra.mxu0 0.0
    %2479 = vmatpush.msra.mxu0 0.0
    %2480 = vmatpush.msra.mxu0 0.0
    %2481 = vmatpush.msra.mxu0 0.0
    %2482 = vmatpush.msra.mxu0 0.0
    %2483 = vmatpush.msra.mxu0 0.0
    %2484 = vmatpush.msra.mxu0 0.0
    %2485 = vmatpush.msra.mxu0 0.0
    %2486 = vmatpush.msra.mxu0 0.0
    %2487 = vmatpush.msra.mxu0 0.0
    %2488 = vmatpush.msra.mxu0 0.0
    %2489 = vmatpush.msra.mxu0 %v2470
    %2490 = vmatpush.msra.mxu0 %v2469
    %2491 = vmatmul.f32.gmra.mxu0 %v2473
    %v2492 = vpop.f32.mrf.mxu0
    %v2493 = vadd.f32 0.0, %v2492
    %2494 = vdwg.mxu0
    %v2495 = vld [vmem:[#allocation7 + $0x2a0] sm:$0xff]
    %v2496 = vld [vmem:[#allocation7 + $0x2b0] sm:$0xff]
    %v2497 = vld [vmem:[#allocation7 + $0x2c0] sm:$0xff]
    %v2498 = vld [vmem:[#allocation7 + $0x2d0] sm:$0xff]
    %v2499 = vld [vmem:[#allocation7 + $0x2e0] sm:$0xff]
    %v2500 = vld [vmem:[#allocation7 + $0x2f0] sm:$0xff]
    %v2501 = vld [vmem:[#allocation7 + $0x300] sm:$0xff]
    %v2502 = vld [vmem:[#allocation7 + $0x310] sm:$0xff]
    %v2503 = vld [vmem:[#allocation7 + $0x320] sm:$0xff]
    %v2504 = vld [vmem:[#allocation7 + $0x330] sm:$0xff]
    %v2505 = vld [vmem:[#allocation7 + $0x340] sm:$0xff]
    %v2506 = vld [vmem:[#allocation7 + $0x350] sm:$0xff]
    %v2507 = vld [vmem:[#allocation7 + $0x360] sm:$0xff]
    %v2508 = vld [vmem:[#allocation7 + $0x370] sm:$0xff]
    %v2509 = vld [vmem:[#allocation7 + $0x380] sm:$0xff]
    %v2510 = vld [vmem:[#allocation7 + $0x390] sm:$0xff]
    %2511 = vmatpush.msra.mxu0 %v2510
    %2512 = vmatpush.msra.mxu0 %v2509
    %2513 = vmatpush.msra.mxu0 %v2508
    %2514 = vmatpush.msra.mxu0 %v2507
    %2515 = vmatpush.msra.mxu0 %v2506
    %2516 = vmatpush.msra.mxu0 %v2505
    %2517 = vmatpush.msra.mxu0 %v2504
    %2518 = vmatpush.msra.mxu0 %v2503
    %2519 = vmatpush.msra.mxu0 %v2502
    %2520 = vmatpush.msra.mxu0 %v2501
    %2521 = vmatpush.msra.mxu0 %v2500
    %2522 = vmatpush.msra.mxu0 %v2499
    %2523 = vmatpush.msra.mxu0 %v2498
    %2524 = vmatpush.msra.mxu0 %v2497
    %2525 = vmatpush.msra.mxu0 %v2496
    %2526 = vmatpush.msra.mxu0 %v2495
    %2527 = vmatmul.f32.gmra.mxu0 %v2493
    %v2528 = vpop.f32.mrf.mxu0
    %v2529 = vadd.f32 0.0, %v2528
    %2530 = vdwg.mxu0
    %v2531 = vadd.f32 %v2065, %v2529
    %vm2532 = vcmp.lt.s32.totalorder %v68, 0
    %v2533 = vsub.s32 0, %v68
    %v2534 = vsel %vm2532, %v2533, %v68
    %v2535 = vshrl.u32 %v2534, 2
    %v2536 = vand.u32 %v2534, 3
    %v2537 = vsub.s32 0, %v2536
    %v2538 = vsel %vm2532, %v2537, %v2536
    %vm2539 = vcmp.ne.s32.totalorder %v2538, 0
    %vm2540 = vcmp.lt.s32.totalorder %v2538, 0
    %vm2541 = vmand %vm2540, %vm2539
    %v2542 = vadd.s32 %v2538, 4
    %v2543 = vsel %vm2541, %v2542, %v2538
    %vm2544 = vcmp.eq.s32.totalorder %v2543, 0
    %v2545 = vrot.slane %v2531, 7
    %v2546 = vsel %vm2544, 0.0, %v2545
    %vm2547 = vcmp.eq.s32.totalorder %v2543, 3
    %v2548 = vrot.slane %v2531, 1
    %v2549 = vsel %vm2547, 0.0, %v2548
    %v2550 = vpack.c.bf16 %v2531, %v2531
    %v2551 = vpack.c.bf16 %v2546, %v2546
    %v2552 = vpack.c.bf16 %v2549, %v2549
    %v2553 = vld [vmem:[#allocation5 + $0x420] sm:$0xf]
    %v2554 = vld [vmem:[#allocation5 + $0x424] sm:$0xf]
    %v2555 = vld [vmem:[#allocation5 + $0x428] sm:$0xf]
    %v2556 = vld [vmem:[#allocation5 + $0x42c] sm:$0xf]
    %v2557 = vld [vmem:[#allocation5 + $0x430] sm:$0xf]
    %v2558 = vld [vmem:[#allocation5 + $0x434] sm:$0xf]
    %v2559 = vld [vmem:[#allocation5 + $0x438] sm:$0xf]
    %v2560 = vld [vmem:[#allocation5 + $0x43c] sm:$0xf]
    %v2561 = vld [vmem:[#allocation5 + $0x440] sm:$0xf]
    %v2562 = vld [vmem:[#allocation5 + $0x444] sm:$0xf]
    %v2563 = vld [vmem:[#allocation5 + $0x448] sm:$0xf]
    %v2564 = vld [vmem:[#allocation5 + $0x44c] sm:$0xf]
    %v2565 = vld [vmem:[#allocation5 + $0x450] sm:$0xf]
    %v2566 = vld [vmem:[#allocation5 + $0x454] sm:$0xf]
    %v2567 = vld [vmem:[#allocation5 + $0x458] sm:$0xf]
    %v2568 = vld [vmem:[#allocation5 + $0x45c] sm:$0xf]
    %v2569 = vld [vmem:[#allocation5 + $0x460] sm:$0xf]
    %v2570 = vld [vmem:[#allocation5 + $0x464] sm:$0xf]
    %v2571 = vld [vmem:[#allocation5 + $0x468] sm:$0xf]
    %v2572 = vld [vmem:[#allocation5 + $0x46c] sm:$0xf]
    %v2573 = vld [vmem:[#allocation5 + $0x470] sm:$0xf]
    %v2574 = vld [vmem:[#allocation5 + $0x474] sm:$0xf]
    %v2575 = vld [vmem:[#allocation5 + $0x478] sm:$0xf]
    %v2576 = vld [vmem:[#allocation5 + $0x47c] sm:$0xf]
    %v2585 = vunpack.c.l.b16 %v2553
    %v2586 = vunpack.c.l.b16 %v2554
    %v2587 = vunpack.c.l.b16 %v2555
    %v2588 = vunpack.c.l.b16 %v2556
    %v2589 = vunpack.c.l.b16 %v2557
    %v2590 = vunpack.c.l.b16 %v2558
    %v2591 = vunpack.c.l.b16 %v2559
    %v2592 = vunpack.c.l.b16 %v2560
    %v2593 = vpack.c.b16 %v2586, %v2585
    %v2594 = vpack.c.b16 %v2588, %v2587
    %v2595 = vpack.c.b16 %v2590, %v2589
    %v2596 = vpack.c.b16 %v2592, %v2591
    %v2602 = vsel %vm1081, %v2551, 0
    %2604 = vmatpush.bf16.msra.mxu0 0
    %2605 = vmatpush.bf16.msra.mxu0 0
    %2606 = vmatpush.bf16.msra.mxu0 0
    %2607 = vmatpush.bf16.msra.mxu0 0
    %2608 = vmatpush.bf16.msra.mxu0 %v2596
    %2609 = vmatpush.bf16.msra.mxu0 %v2595
    %2610 = vmatpush.bf16.msra.mxu0 %v2594
    %2611 = vmatpush.bf16.msra.mxu0 %v2593
    %2612 = vmatmul.bf16.gmra.mxu0 %v2602
    %v2613 = vpop.f32.mrf.mxu0
    %v2614 = vadd.f32 0.0, %v2613
    %v2615 = vpop.f32.mrf.mxu0
    %2616 = vdwg.mxu0
    %v2625 = vunpack.c.l.b16 %v2561
    %v2626 = vunpack.c.l.b16 %v2562
    %v2627 = vunpack.c.l.b16 %v2563
    %v2628 = vunpack.c.l.b16 %v2564
    %v2629 = vunpack.c.l.b16 %v2565
    %v2630 = vunpack.c.l.b16 %v2566
    %v2631 = vunpack.c.l.b16 %v2567
    %v2632 = vunpack.c.l.b16 %v2568
    %v2633 = vpack.c.b16 %v2626, %v2625
    %v2634 = vpack.c.b16 %v2628, %v2627
    %v2635 = vpack.c.b16 %v2630, %v2629
    %v2636 = vpack.c.b16 %v2632, %v2631
    %v2642 = vsel %vm1081, %v2550, 0
    %2644 = vmatpush.bf16.msra.mxu0 0
    %2645 = vmatpush.bf16.msra.mxu0 0
    %2646 = vmatpush.bf16.msra.mxu0 0
    %2647 = vmatpush.bf16.msra.mxu0 0
    %2648 = vmatpush.bf16.msra.mxu0 %v2636
    %2649 = vmatpush.bf16.msra.mxu0 %v2635
    %2650 = vmatpush.bf16.msra.mxu0 %v2634
    %2651 = vmatpush.bf16.msra.mxu0 %v2633
    %2652 = vmatmul.bf16.gmra.mxu0 %v2642
    %v2653 = vpop.f32.mrf.mxu0
    %v2654 = vadd.f32 %v2614, %v2653
    %v2655 = vpop.f32.mrf.mxu0
    %2656 = vdwg.mxu0
    %v2665 = vunpack.c.l.b16 %v2569
    %v2666 = vunpack.c.l.b16 %v2570
    %v2667 = vunpack.c.l.b16 %v2571
    %v2668 = vunpack.c.l.b16 %v2572
    %v2669 = vunpack.c.l.b16 %v2573
    %v2670 = vunpack.c.l.b16 %v2574
    %v2671 = vunpack.c.l.b16 %v2575
    %v2672 = vunpack.c.l.b16 %v2576
    %v2673 = vpack.c.b16 %v2666, %v2665
    %v2674 = vpack.c.b16 %v2668, %v2667
    %v2675 = vpack.c.b16 %v2670, %v2669
    %v2676 = vpack.c.b16 %v2672, %v2671
    %v2682 = vsel %vm1081, %v2552, 0
    %2684 = vmatpush.bf16.msra.mxu0 0
    %2685 = vmatpush.bf16.msra.mxu0 0
    %2686 = vmatpush.bf16.msra.mxu0 0
    %2687 = vmatpush.bf16.msra.mxu0 0
    %2688 = vmatpush.bf16.msra.mxu0 %v2676
    %2689 = vmatpush.bf16.msra.mxu0 %v2675
    %2690 = vmatpush.bf16.msra.mxu0 %v2674
    %2691 = vmatpush.bf16.msra.mxu0 %v2673
    %2692 = vmatmul.bf16.gmra.mxu0 %v2682
    %v2693 = vpop.f32.mrf.mxu0
    %v2694 = vadd.f32 0.0, %v2693
    %v2695 = vpop.f32.mrf.mxu0
    %2696 = vdwg.mxu0
    %v2697 = vadd.f32 %v2654, %v2694
    %v2698 = vld [vmem:[#allocation7 + $0x3a0] ss:$0 sm:$0xff]
    %v2699 = vadd.f32 %v2697, %v2698
    %v2700 = vmax.f32 %v2699, 0.0
    %v2701 = vld [vmem:[#allocation7 + $0x3b0] sm:$0x3]
    %vm2702 = vcmask 64512
    %v2704 = vsel %vm2702, %v2701, 0
    %2706 = vmatpush.msra.mxu0 0.0
    %2707 = vmatpush.msra.mxu0 0.0
    %2708 = vmatpush.msra.mxu0 0.0
    %2709 = vmatpush.msra.mxu0 0.0
    %2710 = vmatpush.msra.mxu0 0.0
    %2711 = vmatpush.msra.mxu0 0.0
    %2712 = vmatpush.msra.mxu0 0.0
    %2713 = vmatpush.msra.mxu0 0.0
    %2714 = vmatpush.msra.mxu0 0.0
    %2715 = vmatpush.msra.mxu0 0.0
    %2716 = vmatpush.msra.mxu0 0.0
    %2717 = vmatpush.msra.mxu0 0.0
    %2718 = vmatpush.msra.mxu0 0.0
    %2719 = vmatpush.msra.mxu0 0.0
    %2720 = vmatpush.msra.mxu0 0.0
    %2721 = vmatpush.msra.mxu0 %v2700
    %2722 = vmatmul.f32.gmra.mxu0 %v2704
    %v2723 = vpop.f32.mrf.mxu0
    %v2724 = vadd.f32 0.0, %v2723
    %2725 = vdwg.mxu0
    %v2726 = vld [vmem:[#allocation7 + $0x3c0] sm:$0xff]
    %v2727 = vld [vmem:[#allocation7 + $0x3d0] sm:$0xff]
    %v2728 = vld [vmem:[#allocation7 + $0x3e0] sm:$0xff]
    %v2729 = vld [vmem:[#allocation7 + $0x3f0] sm:$0xff]
    %v2730 = vld [vmem:[#allocation7 + $0x400] sm:$0xff]
    %v2731 = vld [vmem:[#allocation7 + $0x410] sm:$0xff]
    %v2732 = vld [vmem:[#allocation7 + $0x420] sm:$0xff]
    %v2733 = vld [vmem:[#allocation7 + $0x430] sm:$0xff]
    %v2735 = vsel %vm1081, %v2724, 0
    %2737 = vmatpush.msra.mxu0 0.0
    %2738 = vmatpush.msra.mxu0 0.0
    %2739 = vmatpush.msra.mxu0 0.0
    %2740 = vmatpush.msra.mxu0 0.0
    %2741 = vmatpush.msra.mxu0 0.0
    %2742 = vmatpush.msra.mxu0 0.0
    %2743 = vmatpush.msra.mxu0 0.0
    %2744 = vmatpush.msra.mxu0 0.0
    %2745 = vmatpush.msra.mxu0 %v2733
    %2746 = vmatpush.msra.mxu0 %v2732
    %2747 = vmatpush.msra.mxu0 %v2731
    %2748 = vmatpush.msra.mxu0 %v2730
    %2749 = vmatpush.msra.mxu0 %v2729
    %2750 = vmatpush.msra.mxu0 %v2728
    %2751 = vmatpush.msra.mxu0 %v2727
    %2752 = vmatpush.msra.mxu0 %v2726
    %2753 = vmatmul.f32.gmra.mxu0 %v2735
    %v2754 = vpop.f32.mrf.mxu0
    %v2755 = vadd.f32 0.0, %v2754
    %2756 = vdwg.mxu0
    %v2757 = vld [vmem:[#allocation7 + $0x440] sm:$0xff]
    %v2758 = vld [vmem:[#allocation7 + $0x450] sm:$0xff]
    %v2759 = vld [vmem:[#allocation7 + $0x460] ss:$0 sm:$0xff]
    %v2761 = vsel %vm2010, %v2755, 0
    %2763 = vmatpush.msra.mxu0 0.0
    %2764 = vmatpush.msra.mxu0 0.0
    %2765 = vmatpush.msra.mxu0 0.0
    %2766 = vmatpush.msra.mxu0 0.0
    %2767 = vmatpush.msra.mxu0 0.0
    %2768 = vmatpush.msra.mxu0 0.0
    %2769 = vmatpush.msra.mxu0 0.0
    %2770 = vmatpush.msra.mxu0 0.0
    %2771 = vmatpush.msra.mxu0 0.0
    %2772 = vmatpush.msra.mxu0 0.0
    %2773 = vmatpush.msra.mxu0 0.0
    %2774 = vmatpush.msra.mxu0 0.0
    %2775 = vmatpush.msra.mxu0 0.0
    %2776 = vmatpush.msra.mxu0 0.0
    %2777 = vmatpush.msra.mxu0 %v2758
    %2778 = vmatpush.msra.mxu0 %v2757
    %2779 = vmatmul.f32.gmra.mxu0 %v2761
    %v2780 = vpop.f32.mrf.mxu0
    %v2781 = vadd.f32 %v2759, %v2780
    %2782 = vdwg.mxu0
    %vm2783 = vcmask 9216
    %2784 = vst.msk [vmem:[#allocation8] sm:$0x3] %vm2783, %v2781
    // Predicated region
    $region26: #{tpu_custom_call.1} parent=1 // pred_check
      _
    $region27: #{tpu_custom_call.1} parent=1 // pred_check_branch
      %2786 = sbr.rel (0) target = $region29
    $region28: #{tpu_custom_call.1} parent=1 // pred_region
      %2788 = vsyncadd [#allocation4], 0
      %s2790 = sshll.u32 [#allocation8], 4
      %s2791 = int_to_ptr.vmem [resolvable:$true] %s2790
      %s2792 = sshll.u32 %s3, 4
      %s2793 = int_to_ptr.hbm [resolvable:$true] %s2792
      %2795 = dma.vmem_to_hbm [thread:$0]  %s2791, 32, %s2793, [#allocation4]
    $region29: #{tpu_custom_call.1} parent=1 // pred_fallthru
      _
    // Predicated region
    $region30: #{tpu_custom_call.1} parent=1 // pred_check
      _
    $region31: #{tpu_custom_call.1} parent=1 // pred_check_branch
      %2797 = sbr.rel (0) target = $region33
    $region32: #{tpu_custom_call.1} parent=1 // pred_region
      %2799 = dma.done [#allocation4], 32
    $region33: #{tpu_custom_call.1} parent=1 // pred_fallthru
      _
    %2800 = vsyncpa [#allocation3], 1
    %2801 = vsyncpa [#allocation6], 1
    %2802 = vsyncpa [#allocation4], 1

</llo_original>
